<compile_context>
chip_gen: v6e
topology: v6e:2x2x1
jax: 0.10.0
libtpu: 0.0.40
codegen_flags: <defaults>
</compile_context>

<pallas_src>
import numpy as np
import jax
import jax.numpy as jnp
from jax import lax
from jax.experimental import pallas as pl
from jax.experimental.pallas import tpu as pltpu


def _make_spmm_kernel(accumulate_in_out, mxu_dtype):
    """Builds the per-(feature-tile, edge-chunk) kernel body.

    accumulate_in_out : True  -> accumulate straight into out_ref (f32 outputs).
                        False -> accumulate in an f32 VMEM scratch, cast once at the
                                 last chunk of each destination-block run.
    mxu_dtype         : dtype fed to the MXU (bf16 for native rate, or f32).
    """

    def kernel(meta_ref, row_ref, col_ref, val_ref, x_ref, out_ref, *scratch):
        ci = pl.program_id(1)
        first = meta_ref[2, ci]          # 1 iff first chunk of this dst-block run
        nb = out_ref.shape[0]

        r = row_ref[...]                 # (1, Ec)  int32, block-local dst row ids
        c = col_ref[...]                 # (Ec, 1)  int32, block-local src col ids
        w = val_ref[...]                 # (Ec, 1)  f32,   edge weights (0 = padding)

        # Tiny grid-invariant iotas; broadcasting forms the (Nb, Ec)/(Ec, Nb) predicates.
        sub_ids = lax.broadcasted_iota(jnp.int32, (nb, 1), 0)    # node id along sublanes
        lane_ids = lax.broadcasted_iota(jnp.int32, (1, nb), 1)   # node id along lanes

        # One-hot gather matrix built directly in MXU-native (Ec, Nb) orientation.
        gather = (c == lane_ids).astype(mxu_dtype)               # (Ec, Nb)
        # gathered[e, :] = x_blk[col_local[e], :]
        gathered = jnp.dot(gather, x_ref[...],
                           preferred_element_type=jnp.float32)   # (Ec, d_tile) f32
        # Edge weights applied on the small (Ec, d_tile) tile, then rounded for the MXU.
        gathered = (gathered * w).astype(mxu_dtype)

        # Pure 0/1 scatter matrix (exact in bf16); weighted scatter-add on the MXU.
        scatter = (sub_ids == r).astype(mxu_dtype)               # (Nb, Ec)
        contrib = jnp.dot(scatter, gathered,
                          preferred_element_type=jnp.float32)    # (Nb, d_tile) f32

        acc = out_ref if accumulate_in_out else scratch[0]

        @pl.when(first == 1)
        def _init():
            acc[...] = contrib.astype(acc.dtype)

        @pl.when(first == 0)
        def _accumulate():
            acc[...] += contrib.astype(acc.dtype)

        if not accumulate_in_out:
            @pl.when(meta_ref[3, ci] == 1)
            def _finalize():
                out_ref[...] = acc[...].astype(out_ref.dtype)

    return kernel


def _bin_edges(row, col, values, n_blocks, node_block, edge_chunk):
    """Host-side (dst-block, src-block) edge binning into fixed-size chunks.

    Returns (meta, row_chunks, col_chunks, val_chunks):
      meta        int32 (4, n_chunks) = [dst_blk, src_blk, first_of_run, last_of_run]
      row_chunks  int32 (n_chunks, 1, Ec)   block-local dst row ids
      col_chunks  int32 (n_chunks, Ec, 1)   block-local src col ids
      val_chunks  f32   (n_chunks, Ec, 1)   edge weights (padding edges carry 0)
    Chunks are ordered by destination block so each output block stays resident in
    VMEM for exactly one consecutive run of grid steps.
    """
    row = np.asarray(jax.device_get(row)).astype(np.int32).ravel()
    col = np.asarray(jax.device_get(col)).astype(np.int32).ravel()
    val = np.asarray(jax.device_get(values)).astype(np.float32).ravel()

    rows, cols, vals = [], [], []
    dst, src, first = [], [], []
    dst_of_edge = row // node_block
    src_of_edge = col // node_block
    for db in range(n_blocks):
        in_db = dst_of_edge == db
        first_of_run = True
        for sb in range(n_blocks):
            idx = np.nonzero(in_db & (src_of_edge == sb))[0]
            if idx.size == 0:
                continue
            lr = row[idx] - db * node_block
            lc = col[idx] - sb * node_block
            lv = val[idx]
            n_c = -(-idx.size // edge_chunk)
            pad = n_c * edge_chunk - idx.size
            lr = np.pad(lr, (0, pad))
            lc = np.pad(lc, (0, pad))
            lv = np.pad(lv, (0, pad))        # padding edges contribute weight 0
            for k in range(n_c):
                sl = slice(k * edge_chunk, (k + 1) * edge_chunk)
                rows.append(lr[sl]); cols.append(lc[sl]); vals.append(lv[sl])
                dst.append(db); src.append(sb)
                first.append(1 if first_of_run else 0)
                first_of_run = False
        if first_of_run:
            # Destination block with no incoming edges: one all-zero chunk so its
            # output rows still get written (zero-initialised).
            rows.append(np.zeros(edge_chunk, np.int32))
            cols.append(np.zeros(edge_chunk, np.int32))
            vals.append(np.zeros(edge_chunk, np.float32))
            dst.append(db); src.append(0); first.append(1)

    n_chunks = len(rows)
    last = [1 if (i + 1 == n_chunks or dst[i + 1] != dst[i]) else 0
            for i in range(n_chunks)]
    meta = np.array([dst, src, first, last], dtype=np.int32)           # (4, n_chunks)
    row_chunks = np.stack(rows).reshape(n_chunks, 1, edge_chunk).astype(np.int32)
    col_chunks = np.stack(cols).reshape(n_chunks, edge_chunk, 1).astype(np.int32)
    val_chunks = np.stack(vals).reshape(n_chunks, edge_chunk, 1).astype(np.float32)
    return meta, row_chunks, col_chunks, val_chunks


def spmm(row, col, values, x, *, node_block=256, edge_chunk=512, d_tile=128,
         use_bf16_mxu=True, vmem_limit_bytes=None):
    """out[row[e]] += values[e] * x[col[e]]  (COO SpMM) as a node-blocked Pallas call.

    node_block : dst/src node-block size (multiple of 8).  x/out/acc slabs are
                 (node_block, d_tile), so VMEM use is independent of N.
    edge_chunk : edges per MXU chunk (multiple of 128).  512 fills the 256-deep MXU
                 K dim on v6e/v7x; 256 is plenty on v5e (4x128 MXU).
    d_tile     : feature-tile width (multiple of 128).  128 is safe on all gens;
                 raise to 256 on v6e (and on v7x if VMEM allows) to fill the
                 256-wide MXU.  Keep d_pad // d_tile >= 2 on v7x so both
                 TensorCores get a parallel grid step.
    use_bf16_mxu : feed the MXU bf16 operands (one-hots are exactly 0/1; x and the
                 weighted gather result are rounded once).  Set False for f32 matmuls.

    NOTE: edge binning uses concrete indices host-side, so this wrapper is not
    jit-traceable as written.
    # TODO(synk): vectorise the binning (lexsort) and expose it as an explicit
    # preprocessing step (analogous to cogdl's CSR preprocessing for fast_spmm) so
    # the pallas_call itself can live under jit.
    """
    assert node_block % 8 == 0 and d_tile % 128 == 0 and edge_chunk % 128 == 0
    N, d = x.shape

    n_blocks = max(1, -(-N // node_block))
    n_pad = n_blocks * node_block
    d_pad = max(d_tile, -(-d // d_tile) * d_tile)

    x_p = x
    if n_pad != N or d_pad != d:
        x_p = jnp.pad(x, ((0, n_pad - N), (0, d_pad - d)))

    meta, row_c, col_c, val_c = _bin_edges(row, col, values, n_blocks,
                                           node_block, edge_chunk)
    n_chunks = meta.shape[1]

    out_dtype = x.dtype
    accumulate_in_out = out_dtype == jnp.float32
    mxu_dtype = jnp.bfloat16 if use_bf16_mxu else x_p.dtype
    x_k = x_p.astype(jnp.bfloat16) if (use_bf16_mxu and x_p.dtype != jnp.bfloat16) else x_p

    kernel = _make_spmm_kernel(accumulate_in_out, mxu_dtype)
    scratch = [] if accumulate_in_out else [pltpu.VMEM((node_block, d_tile), jnp.float32)]

    grid = (d_pad // d_tile, n_chunks)   # (parallel feature tiles, dst-sorted chunks)

    compiler_kwargs = dict(dimension_semantics=("parallel", "arbitrary"))
    if vmem_limit_bytes is not None:
        compiler_kwargs["vmem_limit_bytes"] = vmem_limit_bytes

    out_p = pl.pallas_call(
        kernel,
        out_shape=jax.ShapeDtypeStruct((n_pad, d_pad), out_dtype),
        grid_spec=pltpu.PrefetchScalarGridSpec(
            num_scalar_prefetch=1,
            grid=grid,
            in_specs=[
                # Block-local edge data, streamed one chunk per grid step.
                pl.BlockSpec((None, 1, edge_chunk), lambda di, ci, meta: (ci, 0, 0)),
                pl.BlockSpec((None, edge_chunk, 1), lambda di, ci, meta: (ci, 0, 0)),
                pl.BlockSpec((None, edge_chunk, 1), lambda di, ci, meta: (ci, 0, 0)),
                # x slab selected by the chunk's source block (data-dependent).
                pl.BlockSpec((node_block, d_tile),
                             lambda di, ci, meta: (meta[1, ci], di)),
            ],
            # Output slab selected by the chunk's destination block; stays resident
            # across the consecutive chunks of one destination-block run.
            out_specs=pl.BlockSpec((node_block, d_tile),
                                   lambda di, ci, meta: (meta[0, ci], di)),
            scratch_shapes=scratch,
        ),
        compiler_params=pltpu.CompilerParams(**compiler_kwargs),
    )(jnp.asarray(meta), jnp.asarray(row_c), jnp.asarray(col_c), jnp.asarray(val_c), x_k)

    if n_pad != N or d_pad != d:
        out_p = out_p[:N, :d]
    return out_p


class SpMM:
    """JAX/Pallas port of cogdl SpMM (implements the generic spmm_scatter path)."""

    def __init__(self, actnn=False):
        # TODO(synk): cogdl's CUDA fast_spmm (csrspmm) / actnn activation-compression
        # branch has no Pallas equivalent; the scatter formulation matches its math.
        self.actnn = actnn

    def __call__(self, graph, x):
        row, col = graph["edge_index"]
        return spmm(row, col, graph["edge_weight"], x)


if __name__ == "__main__":
    key = jax.random.PRNGKey(0)
    # Small graph: 300 nodes (not a multiple of node_block -> exercises padding and
    # two destination/source node blocks), 256 features (2 parallel feature tiles),
    # 1200 edges (4 (dst,src) buckets -> 4 edge chunks).
    N, D, E = 300, 256, 1200
    k1, k2, k3, k4 = jax.random.split(key, 4)
    row = jax.random.randint(k1, (E,), 0, N, dtype=jnp.int32)
    col = jax.random.randint(k2, (E,), 0, N, dtype=jnp.int32)
    # Dyadic-rational test values are exactly representable in bf16 and exact under
    # f32 MXU accumulation, so the comparison with the f32 reference stays tight.
    edge_weight = jax.random.randint(k3, (E,), -3, 4).astype(jnp.float32) * 0.25
    x = jax.random.randint(k4, (N, D), -3, 4).astype(jnp.float32) * 0.5

    graph = {"edge_index": (row, col), "edge_weight": edge_weight}
    out = jax.block_until_ready(SpMM()(graph, x))

    # Pure-JAX reference (same semantics as torch index_select + scatter_add_).
    ref = jnp.zeros_like(x).at[row].add(x[col] * edge_weight[:, None])
    assert out.shape == x.shape and out.dtype == x.dtype
    assert jnp.allclose(out, ref, atol=1e-4, rtol=1e-4), "mismatch vs reference"

    print("KERNEL_OK")
</pallas_src>

<mosaic_0001>
module attributes {stable_mosaic.version = 11 : i64} {
  func.func @kernel(%arg0: i32, %arg1: i32, %arg2: memref<4x5xi32, #tpu.memory_space<smem>>, %arg3: memref<1x1x512xi32, #tpu.memory_space<vmem>>, %arg4: memref<1x512x1xi32, #tpu.memory_space<vmem>>, %arg5: memref<1x512x1xf32, #tpu.memory_space<vmem>>, %arg6: memref<256x128xbf16, #tpu.memory_space<vmem>>, %arg7: memref<256x128xf32, #tpu.memory_space<vmem>>) attributes {dimension_semantics = [#tpu.dimension_semantics<parallel>, #tpu.dimension_semantics<arbitrary>], iteration_bounds = array<i64: 2, 5>, scalar_prefetch = 1 : i64, scratch_operands = 0 : i64, tpu.core_type = #tpu.core_type<tc>, window_params = [{transform_indices = @transform_0, window_bounds = array<i64: 1, 1, 512>}, {transform_indices = @transform_1, window_bounds = array<i64: 1, 512, 1>}, {transform_indices = @transform_2, window_bounds = array<i64: 1, 512, 1>}, {transform_indices = @transform_3, window_bounds = array<i64: 256, 128>}, {transform_indices = @transform_4, window_bounds = array<i64: 256, 128>}]} {
    %c2 = arith.constant 2 : index
    %0 = arith.index_cast %arg1 : i32 to index
    %1 = memref.load %arg2[%c2, %0] : memref<4x5xi32, #tpu.memory_space<smem>>
    %c0 = arith.constant 0 : index
    %c0_0 = arith.constant 0 : index
    %c0_1 = arith.constant 0 : index
    %2 = vector.load %arg3[%c0, %c0_0, %c0_1] : memref<1x1x512xi32, #tpu.memory_space<vmem>>, vector<1x1x512xi32>
    %3 = vector.shape_cast %2 : vector<1x1x512xi32> to vector<1x512xi32>
    %c0_2 = arith.constant 0 : index
    %c0_3 = arith.constant 0 : index
    %c0_4 = arith.constant 0 : index
    %4 = vector.load %arg4[%c0_2, %c0_3, %c0_4] : memref<1x512x1xi32, #tpu.memory_space<vmem>>, vector<1x512x1xi32>
    %5 = vector.shape_cast %4 : vector<1x512x1xi32> to vector<512x1xi32>
    %c0_5 = arith.constant 0 : index
    %c0_6 = arith.constant 0 : index
    %c0_7 = arith.constant 0 : index
    %6 = vector.load %arg5[%c0_5, %c0_6, %c0_7] : memref<1x512x1xf32, #tpu.memory_space<vmem>>, vector<1x512x1xf32>
    %7 = vector.shape_cast %6 : vector<1x512x1xf32> to vector<512x1xf32>
    %8 = tpu.iota {dimensions = array<i32: 0>} : vector<256x1xi32>
    %9 = tpu.iota {dimensions = array<i32: 1>} : vector<1x256xi32>
    %10 = vector.broadcast %5 : vector<512x1xi32> to vector<512x256xi32>
    %11 = vector.broadcast %9 : vector<1x256xi32> to vector<512x256xi32>
    %12 = arith.cmpi eq, %10, %11 : vector<512x256xi32>
    %13 = arith.extui %12 : vector<512x256xi1> to vector<512x256xi32>
    %14 = arith.sitofp %13 : vector<512x256xi32> to vector<512x256xf32>
    %15 = arith.truncf %14 : vector<512x256xf32> to vector<512x256xbf16>
    %c0_8 = arith.constant 0 : index
    %c0_9 = arith.constant 0 : index
    %16 = vector.load %arg6[%c0_8, %c0_9] : memref<256x128xbf16, #tpu.memory_space<vmem>>, vector<256x128xbf16>
    %cst = arith.constant dense<0.000000e+00> : vector<512x128xf32>
    %17 = tpu.matmul %15, %16, %cst {dimension_numbers = #tpu.dot_dimension_numbers<[1], [0], [0], [1], [0, 0, 1, 1], [], []>} : vector<512x256xbf16>, vector<256x128xbf16>, vector<512x128xf32> -> vector<512x128xf32>
    %18 = vector.broadcast %7 : vector<512x1xf32> to vector<512x128xf32>
    %19 = arith.mulf %17, %18 : vector<512x128xf32>
    %20 = arith.truncf %19 : vector<512x128xf32> to vector<512x128xbf16>
    %21 = vector.broadcast %8 : vector<256x1xi32> to vector<256x512xi32>
    %22 = vector.broadcast %3 : vector<1x512xi32> to vector<256x512xi32>
    %23 = arith.cmpi eq, %21, %22 : vector<256x512xi32>
    %24 = arith.extui %23 : vector<256x512xi1> to vector<256x512xi32>
    %25 = arith.sitofp %24 : vector<256x512xi32> to vector<256x512xf32>
    %26 = arith.truncf %25 : vector<256x512xf32> to vector<256x512xbf16>
    %cst_10 = arith.constant dense<0.000000e+00> : vector<256x128xf32>
    %27 = tpu.matmul %26, %20, %cst_10 {dimension_numbers = #tpu.dot_dimension_numbers<[1], [0], [0], [1], [0, 0, 1, 1], [], []>} : vector<256x512xbf16>, vector<512x128xbf16>, vector<256x128xf32> -> vector<256x128xf32>
    %c1_i32 = arith.constant 1 : i32
    %28 = arith.cmpi eq, %1, %c1_i32 : i32
    %29 = arith.extui %28 : i1 to i32
    %c0_i32 = arith.constant 0 : i32
    %30 = arith.cmpi ne, %29, %c0_i32 : i32
    scf.if %30 {
      %c0_13 = arith.constant 0 : index
      %c0_14 = arith.constant 0 : index
      %34 = vector.load %arg7[%c0_13, %c0_14] : memref<256x128xf32, #tpu.memory_space<vmem>>, vector<256x128xf32>
      tpu.vector_store %arg7[%c0_13, %c0_14], %27 {strides = array<i32>} : memref<256x128xf32, #tpu.memory_space<vmem>>, vector<256x128xf32>,
    } else {
    }
    %c0_i32_11 = arith.constant 0 : i32
    %31 = arith.cmpi eq, %1, %c0_i32_11 : i32
    %32 = arith.extui %31 : i1 to i32
    %c0_i32_12 = arith.constant 0 : i32
    %33 = arith.cmpi ne, %32, %c0_i32_12 : i32
    scf.if %33 {
      %c0_13 = arith.constant 0 : index
      %c0_14 = arith.constant 0 : index
      %34 = vector.load %arg7[%c0_13, %c0_14] : memref<256x128xf32, #tpu.memory_space<vmem>>, vector<256x128xf32>
      %35 = arith.addf %34, %27 : vector<256x128xf32>
      %c0_15 = arith.constant 0 : index
      %c0_16 = arith.constant 0 : index
      %36 = vector.load %arg7[%c0_15, %c0_16] : memref<256x128xf32, #tpu.memory_space<vmem>>, vector<256x128xf32>
      tpu.vector_store %arg7[%c0_15, %c0_16], %35 {strides = array<i32>} : memref<256x128xf32, #tpu.memory_space<vmem>>, vector<256x128xf32>,
    } else {
    }
    return
  }
  func.func @transform_0(%arg0: i32, %arg1: i32, %arg2: memref<4x5xi32, #tpu.memory_space<smem>>) -> (i32, i32, i32) {
    %c0_i32 = arith.constant 0 : i32
    %c0_i32_0 = arith.constant 0 : i32
    %c0_i32_1 = arith.constant 0 : i32
    return %arg1, %c0_i32, %c0_i32_0 : i32, i32, i32
  }
  func.func @transform_1(%arg0: i32, %arg1: i32, %arg2: memref<4x5xi32, #tpu.memory_space<smem>>) -> (i32, i32, i32) {
    %c0_i32 = arith.constant 0 : i32
    %c0_i32_0 = arith.constant 0 : i32
    %c0_i32_1 = arith.constant 0 : i32
    return %arg1, %c0_i32, %c0_i32_0 : i32, i32, i32
  }
  func.func @transform_2(%arg0: i32, %arg1: i32, %arg2: memref<4x5xi32, #tpu.memory_space<smem>>) -> (i32, i32, i32) {
    %c0_i32 = arith.constant 0 : i32
    %c0_i32_0 = arith.constant 0 : i32
    %c0_i32_1 = arith.constant 0 : i32
    return %arg1, %c0_i32, %c0_i32_0 : i32, i32, i32
  }
  func.func @transform_3(%arg0: i32, %arg1: i32, %arg2: memref<4x5xi32, #tpu.memory_space<smem>>) -> (i32, i32) {
    %c1 = arith.constant 1 : index
    %0 = arith.index_cast %arg1 : i32 to index
    %1 = memref.load %arg2[%c1, %0] : memref<4x5xi32, #tpu.memory_space<smem>>
    %c0_i32 = arith.constant 0 : i32
    return %1, %arg0 : i32, i32
  }
  func.func @transform_4(%arg0: i32, %arg1: i32, %arg2: memref<4x5xi32, #tpu.memory_space<smem>>) -> (i32, i32) {
    %c0 = arith.constant 0 : index
    %0 = arith.index_cast %arg1 : i32 to index
    %1 = memref.load %arg2[%c0, %0] : memref<4x5xi32, #tpu.memory_space<smem>>
    %c0_i32 = arith.constant 0 : i32
    return %1, %arg0 : i32, i32
  }
}

</mosaic_0001>

<llo_original>
// kernel: tpu_custom_call.1
$region0: #{tpu_custom_call.1}
  #allocation0 [shape = 'u32[]', space=smem, size = 0x4, offset = 0x4, fixed_abs, tag = 'smem constant byte address 0x4 - core index']
  #allocation1 [shape = 'u32[144,128]{1,0:T(1,128)}', space=vmem, size = 0x12000, scoped, tag = 'internal scratch']
  #allocation2 [shape = 's32[1]{0}', space=sflag, size = 0x4, scoped, tag = 'scoped memory for tpu_custom_call.1']
  #allocation3 [shape = 'u8[2048]{0}', space=smem, size = 0x800, scoped, tag = 'prefetched SMEM operand 0']
  %s0 = inlined_call_operand.vmem [shape: s32[4,5], index: 0, kind: input, shape index: {}]
  %s1 = inlined_call_operand.vmem [shape: s32[5,1,512], index: 1, kind: input, shape index: {}]
  %s2 = inlined_call_operand.vmem [shape: s32[5,512,1], index: 2, kind: input, shape index: {}]
  %s3 = inlined_call_operand.vmem [shape: f32[5,512,1], index: 3, kind: input, shape index: {}]
  %s4 = inlined_call_operand.vmem [shape: bf16[512,256], index: 4, kind: input, shape index: {}]
  %s5 = inlined_call_operand.hbm [shape: f32[512,256], index: 5, kind: output, shape index: {}]
  %s6 = sld [smem:[#allocation0]]
  $region98: #{tpu_custom_call.1} parent=0
    _
  %s8 = ssub.s32 1, %s6
  %s9 = scalar_select 0, %s8, %s6
  %s10 = sshll.u32 %s0, 4
  %s11 = int_to_ptr.vmem [resolvable:$true] %s10
  %13 = dma.vmem_to_smem %s11, 64, [#allocation3], [#allocation2]
  %14 = dma.done [#allocation2], 64
  %15 = sfence
  $region1: #{tpu_custom_call.1} parent=0
    #allocation4 [shape = 'u8[131072]{0}', space=vmem, size = 0x20000, scoped, tag = 'input window, operand 4']
    #allocation5 [shape = 'u8[262144]{0}', space=vmem, size = 0x40000, scoped, tag = 'output window, operand 0']
    #allocation6 [shape = 's32[2]{0}', space=sflag, size = 0x8, scoped, tag = 'scoped memory for tpu_custom_call.1']
    %16 = vsyncpa [#allocation6], 0
    %s17 = scalar_lea.sflag [#allocation6], 1
    %18 = vsyncpa %s17, 0
    loop: start=0, step=1, limit=12
    $region2: #{tpu_custom_call.1} parent=1 // loop_pre_header
      _
    $region3: #{tpu_custom_call.1} parent=1 // loop_header
      %s20 = sphi 0, %s24
      %p21 = scmp.ge.s32.totalorder %s20, 12
      %s27 = sphi 0, %s39
      %s28 = sphi 0, %s35
      %s29 = sphi 0, %s27
      %s30 = sphi 0, %s28
      %s31 = sphi 0, %s29
      %s32 = sphi 0, %s30
      %s42 = sphi 0, %s44
      %s45 = sphi 0, %s42
      %s46 = sphi 0, %s45
      %s62 = sphi 0, %s46
      %s68 = sphi 0, %s70
      %s71 = sphi 0, %s68
      %s72 = sphi 0, %s71
      %s88 = sphi 0, %s72
      %s94 = sphi 0, %s96
      %s97 = sphi 0, %s94
      %s98 = sphi 0, %s97
      %s114 = sphi 0, %s98
      %s138 = sphi 0, %s140
      %s141 = sphi 0, %s138
      %s142 = sphi 0, %s141
      %s158 = sphi 0, %s142
      %s168 = sphi 0, %s170
      %s171 = sphi 0, %s168
      %s172 = sphi 0, %s171
      %s188 = sphi 0, %s172
    $region4: #{tpu_custom_call.1} parent=1 // loop_header_branch
      %23 = sbr.rel (%p21) target = $region8
    $region5: #{tpu_custom_call.1} parent=1 // loop_body
      %s25 = ssub.s32 %s20, 1
      %s26 = ssub.s32 %s20, 2
      %s33 = sadd.s32 1, %s28
      %p34 = scmp.ge.s32.totalorder %s33, 5
      %s35 = scalar_select %p34, 0, %s33
      %s36 = sadd.s32 1, %s27
      %s37 = scalar_select %p34, %s36, %s27
      %p38 = scmp.ge.s32.totalorder %s37, 2
      %s39 = scalar_select %p38, 0, %s37
      %s40 = ssub.s32 %s28, %s35
      %p41 = scmp.eq.s32.totalorder %s40, 0
      %s43 = sadd.s32 %s42, 1
      %s44 = scalar_select %p41, %s42, %s43
      %p47 = pneg %p41
      %p48 = scmp.eq.s32.totalorder %s20, 9
      %p49 = por %p47, %p48
      %p50 = scmp.ne.s32.totalorder %s42, %s45
      %p51 = scmp.eq.s32.totalorder %s20, 0
      %p52 = por %p50, %p51
      %p53 = scmp.ne.s32.totalorder %s42, %s45
      %p54 = scmp.eq.s32.totalorder %s25, 9
      %p55 = por %p53, %p54
      %p56 = scmp.ne.s32.totalorder %s45, %s46
      %p57 = scmp.eq.s32.totalorder %s25, 0
      %p58 = por %p56, %p57
      %p59 = scmp.ne.s32.totalorder %s45, %s46
      %p60 = scmp.eq.s32.totalorder %s26, 9
      %p61 = por %p59, %p60
      %p63 = scmp.ne.s32.totalorder %s46, %s62
      %p64 = scmp.eq.s32.totalorder %s26, 0
      %p65 = por %p63, %p64
      %s66 = ssub.s32 %s28, %s35
      %p67 = scmp.eq.s32.totalorder %s66, 0
      %s69 = sadd.s32 %s68, 1
      %s70 = scalar_select %p67, %s68, %s69
      %p73 = pneg %p67
      %p74 = scmp.eq.s32.totalorder %s20, 9
      %p75 = por %p73, %p74
      %p76 = scmp.ne.s32.totalorder %s68, %s71
      %p77 = scmp.eq.s32.totalorder %s20, 0
      %p78 = por %p76, %p77
      %p79 = scmp.ne.s32.totalorder %s68, %s71
      %p80 = scmp.eq.s32.totalorder %s25, 9
      %p81 = por %p79, %p80
      %p82 = scmp.ne.s32.totalorder %s71, %s72
      %p83 = scmp.eq.s32.totalorder %s25, 0
      %p84 = por %p82, %p83
      %p85 = scmp.ne.s32.totalorder %s71, %s72
      %p86 = scmp.eq.s32.totalorder %s26, 9
      %p87 = por %p85, %p86
      %p89 = scmp.ne.s32.totalorder %s72, %s88
      %p90 = scmp.eq.s32.totalorder %s26, 0
      %p91 = por %p89, %p90
      %s92 = ssub.s32 %s28, %s35
      %p93 = scmp.eq.s32.totalorder %s92, 0
      %s95 = sadd.s32 %s94, 1
      %s96 = scalar_select %p93, %s94, %s95
      %p99 = pneg %p93
      %p100 = scmp.eq.s32.totalorder %s20, 9
      %p101 = por %p99, %p100
      %p102 = scmp.ne.s32.totalorder %s94, %s97
      %p103 = scmp.eq.s32.totalorder %s20, 0
      %p104 = por %p102, %p103
      %p105 = scmp.ne.s32.totalorder %s94, %s97
      %p106 = scmp.eq.s32.totalorder %s25, 9
      %p107 = por %p105, %p106
      %p108 = scmp.ne.s32.totalorder %s97, %s98
      %p109 = scmp.eq.s32.totalorder %s25, 0
      %p110 = por %p108, %p109
      %p111 = scmp.ne.s32.totalorder %s97, %s98
      %p112 = scmp.eq.s32.totalorder %s26, 9
      %p113 = por %p111, %p112
      %p115 = scmp.ne.s32.totalorder %s98, %s114
      %p116 = scmp.eq.s32.totalorder %s26, 0
      %p117 = por %p115, %p116
      %s118 = sshra.s32 %s28, 7
      %s119 = sand.u32 %s28, 127
      %s120 = sadd.s32 %s118, 1
      %s121 = smul.u32 %s120, 128
      %s122 = sshra.s32 %s28, 7
      %s123 = sand.u32 %s28, 127
      %s124 = sadd.s32 %s121, %s123
      %s125 = sld [smem:[#allocation3 + %s124]]
      %s126 = sshra.s32 %s35, 7
      %s127 = sand.u32 %s35, 127
      %s128 = sadd.s32 %s126, 1
      %s129 = smul.u32 %s128, 128
      %s130 = sshra.s32 %s35, 7
      %s131 = sand.u32 %s35, 127
      %s132 = sadd.s32 %s129, %s131
      %s133 = sld [smem:[#allocation3 + %s132]]
      %s134 = ssub.s32 %s125, %s133
      %s135 = ssub.s32 %s27, %s39
      %s136 = sor.u32 %s134, %s135
      %p137 = scmp.eq.s32.totalorder %s136, 0
      %s139 = sadd.s32 %s138, 1
      %s140 = scalar_select %p137, %s138, %s139
      %p143 = pneg %p137
      %p144 = scmp.eq.s32.totalorder %s20, 9
      %p145 = por %p143, %p144
      %p146 = scmp.ne.s32.totalorder %s138, %s141
      %p147 = scmp.eq.s32.totalorder %s20, 0
      %p148 = por %p146, %p147
      %p149 = scmp.ne.s32.totalorder %s138, %s141
      %p150 = scmp.eq.s32.totalorder %s25, 9
      %p151 = por %p149, %p150
      %p152 = scmp.ne.s32.totalorder %s141, %s142
      %p153 = scmp.eq.s32.totalorder %s25, 0
      %p154 = por %p152, %p153
      %p155 = scmp.ne.s32.totalorder %s141, %s142
      %p156 = scmp.eq.s32.totalorder %s26, 9
      %p157 = por %p155, %p156
      %p159 = scmp.ne.s32.totalorder %s142, %s158
      %p160 = scmp.eq.s32.totalorder %s26, 0
      %p161 = por %p159, %p160
      %s162 = sld [smem:[#allocation3 + %s28]]
      %s163 = sld [smem:[#allocation3 + %s35]]
      %s164 = ssub.s32 %s162, %s163
      %s165 = ssub.s32 %s27, %s39
      %s166 = sor.u32 %s164, %s165
      %p167 = scmp.eq.s32.totalorder %s166, 0
      %s169 = sadd.s32 %s168, 1
      %s170 = scalar_select %p167, %s168, %s169
      %p173 = pneg %p167
      %p174 = scmp.eq.s32.totalorder %s20, 9
      %p175 = por %p173, %p174
      %p176 = scmp.ne.s32.totalorder %s168, %s171
      %p177 = scmp.eq.s32.totalorder %s20, 0
      %p178 = por %p176, %p177
      %p179 = scmp.ne.s32.totalorder %s168, %s171
      %p180 = scmp.eq.s32.totalorder %s25, 9
      %p181 = por %p179, %p180
      %p182 = scmp.ne.s32.totalorder %s171, %s172
      %p183 = scmp.eq.s32.totalorder %s25, 0
      %p184 = por %p182, %p183
      %p185 = scmp.ne.s32.totalorder %s171, %s172
      %p186 = scmp.eq.s32.totalorder %s26, 9
      %p187 = por %p185, %p186
      %p189 = scmp.ne.s32.totalorder %s172, %s188
      %p190 = scmp.eq.s32.totalorder %s26, 0
      %p191 = por %p189, %p190
      %p192 = scmp.le.s32.totalorder 1, %s20
      %p193 = scmp.lt.s32.totalorder %s20, 11
      %p194 = pnand %p192, %p193
      %p195 = pneg %p194
      // Predicated region
      $region9: #{tpu_custom_call.1} parent=5 // pred_check
        _
      $region10: #{tpu_custom_call.1} parent=5 // pred_check_branch
        %197 = sbr.rel (%p194) target = $region12
      $region11: #{tpu_custom_call.1} parent=5 // pred_region
        %s198 = ssub.s32 %s20, 1
      $region12: #{tpu_custom_call.1} parent=5 // pred_fallthru
        _
      %p199 = scmp.lt.s32.totalorder %s20, 10
      // Predicated region
      $region13: #{tpu_custom_call.1} parent=5 // pred_check
        %p200 = pneg %p199
      $region14: #{tpu_custom_call.1} parent=5 // pred_check_branch
        %202 = sbr.rel (%p200) target = $region16
      $region15: #{tpu_custom_call.1} parent=5 // pred_region
        // Predicated region
        $region17: #{tpu_custom_call.1} parent=15 // pred_check
          %p203 = pneg %p52
        $region18: #{tpu_custom_call.1} parent=15 // pred_check_branch
          %205 = sbr.rel (%p203) target = $region20
        $region19: #{tpu_custom_call.1} parent=15 // pred_region
          %p206 = scmp.lt.s32.totalorder %s28, 4
          %s207 = scalar_select %p206, %s28, 4
          %s208 = smul.addr %s207, 4
          %s209 = scalar_lea.vmem %s1, %s208
        $region20: #{tpu_custom_call.1} parent=15 // pred_fallthru
          _
        // Predicated region
        $region21: #{tpu_custom_call.1} parent=15 // pred_check
          %p210 = pneg %p78
        $region22: #{tpu_custom_call.1} parent=15 // pred_check_branch
          %212 = sbr.rel (%p210) target = $region24
        $region23: #{tpu_custom_call.1} parent=15 // pred_region
          %p213 = scmp.lt.s32.totalorder %s28, 4
          %s214 = scalar_select %p213, %s28, 4
          %s215 = smul.addr %s214, 64
          %s216 = smul.addr %s215, 8
          %s217 = scalar_lea.vmem %s2, %s216
        $region24: #{tpu_custom_call.1} parent=15 // pred_fallthru
          _
        // Predicated region
        $region25: #{tpu_custom_call.1} parent=15 // pred_check
          %p218 = pneg %p104
        $region26: #{tpu_custom_call.1} parent=15 // pred_check_branch
          %220 = sbr.rel (%p218) target = $region28
        $region27: #{tpu_custom_call.1} parent=15 // pred_region
          %p221 = scmp.lt.s32.totalorder %s28, 4
          %s222 = scalar_select %p221, %s28, 4
          %s223 = smul.addr %s222, 64
          %s224 = smul.addr %s223, 8
          %s225 = scalar_lea.vmem %s3, %s224
        $region28: #{tpu_custom_call.1} parent=15 // pred_fallthru
          _
        // Predicated region
        $region29: #{tpu_custom_call.1} parent=15 // pred_check
          %p226 = pneg %p148
        $region30: #{tpu_custom_call.1} parent=15 // pred_check_branch
          %228 = sbr.rel (%p226) target = $region32
        $region31: #{tpu_custom_call.1} parent=15 // pred_region
          %s229 = sand.u32 %s138, 1
          %s230 = sand.u32 %s138, 1
          %s231 = smul.addr %s230, 128
          %s232 = scalar_lea.vmem [#allocation4], %s231
          %s233 = sshra.s32 %s28, 7
          %s234 = sand.u32 %s28, 127
          %s235 = sadd.s32 %s233, 1
          %s236 = smul.u32 %s235, 128
          %s237 = sshra.s32 %s28, 7
          %s238 = sand.u32 %s28, 127
          %s239 = sadd.s32 %s236, %s238
          %s240 = sld [smem:[#allocation3 + %s239]]
          %s241 = smul.u32 32, %s240
          %s242 = smul.addr %s241, 2
          %s243 = sadd.s32 %s27, %s242
          %s244 = smul.addr %s243, 4
          %s245 = scalar_lea.vmem %s4, %s244
          // Predicated region
          $region33: #{tpu_custom_call.1} parent=31 // pred_check
            _
          $region34: #{tpu_custom_call.1} parent=31 // pred_check_branch
            %247 = sbr.rel (0) target = $region36
          $region35: #{tpu_custom_call.1} parent=31 // pred_region
            // Predicated region
            $region37: #{tpu_custom_call.1} parent=35 // pred_check
              _
            $region38: #{tpu_custom_call.1} parent=35 // pred_check_branch
              %249 = sbr.rel target = $region40
            $region39: #{tpu_custom_call.1} parent=35 // pred_region
              // Predicated region
              $region52: #{tpu_custom_call.1} parent=39 // pred_check
                _
              $region53: #{tpu_custom_call.1} parent=39 // pred_check_branch
                %327 = sbr.rel (0) target = $region55
              $region54: #{tpu_custom_call.1} parent=39 // pred_region
                loop: start=0, step=1, limit=1
                $region56: #{tpu_custom_call.1} parent=54 // loop_pre_header
                  _
                $region57: #{tpu_custom_call.1} parent=54 // loop_header
                  %s329 = sphi 0, %s333
                  %p330 = scmp.ge.s32.totalorder %s329, 1
                  %s334 = sphi %s245, %s245
                  %s335 = sphi %s232, %s232
                $region58: #{tpu_custom_call.1} parent=54 // loop_header_branch
                  %332 = sbr.rel (%p330) target = $region62
                $region59: #{tpu_custom_call.1} parent=54 // loop_body
                  _
                $region60: #{tpu_custom_call.1} parent=54 // loop_footer
                  %s333 = sadd.s32 1, %s329
                $region61: #{tpu_custom_call.1} parent=54 // loop_footer_branch
                  %328 = sbr.rel target = $region57
                $region62: #{tpu_custom_call.1} parent=54 // loop_exit
                  _
                %s337 = ssub.s32 16, 1
                loop: start=0, step=1, limit=1
                $region63: #{tpu_custom_call.1} parent=54 // loop_pre_header
                  _
                $region64: #{tpu_custom_call.1} parent=54 // loop_header
                  %s339 = sphi 0, %s343
                  %p340 = scmp.ge.s32.totalorder %s339, 1
                  %s344 = sphi %s245, %s245
                  %s345 = sphi %s232, %s232
                $region65: #{tpu_custom_call.1} parent=54 // loop_header_branch
                  %342 = sbr.rel (%p340) target = $region69
                $region66: #{tpu_custom_call.1} parent=54 // loop_body
                  %v346 = vld [vmem:[%s344] sm:%s337]
                  %347 = vst [vmem:[%s345] sm:%s337] %v346
                  %v348 = vld [vmem:[%s344 + $0x8] sm:%s337]
                  %349 = vst [vmem:[%s345 + $0x4] sm:%s337] %v348
                  %v350 = vld [vmem:[%s344 + $0x10] sm:%s337]
                  %351 = vst [vmem:[%s345 + $0x8] sm:%s337] %v350
                  %v352 = vld [vmem:[%s344 + $0x18] sm:%s337]
                  %353 = vst [vmem:[%s345 + $0xc] sm:%s337] %v352
                  %v354 = vld [vmem:[%s344 + $0x20] sm:%s337]
                  %355 = vst [vmem:[%s345 + $0x10] sm:%s337] %v354
                  %v356 = vld [vmem:[%s344 + $0x28] sm:%s337]
                  %357 = vst [vmem:[%s345 + $0x14] sm:%s337] %v356
                  %v358 = vld [vmem:[%s344 + $0x30] sm:%s337]
                  %359 = vst [vmem:[%s345 + $0x18] sm:%s337] %v358
                  %v360 = vld [vmem:[%s344 + $0x38] sm:%s337]
                  %361 = vst [vmem:[%s345 + $0x1c] sm:%s337] %v360
                  %v362 = vld [vmem:[%s344 + $0x40] sm:%s337]
                  %363 = vst [vmem:[%s345 + $0x20] sm:%s337] %v362
                  %v364 = vld [vmem:[%s344 + $0x48] sm:%s337]
                  %365 = vst [vmem:[%s345 + $0x24] sm:%s337] %v364
                  %v366 = vld [vmem:[%s344 + $0x50] sm:%s337]
                  %367 = vst [vmem:[%s345 + $0x28] sm:%s337] %v366
                  %v368 = vld [vmem:[%s344 + $0x58] sm:%s337]
                  %369 = vst [vmem:[%s345 + $0x2c] sm:%s337] %v368
                  %v370 = vld [vmem:[%s344 + $0x60] sm:%s337]
                  %371 = vst [vmem:[%s345 + $0x30] sm:%s337] %v370
                  %v372 = vld [vmem:[%s344 + $0x68] sm:%s337]
                  %373 = vst [vmem:[%s345 + $0x34] sm:%s337] %v372
                  %v374 = vld [vmem:[%s344 + $0x70] sm:%s337]
                  %375 = vst [vmem:[%s345 + $0x38] sm:%s337] %v374
                  %v376 = vld [vmem:[%s344 + $0x78] sm:%s337]
                  %377 = vst [vmem:[%s345 + $0x3c] sm:%s337] %v376
                  %v378 = vld [vmem:[%s344 + $0x80] sm:%s337]
                  %379 = vst [vmem:[%s345 + $0x40] sm:%s337] %v378
                  %v380 = vld [vmem:[%s344 + $0x88] sm:%s337]
                  %381 = vst [vmem:[%s345 + $0x44] sm:%s337] %v380
                  %v382 = vld [vmem:[%s344 + $0x90] sm:%s337]
                  %383 = vst [vmem:[%s345 + $0x48] sm:%s337] %v382
                  %v384 = vld [vmem:[%s344 + $0x98] sm:%s337]
                  %385 = vst [vmem:[%s345 + $0x4c] sm:%s337] %v384
                  %v386 = vld [vmem:[%s344 + $0xa0] sm:%s337]
                  %387 = vst [vmem:[%s345 + $0x50] sm:%s337] %v386
                  %v388 = vld [vmem:[%s344 + $0xa8] sm:%s337]
                  %389 = vst [vmem:[%s345 + $0x54] sm:%s337] %v388
                  %v390 = vld [vmem:[%s344 + $0xb0] sm:%s337]
                  %391 = vst [vmem:[%s345 + $0x58] sm:%s337] %v390
                  %v392 = vld [vmem:[%s344 + $0xb8] sm:%s337]
                  %393 = vst [vmem:[%s345 + $0x5c] sm:%s337] %v392
                  %v394 = vld [vmem:[%s344 + $0xc0] sm:%s337]
                  %395 = vst [vmem:[%s345 + $0x60] sm:%s337] %v394
                  %v396 = vld [vmem:[%s344 + $0xc8] sm:%s337]
                  %397 = vst [vmem:[%s345 + $0x64] sm:%s337] %v396
                  %v398 = vld [vmem:[%s344 + $0xd0] sm:%s337]
                  %399 = vst [vmem:[%s345 + $0x68] sm:%s337] %v398
                  %v400 = vld [vmem:[%s344 + $0xd8] sm:%s337]
                  %401 = vst [vmem:[%s345 + $0x6c] sm:%s337] %v400
                  %v402 = vld [vmem:[%s344 + $0xe0] sm:%s337]
                  %403 = vst [vmem:[%s345 + $0x70] sm:%s337] %v402
                  %v404 = vld [vmem:[%s344 + $0xe8] sm:%s337]
                  %405 = vst [vmem:[%s345 + $0x74] sm:%s337] %v404
                  %v406 = vld [vmem:[%s344 + $0xf0] sm:%s337]
                  %407 = vst [vmem:[%s345 + $0x78] sm:%s337] %v406
                  %v408 = vld [vmem:[%s344 + $0xf8] sm:%s337]
                  %409 = vst [vmem:[%s345 + $0x7c] sm:%s337] %v408
                $region67: #{tpu_custom_call.1} parent=54 // loop_footer
                  %s343 = sadd.s32 1, %s339
                $region68: #{tpu_custom_call.1} parent=54 // loop_footer_branch
                  %338 = sbr.rel target = $region64
                $region69: #{tpu_custom_call.1} parent=54 // loop_exit
                  _
              $region55: #{tpu_custom_call.1} parent=39 // pred_fallthru
                _
            $region40: #{tpu_custom_call.1} parent=35 // pred_fallthru
              _
            // Predicated region
            $region41: #{tpu_custom_call.1} parent=35 // pred_check
              _
            $region42: #{tpu_custom_call.1} parent=35 // pred_check_branch
              %251 = sbr.rel (0) target = $region44
            $region43: #{tpu_custom_call.1} parent=35 // pred_region
              %s253 = ssub.s32 16, 1
              loop: start=0, step=1, limit=1
              $region45: #{tpu_custom_call.1} parent=43 // loop_pre_header
                _
              $region46: #{tpu_custom_call.1} parent=43 // loop_header
                %s255 = sphi 0, %s259
                %p256 = scmp.ge.s32.totalorder %s255, 1
                %s260 = sphi %s245, %s245
                %s261 = sphi %s232, %s232
              $region47: #{tpu_custom_call.1} parent=43 // loop_header_branch
                %258 = sbr.rel (%p256) target = $region51
              $region48: #{tpu_custom_call.1} parent=43 // loop_body
                %v262 = vld [vmem:[%s260] sm:%s253]
                %263 = vst [vmem:[%s261] sm:%s253] %v262
                %v264 = vld [vmem:[%s260 + $0x8] sm:%s253]
                %265 = vst [vmem:[%s261 + $0x4] sm:%s253] %v264
                %v266 = vld [vmem:[%s260 + $0x10] sm:%s253]
                %267 = vst [vmem:[%s261 + $0x8] sm:%s253] %v266
                %v268 = vld [vmem:[%s260 + $0x18] sm:%s253]
                %269 = vst [vmem:[%s261 + $0xc] sm:%s253] %v268
                %v270 = vld [vmem:[%s260 + $0x20] sm:%s253]
                %271 = vst [vmem:[%s261 + $0x10] sm:%s253] %v270
                %v272 = vld [vmem:[%s260 + $0x28] sm:%s253]
                %273 = vst [vmem:[%s261 + $0x14] sm:%s253] %v272
                %v274 = vld [vmem:[%s260 + $0x30] sm:%s253]
                %275 = vst [vmem:[%s261 + $0x18] sm:%s253] %v274
                %v276 = vld [vmem:[%s260 + $0x38] sm:%s253]
                %277 = vst [vmem:[%s261 + $0x1c] sm:%s253] %v276
                %v278 = vld [vmem:[%s260 + $0x40] sm:%s253]
                %279 = vst [vmem:[%s261 + $0x20] sm:%s253] %v278
                %v280 = vld [vmem:[%s260 + $0x48] sm:%s253]
                %281 = vst [vmem:[%s261 + $0x24] sm:%s253] %v280
                %v282 = vld [vmem:[%s260 + $0x50] sm:%s253]
                %283 = vst [vmem:[%s261 + $0x28] sm:%s253] %v282
                %v284 = vld [vmem:[%s260 + $0x58] sm:%s253]
                %285 = vst [vmem:[%s261 + $0x2c] sm:%s253] %v284
                %v286 = vld [vmem:[%s260 + $0x60] sm:%s253]
                %287 = vst [vmem:[%s261 + $0x30] sm:%s253] %v286
                %v288 = vld [vmem:[%s260 + $0x68] sm:%s253]
                %289 = vst [vmem:[%s261 + $0x34] sm:%s253] %v288
                %v290 = vld [vmem:[%s260 + $0x70] sm:%s253]
                %291 = vst [vmem:[%s261 + $0x38] sm:%s253] %v290
                %v292 = vld [vmem:[%s260 + $0x78] sm:%s253]
                %293 = vst [vmem:[%s261 + $0x3c] sm:%s253] %v292
                %v294 = vld [vmem:[%s260 + $0x80] sm:%s253]
                %295 = vst [vmem:[%s261 + $0x40] sm:%s253] %v294
                %v296 = vld [vmem:[%s260 + $0x88] sm:%s253]
                %297 = vst [vmem:[%s261 + $0x44] sm:%s253] %v296
                %v298 = vld [vmem:[%s260 + $0x90] sm:%s253]
                %299 = vst [vmem:[%s261 + $0x48] sm:%s253] %v298
                %v300 = vld [vmem:[%s260 + $0x98] sm:%s253]
                %301 = vst [vmem:[%s261 + $0x4c] sm:%s253] %v300
                %v302 = vld [vmem:[%s260 + $0xa0] sm:%s253]
                %303 = vst [vmem:[%s261 + $0x50] sm:%s253] %v302
                %v304 = vld [vmem:[%s260 + $0xa8] sm:%s253]
                %305 = vst [vmem:[%s261 + $0x54] sm:%s253] %v304
                %v306 = vld [vmem:[%s260 + $0xb0] sm:%s253]
                %307 = vst [vmem:[%s261 + $0x58] sm:%s253] %v306
                %v308 = vld [vmem:[%s260 + $0xb8] sm:%s253]
                %309 = vst [vmem:[%s261 + $0x5c] sm:%s253] %v308
                %v310 = vld [vmem:[%s260 + $0xc0] sm:%s253]
                %311 = vst [vmem:[%s261 + $0x60] sm:%s253] %v310
                %v312 = vld [vmem:[%s260 + $0xc8] sm:%s253]
                %313 = vst [vmem:[%s261 + $0x64] sm:%s253] %v312
                %v314 = vld [vmem:[%s260 + $0xd0] sm:%s253]
                %315 = vst [vmem:[%s261 + $0x68] sm:%s253] %v314
                %v316 = vld [vmem:[%s260 + $0xd8] sm:%s253]
                %317 = vst [vmem:[%s261 + $0x6c] sm:%s253] %v316
                %v318 = vld [vmem:[%s260 + $0xe0] sm:%s253]
                %319 = vst [vmem:[%s261 + $0x70] sm:%s253] %v318
                %v320 = vld [vmem:[%s260 + $0xe8] sm:%s253]
                %321 = vst [vmem:[%s261 + $0x74] sm:%s253] %v320
                %v322 = vld [vmem:[%s260 + $0xf0] sm:%s253]
                %323 = vst [vmem:[%s261 + $0x78] sm:%s253] %v322
                %v324 = vld [vmem:[%s260 + $0xf8] sm:%s253]
                %325 = vst [vmem:[%s261 + $0x7c] sm:%s253] %v324
              $region49: #{tpu_custom_call.1} parent=43 // loop_footer
                %s259 = sadd.s32 1, %s255
              $region50: #{tpu_custom_call.1} parent=43 // loop_footer_branch
                %254 = sbr.rel target = $region46
              $region51: #{tpu_custom_call.1} parent=43 // loop_exit
                _
            $region44: #{tpu_custom_call.1} parent=35 // pred_fallthru
              _
          $region36: #{tpu_custom_call.1} parent=31 // pred_fallthru
            _
          %410 = vnop
        $region32: #{tpu_custom_call.1} parent=15 // pred_fallthru
          _
      $region16: #{tpu_custom_call.1} parent=5 // pred_fallthru
        _
      %p411 = scmp.le.s32.totalorder 1, %s20
      %p412 = scmp.lt.s32.totalorder %s20, 11
      %p413 = pnand %p411, %p412
      %p414 = pneg %p413
      // Predicated region
      $region70: #{tpu_custom_call.1} parent=5 // pred_check
        _
      $region71: #{tpu_custom_call.1} parent=5 // pred_check_branch
        %416 = sbr.rel (%p413) target = $region73
      $region72: #{tpu_custom_call.1} parent=5 // pred_region
        %s417 = ssub.s32 %s20, 1
        %s418 = sand.u32 %s141, 1
        %s419 = sand.u32 %s141, 1
        %s420 = smul.addr %s419, 128
        %s421 = scalar_lea.vmem [#allocation4], %s420
        // Predicated region
        $region74: #{tpu_custom_call.1} parent=72 // pred_check
          %p422 = pneg %p154
        $region75: #{tpu_custom_call.1} parent=72 // pred_check_branch
          %424 = sbr.rel (%p422) target = $region77
        $region76: #{tpu_custom_call.1} parent=72 // pred_region
          _
        $region77: #{tpu_custom_call.1} parent=72 // pred_fallthru
          _
        %p425 = scmp.lt.s32.totalorder %s30, 4
        %s426 = scalar_select %p425, %s30, 4
        %s427 = smul.addr %s426, 4
        %s428 = scalar_lea.vmem %s1, %s427
        %p429 = pneg %p58
        %p430 = pneg %p55
        %p431 = scmp.lt.s32.totalorder %s30, 4
        %s432 = scalar_select %p431, %s30, 4
        %s433 = smul.addr %s432, 64
        %s434 = smul.addr %s433, 8
        %s435 = scalar_lea.vmem %s2, %s434
        %p436 = pneg %p84
        %p437 = pneg %p81
        %p438 = scmp.lt.s32.totalorder %s30, 4
        %s439 = scalar_select %p438, %s30, 4
        %s440 = smul.addr %s439, 64
        %s441 = smul.addr %s440, 8
        %s442 = scalar_lea.vmem %s3, %s441
        %p443 = pneg %p110
        %p444 = pneg %p107
        %s445 = sand.u32 %s141, 1
        %s446 = sand.u32 %s141, 1
        %s447 = smul.addr %s446, 128
        %s448 = scalar_lea.vmem [#allocation4], %s447
        %p449 = pneg %p154
        %p450 = pneg %p151
        %p451 = pneg %p184
        %p452 = pneg %p181
        %s453 = sand.u32 %s171, 1
        %s454 = scalar_lea.sflag [#allocation6], %s453
        %s455 = sand.u32 %s171, 1
        %s456 = smul.addr %s455, 256
        %s457 = scalar_lea.vmem [#allocation5], %s456
        %p458 = scmp.lt.s32.totalorder %s30, 4
        %s459 = scalar_select %p458, %s30, 4
        %s460 = smul.addr %s459, 4
        %s461 = scalar_lea.vmem %s1, %s460
        %p462 = scmp.lt.s32.totalorder %s30, 4
        %s463 = scalar_select %p462, %s30, 4
        %s464 = smul.addr %s463, 64
        %s465 = smul.addr %s464, 8
        %s466 = scalar_lea.vmem %s2, %s465
        %p467 = scmp.lt.s32.totalorder %s30, 4
        %s468 = scalar_select %p467, %s30, 4
        %s469 = smul.addr %s468, 64
        %s470 = smul.addr %s469, 8
        %s471 = scalar_lea.vmem %s3, %s470
        %s472 = sshra.s32 %s30, 7
        %s473 = sand.u32 %s30, 127
        %s474 = sadd.s32 %s472, 1
        %s475 = smul.u32 %s474, 128
        %s476 = sshra.s32 %s30, 7
        %s477 = sand.u32 %s30, 127
        %s478 = sadd.s32 %s475, %s477
        %s479 = sld [smem:[#allocation3 + %s478]]
        %s480 = smul.u32 32, %s479
        %s481 = sld [smem:[#allocation3 + %s30]]
        %s482 = smul.u32 32, %s481
        %s484 = sshra.s32 %s30, 7
        %s485 = sand.u32 %s30, 127
        %s486 = sadd.s32 %s484, 2
        %s487 = smul.u32 %s486, 128
        %s488 = sshra.s32 %s30, 7
        %s489 = sand.u32 %s30, 127
        %s490 = sadd.s32 %s487, %s489
        %s491 = sld [smem:[#allocation3 + %s490]]
        %v492 = vld [vmem:[%s461] sm:$0xf]
        %v493 = vld [vmem:[%s466] sm:$0xff]
        %v494 = vld [vmem:[%s466 + $0x8] sm:$0xff]
        %v495 = vld [vmem:[%s466 + $0x10] sm:$0xff]
        %v496 = vld [vmem:[%s466 + $0x18] sm:$0xff]
        %v497 = vld [vmem:[%s466 + $0x20] sm:$0xff]
        %v498 = vld [vmem:[%s466 + $0x28] sm:$0xff]
        %v499 = vld [vmem:[%s466 + $0x30] sm:$0xff]
        %v500 = vld [vmem:[%s466 + $0x38] sm:$0xff]
        %v501 = vld [vmem:[%s466 + $0x40] sm:$0xff]
        %v502 = vld [vmem:[%s466 + $0x48] sm:$0xff]
        %v503 = vld [vmem:[%s466 + $0x50] sm:$0xff]
        %v504 = vld [vmem:[%s466 + $0x58] sm:$0xff]
        %v505 = vld [vmem:[%s466 + $0x60] sm:$0xff]
        %v506 = vld [vmem:[%s466 + $0x68] sm:$0xff]
        %v507 = vld [vmem:[%s466 + $0x70] sm:$0xff]
        %v508 = vld [vmem:[%s466 + $0x78] sm:$0xff]
        %v509 = vld [vmem:[%s466 + $0x80] sm:$0xff]
        %v510 = vld [vmem:[%s466 + $0x88] sm:$0xff]
        %v511 = vld [vmem:[%s466 + $0x90] sm:$0xff]
        %v512 = vld [vmem:[%s466 + $0x98] sm:$0xff]
        %v513 = vld [vmem:[%s466 + $0xa0] sm:$0xff]
        %v514 = vld [vmem:[%s466 + $0xa8] sm:$0xff]
        %v515 = vld [vmem:[%s466 + $0xb0] sm:$0xff]
        %v516 = vld [vmem:[%s466 + $0xb8] sm:$0xff]
        %v517 = vld [vmem:[%s466 + $0xc0] sm:$0xff]
        %v518 = vld [vmem:[%s466 + $0xc8] sm:$0xff]
        %v519 = vld [vmem:[%s466 + $0xd0] sm:$0xff]
        %v520 = vld [vmem:[%s466 + $0xd8] sm:$0xff]
        %v521 = vld [vmem:[%s466 + $0xe0] sm:$0xff]
        %v522 = vld [vmem:[%s466 + $0xe8] sm:$0xff]
        %v523 = vld [vmem:[%s466 + $0xf0] sm:$0xff]
        %v524 = vld [vmem:[%s466 + $0xf8] sm:$0xff]
        %v525 = vld [vmem:[%s466 + $0x100] sm:$0xff]
        %v526 = vld [vmem:[%s466 + $0x108] sm:$0xff]
        %v527 = vld [vmem:[%s466 + $0x110] sm:$0xff]
        %v528 = vld [vmem:[%s466 + $0x118] sm:$0xff]
        %v529 = vld [vmem:[%s466 + $0x120] sm:$0xff]
        %v530 = vld [vmem:[%s466 + $0x128] sm:$0xff]
        %v531 = vld [vmem:[%s466 + $0x130] sm:$0xff]
        %v532 = vld [vmem:[%s466 + $0x138] sm:$0xff]
        %v533 = vld [vmem:[%s466 + $0x140] sm:$0xff]
        %v534 = vld [vmem:[%s466 + $0x148] sm:$0xff]
        %v535 = vld [vmem:[%s466 + $0x150] sm:$0xff]
        %v536 = vld [vmem:[%s466 + $0x158] sm:$0xff]
        %v537 = vld [vmem:[%s466 + $0x160] sm:$0xff]
        %v538 = vld [vmem:[%s466 + $0x168] sm:$0xff]
        %v539 = vld [vmem:[%s466 + $0x170] sm:$0xff]
        %v540 = vld [vmem:[%s466 + $0x178] sm:$0xff]
        %v541 = vld [vmem:[%s466 + $0x180] sm:$0xff]
        %v542 = vld [vmem:[%s466 + $0x188] sm:$0xff]
        %v543 = vld [vmem:[%s466 + $0x190] sm:$0xff]
        %v544 = vld [vmem:[%s466 + $0x198] sm:$0xff]
        %v545 = vld [vmem:[%s466 + $0x1a0] sm:$0xff]
        %v546 = vld [vmem:[%s466 + $0x1a8] sm:$0xff]
        %v547 = vld [vmem:[%s466 + $0x1b0] sm:$0xff]
        %v548 = vld [vmem:[%s466 + $0x1b8] sm:$0xff]
        %v549 = vld [vmem:[%s466 + $0x1c0] sm:$0xff]
        %v550 = vld [vmem:[%s466 + $0x1c8] sm:$0xff]
        %v551 = vld [vmem:[%s466 + $0x1d0] sm:$0xff]
        %v552 = vld [vmem:[%s466 + $0x1d8] sm:$0xff]
        %v553 = vld [vmem:[%s466 + $0x1e0] sm:$0xff]
        %v554 = vld [vmem:[%s466 + $0x1e8] sm:$0xff]
        %v555 = vld [vmem:[%s466 + $0x1f0] sm:$0xff]
        %v556 = vld [vmem:[%s466 + $0x1f8] sm:$0xff]
        %v557 = vld [vmem:[%s471] sm:$0xff]
        %v558 = vld [vmem:[%s471 + $0x8] sm:$0xff]
        %v559 = vld [vmem:[%s471 + $0x10] sm:$0xff]
        %v560 = vld [vmem:[%s471 + $0x18] sm:$0xff]
        %v561 = vld [vmem:[%s471 + $0x20] sm:$0xff]
        %v562 = vld [vmem:[%s471 + $0x28] sm:$0xff]
        %v563 = vld [vmem:[%s471 + $0x30] sm:$0xff]
        %v564 = vld [vmem:[%s471 + $0x38] sm:$0xff]
        %v565 = vld [vmem:[%s471 + $0x40] sm:$0xff]
        %v566 = vld [vmem:[%s471 + $0x48] sm:$0xff]
        %v567 = vld [vmem:[%s471 + $0x50] sm:$0xff]
        %v568 = vld [vmem:[%s471 + $0x58] sm:$0xff]
        %v569 = vld [vmem:[%s471 + $0x60] sm:$0xff]
        %v570 = vld [vmem:[%s471 + $0x68] sm:$0xff]
        %v571 = vld [vmem:[%s471 + $0x70] sm:$0xff]
        %v572 = vld [vmem:[%s471 + $0x78] sm:$0xff]
        %v573 = vld [vmem:[%s471 + $0x80] sm:$0xff]
        %v574 = vld [vmem:[%s471 + $0x88] sm:$0xff]
        %v575 = vld [vmem:[%s471 + $0x90] sm:$0xff]
        %v576 = vld [vmem:[%s471 + $0x98] sm:$0xff]
        %v577 = vld [vmem:[%s471 + $0xa0] sm:$0xff]
        %v578 = vld [vmem:[%s471 + $0xa8] sm:$0xff]
        %v579 = vld [vmem:[%s471 + $0xb0] sm:$0xff]
        %v580 = vld [vmem:[%s471 + $0xb8] sm:$0xff]
        %v581 = vld [vmem:[%s471 + $0xc0] sm:$0xff]
        %v582 = vld [vmem:[%s471 + $0xc8] sm:$0xff]
        %v583 = vld [vmem:[%s471 + $0xd0] sm:$0xff]
        %v584 = vld [vmem:[%s471 + $0xd8] sm:$0xff]
        %v585 = vld [vmem:[%s471 + $0xe0] sm:$0xff]
        %v586 = vld [vmem:[%s471 + $0xe8] sm:$0xff]
        %v587 = vld [vmem:[%s471 + $0xf0] sm:$0xff]
        %v588 = vld [vmem:[%s471 + $0xf8] sm:$0xff]
        %v589 = vld [vmem:[%s471 + $0x100] sm:$0xff]
        %v590 = vld [vmem:[%s471 + $0x108] sm:$0xff]
        %v591 = vld [vmem:[%s471 + $0x110] sm:$0xff]
        %v592 = vld [vmem:[%s471 + $0x118] sm:$0xff]
        %v593 = vld [vmem:[%s471 + $0x120] sm:$0xff]
        %v594 = vld [vmem:[%s471 + $0x128] sm:$0xff]
        %v595 = vld [vmem:[%s471 + $0x130] sm:$0xff]
        %v596 = vld [vmem:[%s471 + $0x138] sm:$0xff]
        %v597 = vld [vmem:[%s471 + $0x140] sm:$0xff]
        %v598 = vld [vmem:[%s471 + $0x148] sm:$0xff]
        %v599 = vld [vmem:[%s471 + $0x150] sm:$0xff]
        %v600 = vld [vmem:[%s471 + $0x158] sm:$0xff]
        %v601 = vld [vmem:[%s471 + $0x160] sm:$0xff]
        %v602 = vld [vmem:[%s471 + $0x168] sm:$0xff]
        %v603 = vld [vmem:[%s471 + $0x170] sm:$0xff]
        %v604 = vld [vmem:[%s471 + $0x178] sm:$0xff]
        %v605 = vld [vmem:[%s471 + $0x180] sm:$0xff]
        %v606 = vld [vmem:[%s471 + $0x188] sm:$0xff]
        %v607 = vld [vmem:[%s471 + $0x190] sm:$0xff]
        %v608 = vld [vmem:[%s471 + $0x198] sm:$0xff]
        %v609 = vld [vmem:[%s471 + $0x1a0] sm:$0xff]
        %v610 = vld [vmem:[%s471 + $0x1a8] sm:$0xff]
        %v611 = vld [vmem:[%s471 + $0x1b0] sm:$0xff]
        %v612 = vld [vmem:[%s471 + $0x1b8] sm:$0xff]
        %v613 = vld [vmem:[%s471 + $0x1c0] sm:$0xff]
        %v614 = vld [vmem:[%s471 + $0x1c8] sm:$0xff]
        %v615 = vld [vmem:[%s471 + $0x1d0] sm:$0xff]
        %v616 = vld [vmem:[%s471 + $0x1d8] sm:$0xff]
        %v617 = vld [vmem:[%s471 + $0x1e0] sm:$0xff]
        %v618 = vld [vmem:[%s471 + $0x1e8] sm:$0xff]
        %v619 = vld [vmem:[%s471 + $0x1f0] sm:$0xff]
        %v620 = vld [vmem:[%s471 + $0x1f8] sm:$0xff]
        %v621 = vlaneseq
        %v622 = vshrl.u32 %v621, 7
        %v623 = vadd.s32 %v622, 8
        %v624 = vadd.s32 %v622, 16
        %v625 = vadd.s32 %v622, 24
        %v626 = vadd.s32 %v622, 32
        %v627 = vadd.s32 %v622, 40
        %v628 = vadd.s32 %v622, 48
        %v629 = vadd.s32 %v622, 56
        %v630 = vadd.s32 %v622, 64
        %v631 = vadd.s32 %v622, 72
        %v632 = vadd.s32 %v622, 80
        %v633 = vadd.s32 %v622, 88
        %v634 = vadd.s32 %v622, 96
        %v635 = vadd.s32 %v622, 104
        %v636 = vadd.s32 %v622, 112
        %v637 = vadd.s32 %v622, 120
        %v638 = vadd.s32 %v622, 128
        %v639 = vadd.s32 %v622, 136
        %v640 = vadd.s32 %v622, 144
        %v641 = vadd.s32 %v622, 152
        %v642 = vadd.s32 %v622, 160
        %v643 = vadd.s32 %v622, 168
        %v644 = vadd.s32 %v622, 176
        %v645 = vadd.s32 %v622, 184
        %v646 = vadd.s32 %v622, 192
        %v647 = vadd.s32 %v622, 200
        %v648 = vadd.s32 %v622, 208
        %v649 = vadd.s32 %v622, 216
        %v650 = vadd.s32 %v622, 224
        %v651 = vadd.s32 %v622, 232
        %v652 = vadd.s32 %v622, 240
        %v653 = vadd.s32 %v622, 248
        %v654 = vlaneseq
        %v655 = vand.u32 %v654, 127
        %v656 = vadd.s32 %v655, 128
        %657 = vset.pattern.permute.xlu0 0
        %658 = vperm.xlu0 %657, %v493
        %v659 = vpop.permute.xlu0 %658
        %660 = vset.pattern.permute.xlu0 0
        %661 = vperm.xlu0 %660, %v494
        %v662 = vpop.permute.xlu0 %661
        %663 = vset.pattern.permute.xlu0 0
        %664 = vperm.xlu0 %663, %v495
        %v665 = vpop.permute.xlu0 %664
        %666 = vset.pattern.permute.xlu0 0
        %667 = vperm.xlu0 %666, %v496
        %v668 = vpop.permute.xlu0 %667
        %669 = vset.pattern.permute.xlu0 0
        %670 = vperm.xlu0 %669, %v497
        %v671 = vpop.permute.xlu0 %670
        %672 = vset.pattern.permute.xlu0 0
        %673 = vperm.xlu0 %672, %v498
        %v674 = vpop.permute.xlu0 %673
        %675 = vset.pattern.permute.xlu0 0
        %676 = vperm.xlu0 %675, %v499
        %v677 = vpop.permute.xlu0 %676
        %678 = vset.pattern.permute.xlu0 0
        %679 = vperm.xlu0 %678, %v500
        %v680 = vpop.permute.xlu0 %679
        %681 = vset.pattern.permute.xlu0 0
        %682 = vperm.xlu0 %681, %v501
        %v683 = vpop.permute.xlu0 %682
        %684 = vset.pattern.permute.xlu0 0
        %685 = vperm.xlu0 %684, %v502
        %v686 = vpop.permute.xlu0 %685
        %687 = vset.pattern.permute.xlu0 0
        %688 = vperm.xlu0 %687, %v503
        %v689 = vpop.permute.xlu0 %688
        %690 = vset.pattern.permute.xlu0 0
        %691 = vperm.xlu0 %690, %v504
        %v692 = vpop.permute.xlu0 %691
        %693 = vset.pattern.permute.xlu0 0
        %694 = vperm.xlu0 %693, %v505
        %v695 = vpop.permute.xlu0 %694
        %696 = vset.pattern.permute.xlu0 0
        %697 = vperm.xlu0 %696, %v506
        %v698 = vpop.permute.xlu0 %697
        %699 = vset.pattern.permute.xlu0 0
        %700 = vperm.xlu0 %699, %v507
        %v701 = vpop.permute.xlu0 %700
        %702 = vset.pattern.permute.xlu0 0
        %703 = vperm.xlu0 %702, %v508
        %v704 = vpop.permute.xlu0 %703
        %705 = vset.pattern.permute.xlu0 0
        %706 = vperm.xlu0 %705, %v509
        %v707 = vpop.permute.xlu0 %706
        %708 = vset.pattern.permute.xlu0 0
        %709 = vperm.xlu0 %708, %v510
        %v710 = vpop.permute.xlu0 %709
        %711 = vset.pattern.permute.xlu0 0
        %712 = vperm.xlu0 %711, %v511
        %v713 = vpop.permute.xlu0 %712
        %714 = vset.pattern.permute.xlu0 0
        %715 = vperm.xlu0 %714, %v512
        %v716 = vpop.permute.xlu0 %715
        %717 = vset.pattern.permute.xlu0 0
        %718 = vperm.xlu0 %717, %v513
        %v719 = vpop.permute.xlu0 %718
        %720 = vset.pattern.permute.xlu0 0
        %721 = vperm.xlu0 %720, %v514
        %v722 = vpop.permute.xlu0 %721
        %723 = vset.pattern.permute.xlu0 0
        %724 = vperm.xlu0 %723, %v515
        %v725 = vpop.permute.xlu0 %724
        %726 = vset.pattern.permute.xlu0 0
        %727 = vperm.xlu0 %726, %v516
        %v728 = vpop.permute.xlu0 %727
        %729 = vset.pattern.permute.xlu0 0
        %730 = vperm.xlu0 %729, %v517
        %v731 = vpop.permute.xlu0 %730
        %732 = vset.pattern.permute.xlu0 0
        %733 = vperm.xlu0 %732, %v518
        %v734 = vpop.permute.xlu0 %733
        %735 = vset.pattern.permute.xlu0 0
        %736 = vperm.xlu0 %735, %v519
        %v737 = vpop.permute.xlu0 %736
        %738 = vset.pattern.permute.xlu0 0
        %739 = vperm.xlu0 %738, %v520
        %v740 = vpop.permute.xlu0 %739
        %741 = vset.pattern.permute.xlu0 0
        %742 = vperm.xlu0 %741, %v521
        %v743 = vpop.permute.xlu0 %742
        %744 = vset.pattern.permute.xlu0 0
        %745 = vperm.xlu0 %744, %v522
        %v746 = vpop.permute.xlu0 %745
        %747 = vset.pattern.permute.xlu0 0
        %748 = vperm.xlu0 %747, %v523
        %v749 = vpop.permute.xlu0 %748
        %750 = vset.pattern.permute.xlu0 0
        %751 = vperm.xlu0 %750, %v524
        %v752 = vpop.permute.xlu0 %751
        %753 = vset.pattern.permute.xlu0 0
        %754 = vperm.xlu0 %753, %v525
        %v755 = vpop.permute.xlu0 %754
        %756 = vset.pattern.permute.xlu0 0
        %757 = vperm.xlu0 %756, %v526
        %v758 = vpop.permute.xlu0 %757
        %759 = vset.pattern.permute.xlu0 0
        %760 = vperm.xlu0 %759, %v527
        %v761 = vpop.permute.xlu0 %760
        %762 = vset.pattern.permute.xlu0 0
        %763 = vperm.xlu0 %762, %v528
        %v764 = vpop.permute.xlu0 %763
        %765 = vset.pattern.permute.xlu0 0
        %766 = vperm.xlu0 %765, %v529
        %v767 = vpop.permute.xlu0 %766
        %768 = vset.pattern.permute.xlu0 0
        %769 = vperm.xlu0 %768, %v530
        %v770 = vpop.permute.xlu0 %769
        %771 = vset.pattern.permute.xlu0 0
        %772 = vperm.xlu0 %771, %v531
        %v773 = vpop.permute.xlu0 %772
        %774 = vset.pattern.permute.xlu0 0
        %775 = vperm.xlu0 %774, %v532
        %v776 = vpop.permute.xlu0 %775
        %777 = vset.pattern.permute.xlu0 0
        %778 = vperm.xlu0 %777, %v533
        %v779 = vpop.permute.xlu0 %778
        %780 = vset.pattern.permute.xlu0 0
        %781 = vperm.xlu0 %780, %v534
        %v782 = vpop.permute.xlu0 %781
        %783 = vset.pattern.permute.xlu0 0
        %784 = vperm.xlu0 %783, %v535
        %v785 = vpop.permute.xlu0 %784
        %786 = vset.pattern.permute.xlu0 0
        %787 = vperm.xlu0 %786, %v536
        %v788 = vpop.permute.xlu0 %787
        %789 = vset.pattern.permute.xlu0 0
        %790 = vperm.xlu0 %789, %v537
        %v791 = vpop.permute.xlu0 %790
        %792 = vset.pattern.permute.xlu0 0
        %793 = vperm.xlu0 %792, %v538
        %v794 = vpop.permute.xlu0 %793
        %795 = vset.pattern.permute.xlu0 0
        %796 = vperm.xlu0 %795, %v539
        %v797 = vpop.permute.xlu0 %796
        %798 = vset.pattern.permute.xlu0 0
        %799 = vperm.xlu0 %798, %v540
        %v800 = vpop.permute.xlu0 %799
        %801 = vset.pattern.permute.xlu0 0
        %802 = vperm.xlu0 %801, %v541
        %v803 = vpop.permute.xlu0 %802
        %804 = vset.pattern.permute.xlu0 0
        %805 = vperm.xlu0 %804, %v542
        %v806 = vpop.permute.xlu0 %805
        %807 = vset.pattern.permute.xlu0 0
        %808 = vperm.xlu0 %807, %v543
        %v809 = vpop.permute.xlu0 %808
        %810 = vset.pattern.permute.xlu0 0
        %811 = vperm.xlu0 %810, %v544
        %v812 = vpop.permute.xlu0 %811
        %813 = vset.pattern.permute.xlu0 0
        %814 = vperm.xlu0 %813, %v545
        %v815 = vpop.permute.xlu0 %814
        %816 = vset.pattern.permute.xlu0 0
        %817 = vperm.xlu0 %816, %v546
        %v818 = vpop.permute.xlu0 %817
        %819 = vset.pattern.permute.xlu0 0
        %820 = vperm.xlu0 %819, %v547
        %v821 = vpop.permute.xlu0 %820
        %822 = vset.pattern.permute.xlu0 0
        %823 = vperm.xlu0 %822, %v548
        %v824 = vpop.permute.xlu0 %823
        %825 = vset.pattern.permute.xlu0 0
        %826 = vperm.xlu0 %825, %v549
        %v827 = vpop.permute.xlu0 %826
        %828 = vset.pattern.permute.xlu0 0
        %829 = vperm.xlu0 %828, %v550
        %v830 = vpop.permute.xlu0 %829
        %831 = vset.pattern.permute.xlu0 0
        %832 = vperm.xlu0 %831, %v551
        %v833 = vpop.permute.xlu0 %832
        %834 = vset.pattern.permute.xlu0 0
        %835 = vperm.xlu0 %834, %v552
        %v836 = vpop.permute.xlu0 %835
        %837 = vset.pattern.permute.xlu0 0
        %838 = vperm.xlu0 %837, %v553
        %v839 = vpop.permute.xlu0 %838
        %840 = vset.pattern.permute.xlu0 0
        %841 = vperm.xlu0 %840, %v554
        %v842 = vpop.permute.xlu0 %841
        %843 = vset.pattern.permute.xlu0 0
        %844 = vperm.xlu0 %843, %v555
        %v845 = vpop.permute.xlu0 %844
        %846 = vset.pattern.permute.xlu0 0
        %847 = vperm.xlu0 %846, %v556
        %v848 = vpop.permute.xlu0 %847
        %vm849 = vcmp.eq.s32.totalorder %v659, %v655
        %vm850 = vcmp.eq.s32.totalorder %v659, %v656
        %vm851 = vcmp.eq.s32.totalorder %v662, %v655
        %vm852 = vcmp.eq.s32.totalorder %v662, %v656
        %vm853 = vcmp.eq.s32.totalorder %v665, %v655
        %vm854 = vcmp.eq.s32.totalorder %v665, %v656
        %vm855 = vcmp.eq.s32.totalorder %v668, %v655
        %vm856 = vcmp.eq.s32.totalorder %v668, %v656
        %vm857 = vcmp.eq.s32.totalorder %v671, %v655
        %vm858 = vcmp.eq.s32.totalorder %v671, %v656
        %vm859 = vcmp.eq.s32.totalorder %v674, %v655
        %vm860 = vcmp.eq.s32.totalorder %v674, %v656
        %vm861 = vcmp.eq.s32.totalorder %v677, %v655
        %vm862 = vcmp.eq.s32.totalorder %v677, %v656
        %vm863 = vcmp.eq.s32.totalorder %v680, %v655
        %vm864 = vcmp.eq.s32.totalorder %v680, %v656
        %vm865 = vcmp.eq.s32.totalorder %v683, %v655
        %vm866 = vcmp.eq.s32.totalorder %v683, %v656
        %vm867 = vcmp.eq.s32.totalorder %v686, %v655
        %vm868 = vcmp.eq.s32.totalorder %v686, %v656
        %vm869 = vcmp.eq.s32.totalorder %v689, %v655
        %vm870 = vcmp.eq.s32.totalorder %v689, %v656
        %vm871 = vcmp.eq.s32.totalorder %v692, %v655
        %vm872 = vcmp.eq.s32.totalorder %v692, %v656
        %vm873 = vcmp.eq.s32.totalorder %v695, %v655
        %vm874 = vcmp.eq.s32.totalorder %v695, %v656
        %vm875 = vcmp.eq.s32.totalorder %v698, %v655
        %vm876 = vcmp.eq.s32.totalorder %v698, %v656
        %vm877 = vcmp.eq.s32.totalorder %v701, %v655
        %vm878 = vcmp.eq.s32.totalorder %v701, %v656
        %vm879 = vcmp.eq.s32.totalorder %v704, %v655
        %vm880 = vcmp.eq.s32.totalorder %v704, %v656
        %vm881 = vcmp.eq.s32.totalorder %v707, %v655
        %vm882 = vcmp.eq.s32.totalorder %v707, %v656
        %vm883 = vcmp.eq.s32.totalorder %v710, %v655
        %vm884 = vcmp.eq.s32.totalorder %v710, %v656
        %vm885 = vcmp.eq.s32.totalorder %v713, %v655
        %vm886 = vcmp.eq.s32.totalorder %v713, %v656
        %vm887 = vcmp.eq.s32.totalorder %v716, %v655
        %vm888 = vcmp.eq.s32.totalorder %v716, %v656
        %vm889 = vcmp.eq.s32.totalorder %v719, %v655
        %vm890 = vcmp.eq.s32.totalorder %v719, %v656
        %vm891 = vcmp.eq.s32.totalorder %v722, %v655
        %vm892 = vcmp.eq.s32.totalorder %v722, %v656
        %vm893 = vcmp.eq.s32.totalorder %v725, %v655
        %vm894 = vcmp.eq.s32.totalorder %v725, %v656
        %vm895 = vcmp.eq.s32.totalorder %v728, %v655
        %vm896 = vcmp.eq.s32.totalorder %v728, %v656
        %vm897 = vcmp.eq.s32.totalorder %v731, %v655
        %vm898 = vcmp.eq.s32.totalorder %v731, %v656
        %vm899 = vcmp.eq.s32.totalorder %v734, %v655
        %vm900 = vcmp.eq.s32.totalorder %v734, %v656
        %vm901 = vcmp.eq.s32.totalorder %v737, %v655
        %vm902 = vcmp.eq.s32.totalorder %v737, %v656
        %vm903 = vcmp.eq.s32.totalorder %v740, %v655
        %vm904 = vcmp.eq.s32.totalorder %v740, %v656
        %vm905 = vcmp.eq.s32.totalorder %v743, %v655
        %vm906 = vcmp.eq.s32.totalorder %v743, %v656
        %vm907 = vcmp.eq.s32.totalorder %v746, %v655
        %vm908 = vcmp.eq.s32.totalorder %v746, %v656
        %vm909 = vcmp.eq.s32.totalorder %v749, %v655
        %vm910 = vcmp.eq.s32.totalorder %v749, %v656
        %vm911 = vcmp.eq.s32.totalorder %v752, %v655
        %vm912 = vcmp.eq.s32.totalorder %v752, %v656
        %vm913 = vcmp.eq.s32.totalorder %v755, %v655
        %vm914 = vcmp.eq.s32.totalorder %v755, %v656
        %vm915 = vcmp.eq.s32.totalorder %v758, %v655
        %vm916 = vcmp.eq.s32.totalorder %v758, %v656
        %vm917 = vcmp.eq.s32.totalorder %v761, %v655
        %vm918 = vcmp.eq.s32.totalorder %v761, %v656
        %vm919 = vcmp.eq.s32.totalorder %v764, %v655
        %vm920 = vcmp.eq.s32.totalorder %v764, %v656
        %vm921 = vcmp.eq.s32.totalorder %v767, %v655
        %vm922 = vcmp.eq.s32.totalorder %v767, %v656
        %vm923 = vcmp.eq.s32.totalorder %v770, %v655
        %vm924 = vcmp.eq.s32.totalorder %v770, %v656
        %vm925 = vcmp.eq.s32.totalorder %v773, %v655
        %vm926 = vcmp.eq.s32.totalorder %v773, %v656
        %vm927 = vcmp.eq.s32.totalorder %v776, %v655
        %vm928 = vcmp.eq.s32.totalorder %v776, %v656
        %vm929 = vcmp.eq.s32.totalorder %v779, %v655
        %vm930 = vcmp.eq.s32.totalorder %v779, %v656
        %vm931 = vcmp.eq.s32.totalorder %v782, %v655
        %vm932 = vcmp.eq.s32.totalorder %v782, %v656
        %vm933 = vcmp.eq.s32.totalorder %v785, %v655
        %vm934 = vcmp.eq.s32.totalorder %v785, %v656
        %vm935 = vcmp.eq.s32.totalorder %v788, %v655
        %vm936 = vcmp.eq.s32.totalorder %v788, %v656
        %vm937 = vcmp.eq.s32.totalorder %v791, %v655
        %vm938 = vcmp.eq.s32.totalorder %v791, %v656
        %vm939 = vcmp.eq.s32.totalorder %v794, %v655
        %vm940 = vcmp.eq.s32.totalorder %v794, %v656
        %vm941 = vcmp.eq.s32.totalorder %v797, %v655
        %vm942 = vcmp.eq.s32.totalorder %v797, %v656
        %vm943 = vcmp.eq.s32.totalorder %v800, %v655
        %vm944 = vcmp.eq.s32.totalorder %v800, %v656
        %vm945 = vcmp.eq.s32.totalorder %v803, %v655
        %vm946 = vcmp.eq.s32.totalorder %v803, %v656
        %vm947 = vcmp.eq.s32.totalorder %v806, %v655
        %vm948 = vcmp.eq.s32.totalorder %v806, %v656
        %vm949 = vcmp.eq.s32.totalorder %v809, %v655
        %vm950 = vcmp.eq.s32.totalorder %v809, %v656
        %vm951 = vcmp.eq.s32.totalorder %v812, %v655
        %vm952 = vcmp.eq.s32.totalorder %v812, %v656
        %vm953 = vcmp.eq.s32.totalorder %v815, %v655
        %vm954 = vcmp.eq.s32.totalorder %v815, %v656
        %vm955 = vcmp.eq.s32.totalorder %v818, %v655
        %vm956 = vcmp.eq.s32.totalorder %v818, %v656
        %vm957 = vcmp.eq.s32.totalorder %v821, %v655
        %vm958 = vcmp.eq.s32.totalorder %v821, %v656
        %vm959 = vcmp.eq.s32.totalorder %v824, %v655
        %vm960 = vcmp.eq.s32.totalorder %v824, %v656
        %vm961 = vcmp.eq.s32.totalorder %v827, %v655
        %vm962 = vcmp.eq.s32.totalorder %v827, %v656
        %vm963 = vcmp.eq.s32.totalorder %v830, %v655
        %vm964 = vcmp.eq.s32.totalorder %v830, %v656
        %vm965 = vcmp.eq.s32.totalorder %v833, %v655
        %vm966 = vcmp.eq.s32.totalorder %v833, %v656
        %vm967 = vcmp.eq.s32.totalorder %v836, %v655
        %vm968 = vcmp.eq.s32.totalorder %v836, %v656
        %vm969 = vcmp.eq.s32.totalorder %v839, %v655
        %vm970 = vcmp.eq.s32.totalorder %v839, %v656
        %vm971 = vcmp.eq.s32.totalorder %v842, %v655
        %vm972 = vcmp.eq.s32.totalorder %v842, %v656
        %vm973 = vcmp.eq.s32.totalorder %v845, %v655
        %vm974 = vcmp.eq.s32.totalorder %v845, %v656
        %vm975 = vcmp.eq.s32.totalorder %v848, %v655
        %vm976 = vcmp.eq.s32.totalorder %v848, %v656
        %v977 = vsel %vm849, 1, 0
        %v978 = vsel %vm850, 1, 0
        %v979 = vsel %vm851, 1, 0
        %v980 = vsel %vm852, 1, 0
        %v981 = vsel %vm853, 1, 0
        %v982 = vsel %vm854, 1, 0
        %v983 = vsel %vm855, 1, 0
        %v984 = vsel %vm856, 1, 0
        %v985 = vsel %vm857, 1, 0
        %v986 = vsel %vm858, 1, 0
        %v987 = vsel %vm859, 1, 0
        %v988 = vsel %vm860, 1, 0
        %v989 = vsel %vm861, 1, 0
        %v990 = vsel %vm862, 1, 0
        %v991 = vsel %vm863, 1, 0
        %v992 = vsel %vm864, 1, 0
        %v993 = vsel %vm865, 1, 0
        %v994 = vsel %vm866, 1, 0
        %v995 = vsel %vm867, 1, 0
        %v996 = vsel %vm868, 1, 0
        %v997 = vsel %vm869, 1, 0
        %v998 = vsel %vm870, 1, 0
        %v999 = vsel %vm871, 1, 0
        %v1000 = vsel %vm872, 1, 0
        %v1001 = vsel %vm873, 1, 0
        %v1002 = vsel %vm874, 1, 0
        %v1003 = vsel %vm875, 1, 0
        %v1004 = vsel %vm876, 1, 0
        %v1005 = vsel %vm877, 1, 0
        %v1006 = vsel %vm878, 1, 0
        %v1007 = vsel %vm879, 1, 0
        %v1008 = vsel %vm880, 1, 0
        %v1009 = vsel %vm881, 1, 0
        %v1010 = vsel %vm882, 1, 0
        %v1011 = vsel %vm883, 1, 0
        %v1012 = vsel %vm884, 1, 0
        %v1013 = vsel %vm885, 1, 0
        %v1014 = vsel %vm886, 1, 0
        %v1015 = vsel %vm887, 1, 0
        %v1016 = vsel %vm888, 1, 0
        %v1017 = vsel %vm889, 1, 0
        %v1018 = vsel %vm890, 1, 0
        %v1019 = vsel %vm891, 1, 0
        %v1020 = vsel %vm892, 1, 0
        %v1021 = vsel %vm893, 1, 0
        %v1022 = vsel %vm894, 1, 0
        %v1023 = vsel %vm895, 1, 0
        %v1024 = vsel %vm896, 1, 0
        %v1025 = vsel %vm897, 1, 0
        %v1026 = vsel %vm898, 1, 0
        %v1027 = vsel %vm899, 1, 0
        %v1028 = vsel %vm900, 1, 0
        %v1029 = vsel %vm901, 1, 0
        %v1030 = vsel %vm902, 1, 0
        %v1031 = vsel %vm903, 1, 0
        %v1032 = vsel %vm904, 1, 0
        %v1033 = vsel %vm905, 1, 0
        %v1034 = vsel %vm906, 1, 0
        %v1035 = vsel %vm907, 1, 0
        %v1036 = vsel %vm908, 1, 0
        %v1037 = vsel %vm909, 1, 0
        %v1038 = vsel %vm910, 1, 0
        %v1039 = vsel %vm911, 1, 0
        %v1040 = vsel %vm912, 1, 0
        %v1041 = vsel %vm913, 1, 0
        %v1042 = vsel %vm914, 1, 0
        %v1043 = vsel %vm915, 1, 0
        %v1044 = vsel %vm916, 1, 0
        %v1045 = vsel %vm917, 1, 0
        %v1046 = vsel %vm918, 1, 0
        %v1047 = vsel %vm919, 1, 0
        %v1048 = vsel %vm920, 1, 0
        %v1049 = vsel %vm921, 1, 0
        %v1050 = vsel %vm922, 1, 0
        %v1051 = vsel %vm923, 1, 0
        %v1052 = vsel %vm924, 1, 0
        %v1053 = vsel %vm925, 1, 0
        %v1054 = vsel %vm926, 1, 0
        %v1055 = vsel %vm927, 1, 0
        %v1056 = vsel %vm928, 1, 0
        %v1057 = vsel %vm929, 1, 0
        %v1058 = vsel %vm930, 1, 0
        %v1059 = vsel %vm931, 1, 0
        %v1060 = vsel %vm932, 1, 0
        %v1061 = vsel %vm933, 1, 0
        %v1062 = vsel %vm934, 1, 0
        %v1063 = vsel %vm935, 1, 0
        %v1064 = vsel %vm936, 1, 0
        %v1065 = vsel %vm937, 1, 0
        %v1066 = vsel %vm938, 1, 0
        %v1067 = vsel %vm939, 1, 0
        %v1068 = vsel %vm940, 1, 0
        %v1069 = vsel %vm941, 1, 0
        %v1070 = vsel %vm942, 1, 0
        %v1071 = vsel %vm943, 1, 0
        %v1072 = vsel %vm944, 1, 0
        %v1073 = vsel %vm945, 1, 0
        %v1074 = vsel %vm946, 1, 0
        %v1075 = vsel %vm947, 1, 0
        %v1076 = vsel %vm948, 1, 0
        %v1077 = vsel %vm949, 1, 0
        %v1078 = vsel %vm950, 1, 0
        %v1079 = vsel %vm951, 1, 0
        %v1080 = vsel %vm952, 1, 0
        %v1081 = vsel %vm953, 1, 0
        %v1082 = vsel %vm954, 1, 0
        %v1083 = vsel %vm955, 1, 0
        %v1084 = vsel %vm956, 1, 0
        %v1085 = vsel %vm957, 1, 0
        %v1086 = vsel %vm958, 1, 0
        %v1087 = vsel %vm959, 1, 0
        %v1088 = vsel %vm960, 1, 0
        %v1089 = vsel %vm961, 1, 0
        %v1090 = vsel %vm962, 1, 0
        %v1091 = vsel %vm963, 1, 0
        %v1092 = vsel %vm964, 1, 0
        %v1093 = vsel %vm965, 1, 0
        %v1094 = vsel %vm966, 1, 0
        %v1095 = vsel %vm967, 1, 0
        %v1096 = vsel %vm968, 1, 0
        %v1097 = vsel %vm969, 1, 0
        %v1098 = vsel %vm970, 1, 0
        %v1099 = vsel %vm971, 1, 0
        %v1100 = vsel %vm972, 1, 0
        %v1101 = vsel %vm973, 1, 0
        %v1102 = vsel %vm974, 1, 0
        %v1103 = vsel %vm975, 1, 0
        %v1104 = vsel %vm976, 1, 0
        %v1105 = vcvt.s32.f32 %v977
        %v1106 = vcvt.s32.f32 %v978
        %v1107 = vcvt.s32.f32 %v979
        %v1108 = vcvt.s32.f32 %v980
        %v1109 = vcvt.s32.f32 %v981
        %v1110 = vcvt.s32.f32 %v982
        %v1111 = vcvt.s32.f32 %v983
        %v1112 = vcvt.s32.f32 %v984
        %v1113 = vcvt.s32.f32 %v985
        %v1114 = vcvt.s32.f32 %v986
        %v1115 = vcvt.s32.f32 %v987
        %v1116 = vcvt.s32.f32 %v988
        %v1117 = vcvt.s32.f32 %v989
        %v1118 = vcvt.s32.f32 %v990
        %v1119 = vcvt.s32.f32 %v991
        %v1120 = vcvt.s32.f32 %v992
        %v1121 = vcvt.s32.f32 %v993
        %v1122 = vcvt.s32.f32 %v994
        %v1123 = vcvt.s32.f32 %v995
        %v1124 = vcvt.s32.f32 %v996
        %v1125 = vcvt.s32.f32 %v997
        %v1126 = vcvt.s32.f32 %v998
        %v1127 = vcvt.s32.f32 %v999
        %v1128 = vcvt.s32.f32 %v1000
        %v1129 = vcvt.s32.f32 %v1001
        %v1130 = vcvt.s32.f32 %v1002
        %v1131 = vcvt.s32.f32 %v1003
        %v1132 = vcvt.s32.f32 %v1004
        %v1133 = vcvt.s32.f32 %v1005
        %v1134 = vcvt.s32.f32 %v1006
        %v1135 = vcvt.s32.f32 %v1007
        %v1136 = vcvt.s32.f32 %v1008
        %v1137 = vcvt.s32.f32 %v1009
        %v1138 = vcvt.s32.f32 %v1010
        %v1139 = vcvt.s32.f32 %v1011
        %v1140 = vcvt.s32.f32 %v1012
        %v1141 = vcvt.s32.f32 %v1013
        %v1142 = vcvt.s32.f32 %v1014
        %v1143 = vcvt.s32.f32 %v1015
        %v1144 = vcvt.s32.f32 %v1016
        %v1145 = vcvt.s32.f32 %v1017
        %v1146 = vcvt.s32.f32 %v1018
        %v1147 = vcvt.s32.f32 %v1019
        %v1148 = vcvt.s32.f32 %v1020
        %v1149 = vcvt.s32.f32 %v1021
        %v1150 = vcvt.s32.f32 %v1022
        %v1151 = vcvt.s32.f32 %v1023
        %v1152 = vcvt.s32.f32 %v1024
        %v1153 = vcvt.s32.f32 %v1025
        %v1154 = vcvt.s32.f32 %v1026
        %v1155 = vcvt.s32.f32 %v1027
        %v1156 = vcvt.s32.f32 %v1028
        %v1157 = vcvt.s32.f32 %v1029
        %v1158 = vcvt.s32.f32 %v1030
        %v1159 = vcvt.s32.f32 %v1031
        %v1160 = vcvt.s32.f32 %v1032
        %v1161 = vcvt.s32.f32 %v1033
        %v1162 = vcvt.s32.f32 %v1034
        %v1163 = vcvt.s32.f32 %v1035
        %v1164 = vcvt.s32.f32 %v1036
        %v1165 = vcvt.s32.f32 %v1037
        %v1166 = vcvt.s32.f32 %v1038
        %v1167 = vcvt.s32.f32 %v1039
        %v1168 = vcvt.s32.f32 %v1040
        %v1169 = vcvt.s32.f32 %v1041
        %v1170 = vcvt.s32.f32 %v1042
        %v1171 = vcvt.s32.f32 %v1043
        %v1172 = vcvt.s32.f32 %v1044
        %v1173 = vcvt.s32.f32 %v1045
        %v1174 = vcvt.s32.f32 %v1046
        %v1175 = vcvt.s32.f32 %v1047
        %v1176 = vcvt.s32.f32 %v1048
        %v1177 = vcvt.s32.f32 %v1049
        %v1178 = vcvt.s32.f32 %v1050
        %v1179 = vcvt.s32.f32 %v1051
        %v1180 = vcvt.s32.f32 %v1052
        %v1181 = vcvt.s32.f32 %v1053
        %v1182 = vcvt.s32.f32 %v1054
        %v1183 = vcvt.s32.f32 %v1055
        %v1184 = vcvt.s32.f32 %v1056
        %v1185 = vcvt.s32.f32 %v1057
        %v1186 = vcvt.s32.f32 %v1058
        %v1187 = vcvt.s32.f32 %v1059
        %v1188 = vcvt.s32.f32 %v1060
        %v1189 = vcvt.s32.f32 %v1061
        %v1190 = vcvt.s32.f32 %v1062
        %v1191 = vcvt.s32.f32 %v1063
        %v1192 = vcvt.s32.f32 %v1064
        %v1193 = vcvt.s32.f32 %v1065
        %v1194 = vcvt.s32.f32 %v1066
        %v1195 = vcvt.s32.f32 %v1067
        %v1196 = vcvt.s32.f32 %v1068
        %v1197 = vcvt.s32.f32 %v1069
        %v1198 = vcvt.s32.f32 %v1070
        %v1199 = vcvt.s32.f32 %v1071
        %v1200 = vcvt.s32.f32 %v1072
        %v1201 = vcvt.s32.f32 %v1073
        %v1202 = vcvt.s32.f32 %v1074
        %v1203 = vcvt.s32.f32 %v1075
        %v1204 = vcvt.s32.f32 %v1076
        %v1205 = vcvt.s32.f32 %v1077
        %v1206 = vcvt.s32.f32 %v1078
        %v1207 = vcvt.s32.f32 %v1079
        %v1208 = vcvt.s32.f32 %v1080
        %v1209 = vcvt.s32.f32 %v1081
        %v1210 = vcvt.s32.f32 %v1082
        %v1211 = vcvt.s32.f32 %v1083
        %v1212 = vcvt.s32.f32 %v1084
        %v1213 = vcvt.s32.f32 %v1085
        %v1214 = vcvt.s32.f32 %v1086
        %v1215 = vcvt.s32.f32 %v1087
        %v1216 = vcvt.s32.f32 %v1088
        %v1217 = vcvt.s32.f32 %v1089
        %v1218 = vcvt.s32.f32 %v1090
        %v1219 = vcvt.s32.f32 %v1091
        %v1220 = vcvt.s32.f32 %v1092
        %v1221 = vcvt.s32.f32 %v1093
        %v1222 = vcvt.s32.f32 %v1094
        %v1223 = vcvt.s32.f32 %v1095
        %v1224 = vcvt.s32.f32 %v1096
        %v1225 = vcvt.s32.f32 %v1097
        %v1226 = vcvt.s32.f32 %v1098
        %v1227 = vcvt.s32.f32 %v1099
        %v1228 = vcvt.s32.f32 %v1100
        %v1229 = vcvt.s32.f32 %v1101
        %v1230 = vcvt.s32.f32 %v1102
        %v1231 = vcvt.s32.f32 %v1103
        %v1232 = vcvt.s32.f32 %v1104
        %v1233 = vpack.c.bf16 %v1107, %v1105
        %v1234 = vpack.c.bf16 %v1108, %v1106
        %v1235 = vpack.c.bf16 %v1111, %v1109
        %v1236 = vpack.c.bf16 %v1112, %v1110
        %v1237 = vpack.c.bf16 %v1115, %v1113
        %v1238 = vpack.c.bf16 %v1116, %v1114
        %v1239 = vpack.c.bf16 %v1119, %v1117
        %v1240 = vpack.c.bf16 %v1120, %v1118
        %v1241 = vpack.c.bf16 %v1123, %v1121
        %v1242 = vpack.c.bf16 %v1124, %v1122
        %v1243 = vpack.c.bf16 %v1127, %v1125
        %v1244 = vpack.c.bf16 %v1128, %v1126
        %v1245 = vpack.c.bf16 %v1131, %v1129
        %v1246 = vpack.c.bf16 %v1132, %v1130
        %v1247 = vpack.c.bf16 %v1135, %v1133
        %v1248 = vpack.c.bf16 %v1136, %v1134
        %v1249 = vpack.c.bf16 %v1139, %v1137
        %v1250 = vpack.c.bf16 %v1140, %v1138
        %v1251 = vpack.c.bf16 %v1143, %v1141
        %v1252 = vpack.c.bf16 %v1144, %v1142
        %v1253 = vpack.c.bf16 %v1147, %v1145
        %v1254 = vpack.c.bf16 %v1148, %v1146
        %v1255 = vpack.c.bf16 %v1151, %v1149
        %v1256 = vpack.c.bf16 %v1152, %v1150
        %v1257 = vpack.c.bf16 %v1155, %v1153
        %v1258 = vpack.c.bf16 %v1156, %v1154
        %v1259 = vpack.c.bf16 %v1159, %v1157
        %v1260 = vpack.c.bf16 %v1160, %v1158
        %v1261 = vpack.c.bf16 %v1163, %v1161
        %v1262 = vpack.c.bf16 %v1164, %v1162
        %v1263 = vpack.c.bf16 %v1167, %v1165
        %v1264 = vpack.c.bf16 %v1168, %v1166
        %v1265 = vpack.c.bf16 %v1171, %v1169
        %v1266 = vpack.c.bf16 %v1172, %v1170
        %v1267 = vpack.c.bf16 %v1175, %v1173
        %v1268 = vpack.c.bf16 %v1176, %v1174
        %v1269 = vpack.c.bf16 %v1179, %v1177
        %v1270 = vpack.c.bf16 %v1180, %v1178
        %v1271 = vpack.c.bf16 %v1183, %v1181
        %v1272 = vpack.c.bf16 %v1184, %v1182
        %v1273 = vpack.c.bf16 %v1187, %v1185
        %v1274 = vpack.c.bf16 %v1188, %v1186
        %v1275 = vpack.c.bf16 %v1191, %v1189
        %v1276 = vpack.c.bf16 %v1192, %v1190
        %v1277 = vpack.c.bf16 %v1195, %v1193
        %v1278 = vpack.c.bf16 %v1196, %v1194
        %v1279 = vpack.c.bf16 %v1199, %v1197
        %v1280 = vpack.c.bf16 %v1200, %v1198
        %v1281 = vpack.c.bf16 %v1203, %v1201
        %v1282 = vpack.c.bf16 %v1204, %v1202
        %v1283 = vpack.c.bf16 %v1207, %v1205
        %v1284 = vpack.c.bf16 %v1208, %v1206
        %v1285 = vpack.c.bf16 %v1211, %v1209
        %v1286 = vpack.c.bf16 %v1212, %v1210
        %v1287 = vpack.c.bf16 %v1215, %v1213
        %v1288 = vpack.c.bf16 %v1216, %v1214
        %v1289 = vpack.c.bf16 %v1219, %v1217
        %v1290 = vpack.c.bf16 %v1220, %v1218
        %v1291 = vpack.c.bf16 %v1223, %v1221
        %v1292 = vpack.c.bf16 %v1224, %v1222
        %v1293 = vpack.c.bf16 %v1227, %v1225
        %v1294 = vpack.c.bf16 %v1228, %v1226
        %v1295 = vpack.c.bf16 %v1231, %v1229
        %v1296 = vpack.c.bf16 %v1232, %v1230
        %v1297 = vld [vmem:[%s421] sm:$0xf]
        %v1298 = vld [vmem:[%s421 + $0x4] sm:$0xf]
        %v1299 = vld [vmem:[%s421 + $0x8] sm:$0xf]
        %v1300 = vld [vmem:[%s421 + $0xc] sm:$0xf]
        %v1301 = vld [vmem:[%s421 + $0x10] sm:$0xf]
        %v1302 = vld [vmem:[%s421 + $0x14] sm:$0xf]
        %v1303 = vld [vmem:[%s421 + $0x18] sm:$0xf]
        %v1304 = vld [vmem:[%s421 + $0x1c] sm:$0xf]
        %v1305 = vld [vmem:[%s421 + $0x20] sm:$0xf]
        %v1306 = vld [vmem:[%s421 + $0x24] sm:$0xf]
        %v1307 = vld [vmem:[%s421 + $0x28] sm:$0xf]
        %v1308 = vld [vmem:[%s421 + $0x2c] sm:$0xf]
        %v1309 = vld [vmem:[%s421 + $0x30] sm:$0xf]
        %v1310 = vld [vmem:[%s421 + $0x34] sm:$0xf]
        %v1311 = vld [vmem:[%s421 + $0x38] sm:$0xf]
        %v1312 = vld [vmem:[%s421 + $0x3c] sm:$0xf]
        %v1313 = vld [vmem:[%s421 + $0x40] sm:$0xf]
        %v1314 = vld [vmem:[%s421 + $0x44] sm:$0xf]
        %v1315 = vld [vmem:[%s421 + $0x48] sm:$0xf]
        %v1316 = vld [vmem:[%s421 + $0x4c] sm:$0xf]
        %v1317 = vld [vmem:[%s421 + $0x50] sm:$0xf]
        %v1318 = vld [vmem:[%s421 + $0x54] sm:$0xf]
        %v1319 = vld [vmem:[%s421 + $0x58] sm:$0xf]
        %v1320 = vld [vmem:[%s421 + $0x5c] sm:$0xf]
        %v1321 = vld [vmem:[%s421 + $0x60] sm:$0xf]
        %v1322 = vld [vmem:[%s421 + $0x64] sm:$0xf]
        %v1323 = vld [vmem:[%s421 + $0x68] sm:$0xf]
        %v1324 = vld [vmem:[%s421 + $0x6c] sm:$0xf]
        %v1325 = vld [vmem:[%s421 + $0x70] sm:$0xf]
        %v1326 = vld [vmem:[%s421 + $0x74] sm:$0xf]
        %v1327 = vld [vmem:[%s421 + $0x78] sm:$0xf]
        %v1328 = vld [vmem:[%s421 + $0x7c] sm:$0xf]
        %v1361 = vunpack.c.l.b16 %v1297
        %v1362 = vunpack.c.l.b16 %v1298
        %v1363 = vunpack.c.l.b16 %v1299
        %v1364 = vunpack.c.l.b16 %v1300
        %v1365 = vunpack.c.l.b16 %v1301
        %v1366 = vunpack.c.l.b16 %v1302
        %v1367 = vunpack.c.l.b16 %v1303
        %v1368 = vunpack.c.l.b16 %v1304
        %v1369 = vunpack.c.l.b16 %v1305
        %v1370 = vunpack.c.l.b16 %v1306
        %v1371 = vunpack.c.l.b16 %v1307
        %v1372 = vunpack.c.l.b16 %v1308
        %v1373 = vunpack.c.l.b16 %v1309
        %v1374 = vunpack.c.l.b16 %v1310
        %v1375 = vunpack.c.l.b16 %v1311
        %v1376 = vunpack.c.l.b16 %v1312
        %v1377 = vunpack.c.l.b16 %v1313
        %v1378 = vunpack.c.l.b16 %v1314
        %v1379 = vunpack.c.l.b16 %v1315
        %v1380 = vunpack.c.l.b16 %v1316
        %v1381 = vunpack.c.l.b16 %v1317
        %v1382 = vunpack.c.l.b16 %v1318
        %v1383 = vunpack.c.l.b16 %v1319
        %v1384 = vunpack.c.l.b16 %v1320
        %v1385 = vunpack.c.l.b16 %v1321
        %v1386 = vunpack.c.l.b16 %v1322
        %v1387 = vunpack.c.l.b16 %v1323
        %v1388 = vunpack.c.l.b16 %v1324
        %v1389 = vunpack.c.l.b16 %v1325
        %v1390 = vunpack.c.l.b16 %v1326
        %v1391 = vunpack.c.l.b16 %v1327
        %v1392 = vunpack.c.l.b16 %v1328
        %v1393 = vpack.c.b16 %v1362, %v1361
        %v1394 = vpack.c.b16 %v1364, %v1363
        %v1395 = vpack.c.b16 %v1366, %v1365
        %v1396 = vpack.c.b16 %v1368, %v1367
        %v1397 = vpack.c.b16 %v1370, %v1369
        %v1398 = vpack.c.b16 %v1372, %v1371
        %v1399 = vpack.c.b16 %v1374, %v1373
        %v1400 = vpack.c.b16 %v1376, %v1375
        %v1401 = vpack.c.b16 %v1378, %v1377
        %v1402 = vpack.c.b16 %v1380, %v1379
        %v1403 = vpack.c.b16 %v1382, %v1381
        %v1404 = vpack.c.b16 %v1384, %v1383
        %v1405 = vpack.c.b16 %v1386, %v1385
        %v1406 = vpack.c.b16 %v1388, %v1387
        %v1407 = vpack.c.b16 %v1390, %v1389
        %v1408 = vpack.c.b16 %v1392, %v1391
        %1425 = vmatprep.subr.bf16.mxu0 0
        %1426 = vmatpush1.bf16.msra.mxu0 %v1400
        %1427 = vmatprep.subr.bf16.mxu0 0
        %1428 = vmatpush1.bf16.msra.mxu0 %v1399
        %1429 = vmatprep.subr.bf16.mxu0 0
        %1430 = vmatpush1.bf16.msra.mxu0 %v1398
        %1431 = vmatprep.subr.bf16.mxu0 0
        %1432 = vmatpush1.bf16.msra.mxu0 %v1397
        %1433 = vmatprep.subr.bf16.mxu0 0
        %1434 = vmatpush1.bf16.msra.mxu0 %v1396
        %1435 = vmatprep.subr.bf16.mxu0 0
        %1436 = vmatpush1.bf16.msra.mxu0 %v1395
        %1437 = vmatprep.subr.bf16.mxu0 0
        %1438 = vmatpush1.bf16.msra.mxu0 %v1394
        %1439 = vmatprep.subr.bf16.mxu0 0
        %1440 = vmatpush1.bf16.msra.mxu0 %v1393
        %1441 = vmatprep.subr.bf16.mxu0 0
        %1442 = vmatpush2.bf16.msra.mxu0 %v1408
        %1443 = vmatprep.subr.bf16.mxu0 0
        %1444 = vmatpush2.bf16.msra.mxu0 %v1407
        %1445 = vmatprep.subr.bf16.mxu0 0
        %1446 = vmatpush2.bf16.msra.mxu0 %v1406
        %1447 = vmatprep.subr.bf16.mxu0 0
        %1448 = vmatpush2.bf16.msra.mxu0 %v1405
        %1449 = vmatprep.subr.bf16.mxu0 0
        %1450 = vmatpush2.bf16.msra.mxu0 %v1404
        %1451 = vmatprep.subr.bf16.mxu0 0
        %1452 = vmatpush2.bf16.msra.mxu0 %v1403
        %1453 = vmatprep.subr.bf16.mxu0 0
        %1454 = vmatpush2.bf16.msra.mxu0 %v1402
        %1455 = vmatprep.subr.bf16.mxu0 0
        %1456 = vmatpush2.bf16.msra.mxu0 %v1401
        %1457 = vmatprep.mubr.bf16.mxu0 %v1234
        %1458 = vmatmul.mubr.bf16.gmra.mxu0 %v1233
        %v1459 = vpop.f32.mrf.mxu0
        %v1460 = vadd.f32 0.0, %v1459
        %v1461 = vpop.f32.mrf.mxu0
        %v1462 = vpop.f32.mrf.mxu0
        %v1463 = vadd.f32 0.0, %v1462
        %v1464 = vpop.f32.mrf.mxu0
        %1465 = vmatprep.mubr.bf16.mxu0 %v1236
        %1466 = vmatmul.mubr.bf16.gmra.mxu0 %v1235
        %v1467 = vpop.f32.mrf.mxu0
        %v1468 = vadd.f32 0.0, %v1467
        %v1469 = vpop.f32.mrf.mxu0
        %v1470 = vpop.f32.mrf.mxu0
        %v1471 = vadd.f32 0.0, %v1470
        %v1472 = vpop.f32.mrf.mxu0
        %1473 = vmatprep.mubr.bf16.mxu0 %v1238
        %1474 = vmatmul.mubr.bf16.gmra.mxu0 %v1237
        %v1475 = vpop.f32.mrf.mxu0
        %v1476 = vadd.f32 0.0, %v1475
        %v1477 = vpop.f32.mrf.mxu0
        %v1478 = vpop.f32.mrf.mxu0
        %v1479 = vadd.f32 0.0, %v1478
        %v1480 = vpop.f32.mrf.mxu0
        %1481 = vmatprep.mubr.bf16.mxu0 %v1240
        %1482 = vmatmul.mubr.bf16.gmra.mxu0 %v1239
        %v1483 = vpop.f32.mrf.mxu0
        %v1484 = vadd.f32 0.0, %v1483
        %v1485 = vpop.f32.mrf.mxu0
        %v1486 = vpop.f32.mrf.mxu0
        %v1487 = vadd.f32 0.0, %v1486
        %v1488 = vpop.f32.mrf.mxu0
        %1489 = vmatprep.mubr.bf16.mxu0 %v1242
        %1490 = vmatmul.mubr.bf16.gmra.mxu0 %v1241
        %v1491 = vpop.f32.mrf.mxu0
        %v1492 = vadd.f32 0.0, %v1491
        %v1493 = vpop.f32.mrf.mxu0
        %v1494 = vpop.f32.mrf.mxu0
        %v1495 = vadd.f32 0.0, %v1494
        %v1496 = vpop.f32.mrf.mxu0
        %1497 = vmatprep.mubr.bf16.mxu0 %v1244
        %1498 = vmatmul.mubr.bf16.gmra.mxu0 %v1243
        %v1499 = vpop.f32.mrf.mxu0
        %v1500 = vadd.f32 0.0, %v1499
        %v1501 = vpop.f32.mrf.mxu0
        %v1502 = vpop.f32.mrf.mxu0
        %v1503 = vadd.f32 0.0, %v1502
        %v1504 = vpop.f32.mrf.mxu0
        %1505 = vmatprep.mubr.bf16.mxu0 %v1246
        %1506 = vmatmul.mubr.bf16.gmra.mxu0 %v1245
        %v1507 = vpop.f32.mrf.mxu0
        %v1508 = vadd.f32 0.0, %v1507
        %v1509 = vpop.f32.mrf.mxu0
        %v1510 = vpop.f32.mrf.mxu0
        %v1511 = vadd.f32 0.0, %v1510
        %v1512 = vpop.f32.mrf.mxu0
        %1513 = vmatprep.mubr.bf16.mxu0 %v1248
        %1514 = vmatmul.mubr.bf16.gmra.mxu0 %v1247
        %v1515 = vpop.f32.mrf.mxu0
        %v1516 = vadd.f32 0.0, %v1515
        %v1517 = vpop.f32.mrf.mxu0
        %v1518 = vpop.f32.mrf.mxu0
        %v1519 = vadd.f32 0.0, %v1518
        %v1520 = vpop.f32.mrf.mxu0
        %1521 = vmatprep.mubr.bf16.mxu0 %v1250
        %1522 = vmatmul.mubr.bf16.gmra.mxu0 %v1249
        %v1523 = vpop.f32.mrf.mxu0
        %v1524 = vadd.f32 0.0, %v1523
        %v1525 = vpop.f32.mrf.mxu0
        %v1526 = vpop.f32.mrf.mxu0
        %v1527 = vadd.f32 0.0, %v1526
        %v1528 = vpop.f32.mrf.mxu0
        %1529 = vmatprep.mubr.bf16.mxu0 %v1252
        %1530 = vmatmul.mubr.bf16.gmra.mxu0 %v1251
        %v1531 = vpop.f32.mrf.mxu0
        %v1532 = vadd.f32 0.0, %v1531
        %v1533 = vpop.f32.mrf.mxu0
        %v1534 = vpop.f32.mrf.mxu0
        %v1535 = vadd.f32 0.0, %v1534
        %v1536 = vpop.f32.mrf.mxu0
        %1537 = vmatprep.mubr.bf16.mxu0 %v1254
        %1538 = vmatmul.mubr.bf16.gmra.mxu0 %v1253
        %v1539 = vpop.f32.mrf.mxu0
        %v1540 = vadd.f32 0.0, %v1539
        %v1541 = vpop.f32.mrf.mxu0
        %v1542 = vpop.f32.mrf.mxu0
        %v1543 = vadd.f32 0.0, %v1542
        %v1544 = vpop.f32.mrf.mxu0
        %1545 = vmatprep.mubr.bf16.mxu0 %v1256
        %1546 = vmatmul.mubr.bf16.gmra.mxu0 %v1255
        %v1547 = vpop.f32.mrf.mxu0
        %v1548 = vadd.f32 0.0, %v1547
        %v1549 = vpop.f32.mrf.mxu0
        %v1550 = vpop.f32.mrf.mxu0
        %v1551 = vadd.f32 0.0, %v1550
        %v1552 = vpop.f32.mrf.mxu0
        %1553 = vmatprep.mubr.bf16.mxu0 %v1258
        %1554 = vmatmul.mubr.bf16.gmra.mxu0 %v1257
        %v1555 = vpop.f32.mrf.mxu0
        %v1556 = vadd.f32 0.0, %v1555
        %v1557 = vpop.f32.mrf.mxu0
        %v1558 = vpop.f32.mrf.mxu0
        %v1559 = vadd.f32 0.0, %v1558
        %v1560 = vpop.f32.mrf.mxu0
        %1561 = vmatprep.mubr.bf16.mxu0 %v1260
        %1562 = vmatmul.mubr.bf16.gmra.mxu0 %v1259
        %v1563 = vpop.f32.mrf.mxu0
        %v1564 = vadd.f32 0.0, %v1563
        %v1565 = vpop.f32.mrf.mxu0
        %v1566 = vpop.f32.mrf.mxu0
        %v1567 = vadd.f32 0.0, %v1566
        %v1568 = vpop.f32.mrf.mxu0
        %1569 = vmatprep.mubr.bf16.mxu0 %v1262
        %1570 = vmatmul.mubr.bf16.gmra.mxu0 %v1261
        %v1571 = vpop.f32.mrf.mxu0
        %v1572 = vadd.f32 0.0, %v1571
        %v1573 = vpop.f32.mrf.mxu0
        %v1574 = vpop.f32.mrf.mxu0
        %v1575 = vadd.f32 0.0, %v1574
        %v1576 = vpop.f32.mrf.mxu0
        %1577 = vmatprep.mubr.bf16.mxu0 %v1264
        %1578 = vmatmul.mubr.bf16.gmra.mxu0 %v1263
        %v1579 = vpop.f32.mrf.mxu0
        %v1580 = vadd.f32 0.0, %v1579
        %v1581 = vpop.f32.mrf.mxu0
        %v1582 = vpop.f32.mrf.mxu0
        %v1583 = vadd.f32 0.0, %v1582
        %v1584 = vpop.f32.mrf.mxu0
        %1585 = vmatprep.mubr.bf16.mxu0 %v1266
        %1586 = vmatmul.mubr.bf16.gmra.mxu0 %v1265
        %v1587 = vpop.f32.mrf.mxu0
        %v1588 = vadd.f32 0.0, %v1587
        %v1589 = vpop.f32.mrf.mxu0
        %v1590 = vpop.f32.mrf.mxu0
        %v1591 = vadd.f32 0.0, %v1590
        %v1592 = vpop.f32.mrf.mxu0
        %1593 = vmatprep.mubr.bf16.mxu0 %v1268
        %1594 = vmatmul.mubr.bf16.gmra.mxu0 %v1267
        %v1595 = vpop.f32.mrf.mxu0
        %v1596 = vadd.f32 0.0, %v1595
        %v1597 = vpop.f32.mrf.mxu0
        %v1598 = vpop.f32.mrf.mxu0
        %v1599 = vadd.f32 0.0, %v1598
        %v1600 = vpop.f32.mrf.mxu0
        %1601 = vmatprep.mubr.bf16.mxu0 %v1270
        %1602 = vmatmul.mubr.bf16.gmra.mxu0 %v1269
        %v1603 = vpop.f32.mrf.mxu0
        %v1604 = vadd.f32 0.0, %v1603
        %v1605 = vpop.f32.mrf.mxu0
        %v1606 = vpop.f32.mrf.mxu0
        %v1607 = vadd.f32 0.0, %v1606
        %v1608 = vpop.f32.mrf.mxu0
        %1609 = vmatprep.mubr.bf16.mxu0 %v1272
        %1610 = vmatmul.mubr.bf16.gmra.mxu0 %v1271
        %v1611 = vpop.f32.mrf.mxu0
        %v1612 = vadd.f32 0.0, %v1611
        %v1613 = vpop.f32.mrf.mxu0
        %v1614 = vpop.f32.mrf.mxu0
        %v1615 = vadd.f32 0.0, %v1614
        %v1616 = vpop.f32.mrf.mxu0
        %1617 = vmatprep.mubr.bf16.mxu0 %v1274
        %1618 = vmatmul.mubr.bf16.gmra.mxu0 %v1273
        %v1619 = vpop.f32.mrf.mxu0
        %v1620 = vadd.f32 0.0, %v1619
        %v1621 = vpop.f32.mrf.mxu0
        %v1622 = vpop.f32.mrf.mxu0
        %v1623 = vadd.f32 0.0, %v1622
        %v1624 = vpop.f32.mrf.mxu0
        %1625 = vmatprep.mubr.bf16.mxu0 %v1276
        %1626 = vmatmul.mubr.bf16.gmra.mxu0 %v1275
        %v1627 = vpop.f32.mrf.mxu0
        %v1628 = vadd.f32 0.0, %v1627
        %v1629 = vpop.f32.mrf.mxu0
        %v1630 = vpop.f32.mrf.mxu0
        %v1631 = vadd.f32 0.0, %v1630
        %v1632 = vpop.f32.mrf.mxu0
        %1633 = vmatprep.mubr.bf16.mxu0 %v1278
        %1634 = vmatmul.mubr.bf16.gmra.mxu0 %v1277
        %v1635 = vpop.f32.mrf.mxu0
        %v1636 = vadd.f32 0.0, %v1635
        %v1637 = vpop.f32.mrf.mxu0
        %v1638 = vpop.f32.mrf.mxu0
        %v1639 = vadd.f32 0.0, %v1638
        %v1640 = vpop.f32.mrf.mxu0
        %1641 = vmatprep.mubr.bf16.mxu0 %v1280
        %1642 = vmatmul.mubr.bf16.gmra.mxu0 %v1279
        %v1643 = vpop.f32.mrf.mxu0
        %v1644 = vadd.f32 0.0, %v1643
        %v1645 = vpop.f32.mrf.mxu0
        %v1646 = vpop.f32.mrf.mxu0
        %v1647 = vadd.f32 0.0, %v1646
        %v1648 = vpop.f32.mrf.mxu0
        %1649 = vmatprep.mubr.bf16.mxu0 %v1282
        %1650 = vmatmul.mubr.bf16.gmra.mxu0 %v1281
        %v1651 = vpop.f32.mrf.mxu0
        %v1652 = vadd.f32 0.0, %v1651
        %v1653 = vpop.f32.mrf.mxu0
        %v1654 = vpop.f32.mrf.mxu0
        %v1655 = vadd.f32 0.0, %v1654
        %v1656 = vpop.f32.mrf.mxu0
        %1657 = vmatprep.mubr.bf16.mxu0 %v1284
        %1658 = vmatmul.mubr.bf16.gmra.mxu0 %v1283
        %v1659 = vpop.f32.mrf.mxu0
        %v1660 = vadd.f32 0.0, %v1659
        %v1661 = vpop.f32.mrf.mxu0
        %v1662 = vpop.f32.mrf.mxu0
        %v1663 = vadd.f32 0.0, %v1662
        %v1664 = vpop.f32.mrf.mxu0
        %1665 = vmatprep.mubr.bf16.mxu0 %v1286
        %1666 = vmatmul.mubr.bf16.gmra.mxu0 %v1285
        %v1667 = vpop.f32.mrf.mxu0
        %v1668 = vadd.f32 0.0, %v1667
        %v1669 = vpop.f32.mrf.mxu0
        %v1670 = vpop.f32.mrf.mxu0
        %v1671 = vadd.f32 0.0, %v1670
        %v1672 = vpop.f32.mrf.mxu0
        %1673 = vmatprep.mubr.bf16.mxu0 %v1288
        %1674 = vmatmul.mubr.bf16.gmra.mxu0 %v1287
        %v1675 = vpop.f32.mrf.mxu0
        %v1676 = vadd.f32 0.0, %v1675
        %v1677 = vpop.f32.mrf.mxu0
        %v1678 = vpop.f32.mrf.mxu0
        %v1679 = vadd.f32 0.0, %v1678
        %v1680 = vpop.f32.mrf.mxu0
        %1681 = vmatprep.mubr.bf16.mxu0 %v1290
        %1682 = vmatmul.mubr.bf16.gmra.mxu0 %v1289
        %v1683 = vpop.f32.mrf.mxu0
        %v1684 = vadd.f32 0.0, %v1683
        %v1685 = vpop.f32.mrf.mxu0
        %v1686 = vpop.f32.mrf.mxu0
        %v1687 = vadd.f32 0.0, %v1686
        %v1688 = vpop.f32.mrf.mxu0
        %1689 = vmatprep.mubr.bf16.mxu0 %v1292
        %1690 = vmatmul.mubr.bf16.gmra.mxu0 %v1291
        %v1691 = vpop.f32.mrf.mxu0
        %v1692 = vadd.f32 0.0, %v1691
        %v1693 = vpop.f32.mrf.mxu0
        %v1694 = vpop.f32.mrf.mxu0
        %v1695 = vadd.f32 0.0, %v1694
        %v1696 = vpop.f32.mrf.mxu0
        %1697 = vmatprep.mubr.bf16.mxu0 %v1294
        %1698 = vmatmul.mubr.bf16.gmra.mxu0 %v1293
        %v1699 = vpop.f32.mrf.mxu0
        %v1700 = vadd.f32 0.0, %v1699
        %v1701 = vpop.f32.mrf.mxu0
        %v1702 = vpop.f32.mrf.mxu0
        %v1703 = vadd.f32 0.0, %v1702
        %v1704 = vpop.f32.mrf.mxu0
        %1705 = vmatprep.mubr.bf16.mxu0 %v1296
        %1706 = vmatmul.mubr.bf16.gmra.mxu0 %v1295
        %v1707 = vpop.f32.mrf.mxu0
        %v1708 = vadd.f32 0.0, %v1707
        %v1709 = vpop.f32.mrf.mxu0
        %v1710 = vpop.f32.mrf.mxu0
        %v1711 = vadd.f32 0.0, %v1710
        %v1712 = vpop.f32.mrf.mxu0
        %1713 = vdwg.mxu0
        %1715 = vset.pattern.permute.xlu0 0
        %1716 = vperm.xlu0 %1715, %v557
        %v1717 = vpop.permute.xlu0 %1716
        %1720 = vset.pattern.permute.xlu0 0
        %1721 = vperm.xlu0 %1720, %v558
        %v1722 = vpop.permute.xlu0 %1721
        %1725 = vset.pattern.permute.xlu0 0
        %1726 = vperm.xlu0 %1725, %v559
        %v1727 = vpop.permute.xlu0 %1726
        %1730 = vset.pattern.permute.xlu0 0
        %1731 = vperm.xlu0 %1730, %v560
        %v1732 = vpop.permute.xlu0 %1731
        %1735 = vset.pattern.permute.xlu0 0
        %1736 = vperm.xlu0 %1735, %v561
        %v1737 = vpop.permute.xlu0 %1736
        %1740 = vset.pattern.permute.xlu0 0
        %1741 = vperm.xlu0 %1740, %v562
        %v1742 = vpop.permute.xlu0 %1741
        %1745 = vset.pattern.permute.xlu0 0
        %1746 = vperm.xlu0 %1745, %v563
        %v1747 = vpop.permute.xlu0 %1746
        %1750 = vset.pattern.permute.xlu0 0
        %1751 = vperm.xlu0 %1750, %v564
        %v1752 = vpop.permute.xlu0 %1751
        %1755 = vset.pattern.permute.xlu0 0
        %1756 = vperm.xlu0 %1755, %v565
        %v1757 = vpop.permute.xlu0 %1756
        %1760 = vset.pattern.permute.xlu0 0
        %1761 = vperm.xlu0 %1760, %v566
        %v1762 = vpop.permute.xlu0 %1761
        %1765 = vset.pattern.permute.xlu0 0
        %1766 = vperm.xlu0 %1765, %v567
        %v1767 = vpop.permute.xlu0 %1766
        %1770 = vset.pattern.permute.xlu0 0
        %1771 = vperm.xlu0 %1770, %v568
        %v1772 = vpop.permute.xlu0 %1771
        %1775 = vset.pattern.permute.xlu0 0
        %1776 = vperm.xlu0 %1775, %v569
        %v1777 = vpop.permute.xlu0 %1776
        %1780 = vset.pattern.permute.xlu0 0
        %1781 = vperm.xlu0 %1780, %v570
        %v1782 = vpop.permute.xlu0 %1781
        %1785 = vset.pattern.permute.xlu0 0
        %1786 = vperm.xlu0 %1785, %v571
        %v1787 = vpop.permute.xlu0 %1786
        %1790 = vset.pattern.permute.xlu0 0
        %1791 = vperm.xlu0 %1790, %v572
        %v1792 = vpop.permute.xlu0 %1791
        %1795 = vset.pattern.permute.xlu0 0
        %1796 = vperm.xlu0 %1795, %v573
        %v1797 = vpop.permute.xlu0 %1796
        %1800 = vset.pattern.permute.xlu0 0
        %1801 = vperm.xlu0 %1800, %v574
        %v1802 = vpop.permute.xlu0 %1801
        %1805 = vset.pattern.permute.xlu0 0
        %1806 = vperm.xlu0 %1805, %v575
        %v1807 = vpop.permute.xlu0 %1806
        %1810 = vset.pattern.permute.xlu0 0
        %1811 = vperm.xlu0 %1810, %v576
        %v1812 = vpop.permute.xlu0 %1811
        %1815 = vset.pattern.permute.xlu0 0
        %1816 = vperm.xlu0 %1815, %v577
        %v1817 = vpop.permute.xlu0 %1816
        %1820 = vset.pattern.permute.xlu0 0
        %1821 = vperm.xlu0 %1820, %v578
        %v1822 = vpop.permute.xlu0 %1821
        %1825 = vset.pattern.permute.xlu0 0
        %1826 = vperm.xlu0 %1825, %v579
        %v1827 = vpop.permute.xlu0 %1826
        %1830 = vset.pattern.permute.xlu0 0
        %1831 = vperm.xlu0 %1830, %v580
        %v1832 = vpop.permute.xlu0 %1831
        %1835 = vset.pattern.permute.xlu0 0
        %1836 = vperm.xlu0 %1835, %v581
        %v1837 = vpop.permute.xlu0 %1836
        %1840 = vset.pattern.permute.xlu0 0
        %1841 = vperm.xlu0 %1840, %v582
        %v1842 = vpop.permute.xlu0 %1841
        %1845 = vset.pattern.permute.xlu0 0
        %1846 = vperm.xlu0 %1845, %v583
        %v1847 = vpop.permute.xlu0 %1846
        %1850 = vset.pattern.permute.xlu0 0
        %1851 = vperm.xlu0 %1850, %v584
        %v1852 = vpop.permute.xlu0 %1851
        %1855 = vset.pattern.permute.xlu0 0
        %1856 = vperm.xlu0 %1855, %v585
        %v1857 = vpop.permute.xlu0 %1856
        %1860 = vset.pattern.permute.xlu0 0
        %1861 = vperm.xlu0 %1860, %v586
        %v1862 = vpop.permute.xlu0 %1861
        %1865 = vset.pattern.permute.xlu0 0
        %1866 = vperm.xlu0 %1865, %v587
        %v1867 = vpop.permute.xlu0 %1866
        %1870 = vset.pattern.permute.xlu0 0
        %1871 = vperm.xlu0 %1870, %v588
        %v1872 = vpop.permute.xlu0 %1871
        %1875 = vset.pattern.permute.xlu0 0
        %1876 = vperm.xlu0 %1875, %v589
        %v1877 = vpop.permute.xlu0 %1876
        %1880 = vset.pattern.permute.xlu0 0
        %1881 = vperm.xlu0 %1880, %v590
        %v1882 = vpop.permute.xlu0 %1881
        %1885 = vset.pattern.permute.xlu0 0
        %1886 = vperm.xlu0 %1885, %v591
        %v1887 = vpop.permute.xlu0 %1886
        %1890 = vset.pattern.permute.xlu0 0
        %1891 = vperm.xlu0 %1890, %v592
        %v1892 = vpop.permute.xlu0 %1891
        %1895 = vset.pattern.permute.xlu0 0
        %1896 = vperm.xlu0 %1895, %v593
        %v1897 = vpop.permute.xlu0 %1896
        %1900 = vset.pattern.permute.xlu0 0
        %1901 = vperm.xlu0 %1900, %v594
        %v1902 = vpop.permute.xlu0 %1901
        %1905 = vset.pattern.permute.xlu0 0
        %1906 = vperm.xlu0 %1905, %v595
        %v1907 = vpop.permute.xlu0 %1906
        %1910 = vset.pattern.permute.xlu0 0
        %1911 = vperm.xlu0 %1910, %v596
        %v1912 = vpop.permute.xlu0 %1911
        %1915 = vset.pattern.permute.xlu0 0
        %1916 = vperm.xlu0 %1915, %v597
        %v1917 = vpop.permute.xlu0 %1916
        %1920 = vset.pattern.permute.xlu0 0
        %1921 = vperm.xlu0 %1920, %v598
        %v1922 = vpop.permute.xlu0 %1921
        %1925 = vset.pattern.permute.xlu0 0
        %1926 = vperm.xlu0 %1925, %v599
        %v1927 = vpop.permute.xlu0 %1926
        %1930 = vset.pattern.permute.xlu0 0
        %1931 = vperm.xlu0 %1930, %v600
        %v1932 = vpop.permute.xlu0 %1931
        %1935 = vset.pattern.permute.xlu0 0
        %1936 = vperm.xlu0 %1935, %v601
        %v1937 = vpop.permute.xlu0 %1936
        %1940 = vset.pattern.permute.xlu0 0
        %1941 = vperm.xlu0 %1940, %v602
        %v1942 = vpop.permute.xlu0 %1941
        %1945 = vset.pattern.permute.xlu0 0
        %1946 = vperm.xlu0 %1945, %v603
        %v1947 = vpop.permute.xlu0 %1946
        %1950 = vset.pattern.permute.xlu0 0
        %1951 = vperm.xlu0 %1950, %v604
        %v1952 = vpop.permute.xlu0 %1951
        %1955 = vset.pattern.permute.xlu0 0
        %1956 = vperm.xlu0 %1955, %v605
        %v1957 = vpop.permute.xlu0 %1956
        %1960 = vset.pattern.permute.xlu0 0
        %1961 = vperm.xlu0 %1960, %v606
        %v1962 = vpop.permute.xlu0 %1961
        %1965 = vset.pattern.permute.xlu0 0
        %1966 = vperm.xlu0 %1965, %v607
        %v1967 = vpop.permute.xlu0 %1966
        %1970 = vset.pattern.permute.xlu0 0
        %1971 = vperm.xlu0 %1970, %v608
        %v1972 = vpop.permute.xlu0 %1971
        %1975 = vset.pattern.permute.xlu0 0
        %1976 = vperm.xlu0 %1975, %v609
        %v1977 = vpop.permute.xlu0 %1976
        %1980 = vset.pattern.permute.xlu0 0
        %1981 = vperm.xlu0 %1980, %v610
        %v1982 = vpop.permute.xlu0 %1981
        %1985 = vset.pattern.permute.xlu0 0
        %1986 = vperm.xlu0 %1985, %v611
        %v1987 = vpop.permute.xlu0 %1986
        %1990 = vset.pattern.permute.xlu0 0
        %1991 = vperm.xlu0 %1990, %v612
        %v1992 = vpop.permute.xlu0 %1991
        %1995 = vset.pattern.permute.xlu0 0
        %1996 = vperm.xlu0 %1995, %v613
        %v1997 = vpop.permute.xlu0 %1996
        %2000 = vset.pattern.permute.xlu0 0
        %2001 = vperm.xlu0 %2000, %v614
        %v2002 = vpop.permute.xlu0 %2001
        %2005 = vset.pattern.permute.xlu0 0
        %2006 = vperm.xlu0 %2005, %v615
        %v2007 = vpop.permute.xlu0 %2006
        %2010 = vset.pattern.permute.xlu0 0
        %2011 = vperm.xlu0 %2010, %v616
        %v2012 = vpop.permute.xlu0 %2011
        %2015 = vset.pattern.permute.xlu0 0
        %2016 = vperm.xlu0 %2015, %v617
        %v2017 = vpop.permute.xlu0 %2016
        %2020 = vset.pattern.permute.xlu0 0
        %2021 = vperm.xlu0 %2020, %v618
        %v2022 = vpop.permute.xlu0 %2021
        %2025 = vset.pattern.permute.xlu0 0
        %2026 = vperm.xlu0 %2025, %v619
        %v2027 = vpop.permute.xlu0 %2026
        %2030 = vset.pattern.permute.xlu0 0
        %2031 = vperm.xlu0 %2030, %v620
        %v2032 = vpop.permute.xlu0 %2031
        %v2034 = vmul.f32 %v1460, %v1717
        %v2035 = vmul.f32 %v1463, %v1722
        %v2036 = vmul.f32 %v1468, %v1727
        %v2037 = vmul.f32 %v1471, %v1732
        %v2038 = vmul.f32 %v1476, %v1737
        %v2039 = vmul.f32 %v1479, %v1742
        %v2040 = vmul.f32 %v1484, %v1747
        %v2041 = vmul.f32 %v1487, %v1752
        %v2042 = vmul.f32 %v1492, %v1757
        %v2043 = vmul.f32 %v1495, %v1762
        %v2044 = vmul.f32 %v1500, %v1767
        %v2045 = vmul.f32 %v1503, %v1772
        %v2046 = vmul.f32 %v1508, %v1777
        %v2047 = vmul.f32 %v1511, %v1782
        %v2048 = vmul.f32 %v1516, %v1787
        %v2049 = vmul.f32 %v1519, %v1792
        %v2050 = vmul.f32 %v1524, %v1797
        %v2051 = vmul.f32 %v1527, %v1802
        %v2052 = vmul.f32 %v1532, %v1807
        %v2053 = vmul.f32 %v1535, %v1812
        %v2054 = vmul.f32 %v1540, %v1817
        %v2055 = vmul.f32 %v1543, %v1822
        %v2056 = vmul.f32 %v1548, %v1827
        %v2057 = vmul.f32 %v1551, %v1832
        %v2058 = vmul.f32 %v1556, %v1837
        %v2059 = vmul.f32 %v1559, %v1842
        %v2060 = vmul.f32 %v1564, %v1847
        %v2061 = vmul.f32 %v1567, %v1852
        %v2062 = vmul.f32 %v1572, %v1857
        %v2063 = vmul.f32 %v1575, %v1862
        %v2064 = vmul.f32 %v1580, %v1867
        %v2065 = vmul.f32 %v1583, %v1872
        %v2066 = vmul.f32 %v1588, %v1877
        %v2067 = vmul.f32 %v1591, %v1882
        %v2068 = vmul.f32 %v1596, %v1887
        %v2069 = vmul.f32 %v1599, %v1892
        %v2070 = vmul.f32 %v1604, %v1897
        %v2071 = vmul.f32 %v1607, %v1902
        %v2072 = vmul.f32 %v1612, %v1907
        %v2073 = vmul.f32 %v1615, %v1912
        %v2074 = vmul.f32 %v1620, %v1917
        %v2075 = vmul.f32 %v1623, %v1922
        %v2076 = vmul.f32 %v1628, %v1927
        %v2077 = vmul.f32 %v1631, %v1932
        %v2078 = vmul.f32 %v1636, %v1937
        %v2079 = vmul.f32 %v1639, %v1942
        %v2080 = vmul.f32 %v1644, %v1947
        %v2081 = vmul.f32 %v1647, %v1952
        %v2082 = vmul.f32 %v1652, %v1957
        %v2083 = vmul.f32 %v1655, %v1962
        %v2084 = vmul.f32 %v1660, %v1967
        %v2085 = vmul.f32 %v1663, %v1972
        %v2086 = vmul.f32 %v1668, %v1977
        %v2087 = vmul.f32 %v1671, %v1982
        %v2088 = vmul.f32 %v1676, %v1987
        %v2089 = vmul.f32 %v1679, %v1992
        %v2090 = vmul.f32 %v1684, %v1997
        %v2091 = vmul.f32 %v1687, %v2002
        %v2092 = vmul.f32 %v1692, %v2007
        %v2093 = vmul.f32 %v1695, %v2012
        %v2094 = vmul.f32 %v1700, %v2017
        %v2095 = vmul.f32 %v1703, %v2022
        %v2096 = vmul.f32 %v1708, %v2027
        %v2097 = vmul.f32 %v1711, %v2032
        %v2098 = vpack.c.bf16 %v2035, %v2034
        %v2099 = vpack.c.bf16 %v2037, %v2036
        %v2100 = vpack.c.bf16 %v2039, %v2038
        %v2101 = vpack.c.bf16 %v2041, %v2040
        %v2102 = vpack.c.bf16 %v2043, %v2042
        %v2103 = vpack.c.bf16 %v2045, %v2044
        %v2104 = vpack.c.bf16 %v2047, %v2046
        %v2105 = vpack.c.bf16 %v2049, %v2048
        %v2106 = vpack.c.bf16 %v2051, %v2050
        %v2107 = vpack.c.bf16 %v2053, %v2052
        %v2108 = vpack.c.bf16 %v2055, %v2054
        %v2109 = vpack.c.bf16 %v2057, %v2056
        %v2110 = vpack.c.bf16 %v2059, %v2058
        %v2111 = vpack.c.bf16 %v2061, %v2060
        %v2112 = vpack.c.bf16 %v2063, %v2062
        %v2113 = vpack.c.bf16 %v2065, %v2064
        %v2114 = vpack.c.bf16 %v2067, %v2066
        %v2115 = vpack.c.bf16 %v2069, %v2068
        %v2116 = vpack.c.bf16 %v2071, %v2070
        %v2117 = vpack.c.bf16 %v2073, %v2072
        %v2118 = vpack.c.bf16 %v2075, %v2074
        %v2119 = vpack.c.bf16 %v2077, %v2076
        %v2120 = vpack.c.bf16 %v2079, %v2078
        %v2121 = vpack.c.bf16 %v2081, %v2080
        %v2122 = vpack.c.bf16 %v2083, %v2082
        %v2123 = vpack.c.bf16 %v2085, %v2084
        %v2124 = vpack.c.bf16 %v2087, %v2086
        %v2125 = vpack.c.bf16 %v2089, %v2088
        %v2126 = vpack.c.bf16 %v2091, %v2090
        %v2127 = vpack.c.bf16 %v2093, %v2092
        %v2128 = vpack.c.bf16 %v2095, %v2094
        %v2129 = vpack.c.bf16 %v2097, %v2096
        %v2130 = vlaneseq
        %v2131 = vshrl.u32 %v2130, 7
        %v2132 = vsub.s32 0, %v2131
        %v2133 = vrot.slane %v492, %v2132
        %v2134 = vlaneseq
        %v2135 = vshrl.u32 %v2134, 7
        %v2136 = vsub.s32 1, %v2135
        %v2137 = vrot.slane %v492, %v2136
        %v2138 = vlaneseq
        %v2139 = vshrl.u32 %v2138, 7
        %v2140 = vsub.s32 2, %v2139
        %v2141 = vrot.slane %v492, %v2140
        %v2142 = vlaneseq
        %v2143 = vshrl.u32 %v2142, 7
        %v2144 = vsub.s32 3, %v2143
        %v2145 = vrot.slane %v492, %v2144
        %vm2146 = vcmp.eq.s32.totalorder %v622, %v2133
        %vm2147 = vcmp.eq.s32.totalorder %v622, %v2137
        %vm2148 = vcmp.eq.s32.totalorder %v622, %v2141
        %vm2149 = vcmp.eq.s32.totalorder %v622, %v2145
        %vm2150 = vcmp.eq.s32.totalorder %v623, %v2133
        %vm2151 = vcmp.eq.s32.totalorder %v623, %v2137
        %vm2152 = vcmp.eq.s32.totalorder %v623, %v2141
        %vm2153 = vcmp.eq.s32.totalorder %v623, %v2145
        %vm2154 = vcmp.eq.s32.totalorder %v624, %v2133
        %vm2155 = vcmp.eq.s32.totalorder %v624, %v2137
        %vm2156 = vcmp.eq.s32.totalorder %v624, %v2141
        %vm2157 = vcmp.eq.s32.totalorder %v624, %v2145
        %vm2158 = vcmp.eq.s32.totalorder %v625, %v2133
        %vm2159 = vcmp.eq.s32.totalorder %v625, %v2137
        %vm2160 = vcmp.eq.s32.totalorder %v625, %v2141
        %vm2161 = vcmp.eq.s32.totalorder %v625, %v2145
        %vm2162 = vcmp.eq.s32.totalorder %v626, %v2133
        %vm2163 = vcmp.eq.s32.totalorder %v626, %v2137
        %vm2164 = vcmp.eq.s32.totalorder %v626, %v2141
        %vm2165 = vcmp.eq.s32.totalorder %v626, %v2145
        %vm2166 = vcmp.eq.s32.totalorder %v627, %v2133
        %vm2167 = vcmp.eq.s32.totalorder %v627, %v2137
        %vm2168 = vcmp.eq.s32.totalorder %v627, %v2141
        %vm2169 = vcmp.eq.s32.totalorder %v627, %v2145
        %vm2170 = vcmp.eq.s32.totalorder %v628, %v2133
        %vm2171 = vcmp.eq.s32.totalorder %v628, %v2137
        %vm2172 = vcmp.eq.s32.totalorder %v628, %v2141
        %vm2173 = vcmp.eq.s32.totalorder %v628, %v2145
        %vm2174 = vcmp.eq.s32.totalorder %v629, %v2133
        %vm2175 = vcmp.eq.s32.totalorder %v629, %v2137
        %vm2176 = vcmp.eq.s32.totalorder %v629, %v2141
        %vm2177 = vcmp.eq.s32.totalorder %v629, %v2145
        %vm2178 = vcmp.eq.s32.totalorder %v630, %v2133
        %vm2179 = vcmp.eq.s32.totalorder %v630, %v2137
        %vm2180 = vcmp.eq.s32.totalorder %v630, %v2141
        %vm2181 = vcmp.eq.s32.totalorder %v630, %v2145
        %vm2182 = vcmp.eq.s32.totalorder %v631, %v2133
        %vm2183 = vcmp.eq.s32.totalorder %v631, %v2137
        %vm2184 = vcmp.eq.s32.totalorder %v631, %v2141
        %vm2185 = vcmp.eq.s32.totalorder %v631, %v2145
        %vm2186 = vcmp.eq.s32.totalorder %v632, %v2133
        %vm2187 = vcmp.eq.s32.totalorder %v632, %v2137
        %vm2188 = vcmp.eq.s32.totalorder %v632, %v2141
        %vm2189 = vcmp.eq.s32.totalorder %v632, %v2145
        %vm2190 = vcmp.eq.s32.totalorder %v633, %v2133
        %vm2191 = vcmp.eq.s32.totalorder %v633, %v2137
        %vm2192 = vcmp.eq.s32.totalorder %v633, %v2141
        %vm2193 = vcmp.eq.s32.totalorder %v633, %v2145
        %vm2194 = vcmp.eq.s32.totalorder %v634, %v2133
        %vm2195 = vcmp.eq.s32.totalorder %v634, %v2137
        %vm2196 = vcmp.eq.s32.totalorder %v634, %v2141
        %vm2197 = vcmp.eq.s32.totalorder %v634, %v2145
        %vm2198 = vcmp.eq.s32.totalorder %v635, %v2133
        %vm2199 = vcmp.eq.s32.totalorder %v635, %v2137
        %vm2200 = vcmp.eq.s32.totalorder %v635, %v2141
        %vm2201 = vcmp.eq.s32.totalorder %v635, %v2145
        %vm2202 = vcmp.eq.s32.totalorder %v636, %v2133
        %vm2203 = vcmp.eq.s32.totalorder %v636, %v2137
        %vm2204 = vcmp.eq.s32.totalorder %v636, %v2141
        %vm2205 = vcmp.eq.s32.totalorder %v636, %v2145
        %vm2206 = vcmp.eq.s32.totalorder %v637, %v2133
        %vm2207 = vcmp.eq.s32.totalorder %v637, %v2137
        %vm2208 = vcmp.eq.s32.totalorder %v637, %v2141
        %vm2209 = vcmp.eq.s32.totalorder %v637, %v2145
        %vm2210 = vcmp.eq.s32.totalorder %v638, %v2133
        %vm2211 = vcmp.eq.s32.totalorder %v638, %v2137
        %vm2212 = vcmp.eq.s32.totalorder %v638, %v2141
        %vm2213 = vcmp.eq.s32.totalorder %v638, %v2145
        %vm2214 = vcmp.eq.s32.totalorder %v639, %v2133
        %vm2215 = vcmp.eq.s32.totalorder %v639, %v2137
        %vm2216 = vcmp.eq.s32.totalorder %v639, %v2141
        %vm2217 = vcmp.eq.s32.totalorder %v639, %v2145
        %vm2218 = vcmp.eq.s32.totalorder %v640, %v2133
        %vm2219 = vcmp.eq.s32.totalorder %v640, %v2137
        %vm2220 = vcmp.eq.s32.totalorder %v640, %v2141
        %vm2221 = vcmp.eq.s32.totalorder %v640, %v2145
        %vm2222 = vcmp.eq.s32.totalorder %v641, %v2133
        %vm2223 = vcmp.eq.s32.totalorder %v641, %v2137
        %vm2224 = vcmp.eq.s32.totalorder %v641, %v2141
        %vm2225 = vcmp.eq.s32.totalorder %v641, %v2145
        %vm2226 = vcmp.eq.s32.totalorder %v642, %v2133
        %vm2227 = vcmp.eq.s32.totalorder %v642, %v2137
        %vm2228 = vcmp.eq.s32.totalorder %v642, %v2141
        %vm2229 = vcmp.eq.s32.totalorder %v642, %v2145
        %vm2230 = vcmp.eq.s32.totalorder %v643, %v2133
        %vm2231 = vcmp.eq.s32.totalorder %v643, %v2137
        %vm2232 = vcmp.eq.s32.totalorder %v643, %v2141
        %vm2233 = vcmp.eq.s32.totalorder %v643, %v2145
        %vm2234 = vcmp.eq.s32.totalorder %v644, %v2133
        %vm2235 = vcmp.eq.s32.totalorder %v644, %v2137
        %vm2236 = vcmp.eq.s32.totalorder %v644, %v2141
        %vm2237 = vcmp.eq.s32.totalorder %v644, %v2145
        %vm2238 = vcmp.eq.s32.totalorder %v645, %v2133
        %vm2239 = vcmp.eq.s32.totalorder %v645, %v2137
        %vm2240 = vcmp.eq.s32.totalorder %v645, %v2141
        %vm2241 = vcmp.eq.s32.totalorder %v645, %v2145
        %vm2242 = vcmp.eq.s32.totalorder %v646, %v2133
        %vm2243 = vcmp.eq.s32.totalorder %v646, %v2137
        %vm2244 = vcmp.eq.s32.totalorder %v646, %v2141
        %vm2245 = vcmp.eq.s32.totalorder %v646, %v2145
        %vm2246 = vcmp.eq.s32.totalorder %v647, %v2133
        %vm2247 = vcmp.eq.s32.totalorder %v647, %v2137
        %vm2248 = vcmp.eq.s32.totalorder %v647, %v2141
        %vm2249 = vcmp.eq.s32.totalorder %v647, %v2145
        %vm2250 = vcmp.eq.s32.totalorder %v648, %v2133
        %vm2251 = vcmp.eq.s32.totalorder %v648, %v2137
        %vm2252 = vcmp.eq.s32.totalorder %v648, %v2141
        %vm2253 = vcmp.eq.s32.totalorder %v648, %v2145
        %vm2254 = vcmp.eq.s32.totalorder %v649, %v2133
        %vm2255 = vcmp.eq.s32.totalorder %v649, %v2137
        %vm2256 = vcmp.eq.s32.totalorder %v649, %v2141
        %vm2257 = vcmp.eq.s32.totalorder %v649, %v2145
        %vm2258 = vcmp.eq.s32.totalorder %v650, %v2133
        %vm2259 = vcmp.eq.s32.totalorder %v650, %v2137
        %vm2260 = vcmp.eq.s32.totalorder %v650, %v2141
        %vm2261 = vcmp.eq.s32.totalorder %v650, %v2145
        %vm2262 = vcmp.eq.s32.totalorder %v651, %v2133
        %vm2263 = vcmp.eq.s32.totalorder %v651, %v2137
        %vm2264 = vcmp.eq.s32.totalorder %v651, %v2141
        %vm2265 = vcmp.eq.s32.totalorder %v651, %v2145
        %vm2266 = vcmp.eq.s32.totalorder %v652, %v2133
        %vm2267 = vcmp.eq.s32.totalorder %v652, %v2137
        %vm2268 = vcmp.eq.s32.totalorder %v652, %v2141
        %vm2269 = vcmp.eq.s32.totalorder %v652, %v2145
        %vm2270 = vcmp.eq.s32.totalorder %v653, %v2133
        %vm2271 = vcmp.eq.s32.totalorder %v653, %v2137
        %vm2272 = vcmp.eq.s32.totalorder %v653, %v2141
        %vm2273 = vcmp.eq.s32.totalorder %v653, %v2145
        %v2274 = vsel %vm2146, 1, 0
        %v2275 = vsel %vm2147, 1, 0
        %v2276 = vsel %vm2148, 1, 0
        %v2277 = vsel %vm2149, 1, 0
        %v2278 = vsel %vm2150, 1, 0
        %v2279 = vsel %vm2151, 1, 0
        %v2280 = vsel %vm2152, 1, 0
        %v2281 = vsel %vm2153, 1, 0
        %v2282 = vsel %vm2154, 1, 0
        %v2283 = vsel %vm2155, 1, 0
        %v2284 = vsel %vm2156, 1, 0
        %v2285 = vsel %vm2157, 1, 0
        %v2286 = vsel %vm2158, 1, 0
        %v2287 = vsel %vm2159, 1, 0
        %v2288 = vsel %vm2160, 1, 0
        %v2289 = vsel %vm2161, 1, 0
        %v2290 = vsel %vm2162, 1, 0
        %v2291 = vsel %vm2163, 1, 0
        %v2292 = vsel %vm2164, 1, 0
        %v2293 = vsel %vm2165, 1, 0
        %v2294 = vsel %vm2166, 1, 0
        %v2295 = vsel %vm2167, 1, 0
        %v2296 = vsel %vm2168, 1, 0
        %v2297 = vsel %vm2169, 1, 0
        %v2298 = vsel %vm2170, 1, 0
        %v2299 = vsel %vm2171, 1, 0
        %v2300 = vsel %vm2172, 1, 0
        %v2301 = vsel %vm2173, 1, 0
        %v2302 = vsel %vm2174, 1, 0
        %v2303 = vsel %vm2175, 1, 0
        %v2304 = vsel %vm2176, 1, 0
        %v2305 = vsel %vm2177, 1, 0
        %v2306 = vsel %vm2178, 1, 0
        %v2307 = vsel %vm2179, 1, 0
        %v2308 = vsel %vm2180, 1, 0
        %v2309 = vsel %vm2181, 1, 0
        %v2310 = vsel %vm2182, 1, 0
        %v2311 = vsel %vm2183, 1, 0
        %v2312 = vsel %vm2184, 1, 0
        %v2313 = vsel %vm2185, 1, 0
        %v2314 = vsel %vm2186, 1, 0
        %v2315 = vsel %vm2187, 1, 0
        %v2316 = vsel %vm2188, 1, 0
        %v2317 = vsel %vm2189, 1, 0
        %v2318 = vsel %vm2190, 1, 0
        %v2319 = vsel %vm2191, 1, 0
        %v2320 = vsel %vm2192, 1, 0
        %v2321 = vsel %vm2193, 1, 0
        %v2322 = vsel %vm2194, 1, 0
        %v2323 = vsel %vm2195, 1, 0
        %v2324 = vsel %vm2196, 1, 0
        %v2325 = vsel %vm2197, 1, 0
        %v2326 = vsel %vm2198, 1, 0
        %v2327 = vsel %vm2199, 1, 0
        %v2328 = vsel %vm2200, 1, 0
        %v2329 = vsel %vm2201, 1, 0
        %v2330 = vsel %vm2202, 1, 0
        %v2331 = vsel %vm2203, 1, 0
        %v2332 = vsel %vm2204, 1, 0
        %v2333 = vsel %vm2205, 1, 0
        %v2334 = vsel %vm2206, 1, 0
        %v2335 = vsel %vm2207, 1, 0
        %v2336 = vsel %vm2208, 1, 0
        %v2337 = vsel %vm2209, 1, 0
        %v2338 = vsel %vm2210, 1, 0
        %v2339 = vsel %vm2211, 1, 0
        %v2340 = vsel %vm2212, 1, 0
        %v2341 = vsel %vm2213, 1, 0
        %v2342 = vsel %vm2214, 1, 0
        %v2343 = vsel %vm2215, 1, 0
        %v2344 = vsel %vm2216, 1, 0
        %v2345 = vsel %vm2217, 1, 0
        %v2346 = vsel %vm2218, 1, 0
        %v2347 = vsel %vm2219, 1, 0
        %v2348 = vsel %vm2220, 1, 0
        %v2349 = vsel %vm2221, 1, 0
        %v2350 = vsel %vm2222, 1, 0
        %v2351 = vsel %vm2223, 1, 0
        %v2352 = vsel %vm2224, 1, 0
        %v2353 = vsel %vm2225, 1, 0
        %v2354 = vsel %vm2226, 1, 0
        %v2355 = vsel %vm2227, 1, 0
        %v2356 = vsel %vm2228, 1, 0
        %v2357 = vsel %vm2229, 1, 0
        %v2358 = vsel %vm2230, 1, 0
        %v2359 = vsel %vm2231, 1, 0
        %v2360 = vsel %vm2232, 1, 0
        %v2361 = vsel %vm2233, 1, 0
        %v2362 = vsel %vm2234, 1, 0
        %v2363 = vsel %vm2235, 1, 0
        %v2364 = vsel %vm2236, 1, 0
        %v2365 = vsel %vm2237, 1, 0
        %v2366 = vsel %vm2238, 1, 0
        %v2367 = vsel %vm2239, 1, 0
        %v2368 = vsel %vm2240, 1, 0
        %v2369 = vsel %vm2241, 1, 0
        %v2370 = vsel %vm2242, 1, 0
        %v2371 = vsel %vm2243, 1, 0
        %v2372 = vsel %vm2244, 1, 0
        %v2373 = vsel %vm2245, 1, 0
        %v2374 = vsel %vm2246, 1, 0
        %v2375 = vsel %vm2247, 1, 0
        %v2376 = vsel %vm2248, 1, 0
        %v2377 = vsel %vm2249, 1, 0
        %v2378 = vsel %vm2250, 1, 0
        %v2379 = vsel %vm2251, 1, 0
        %v2380 = vsel %vm2252, 1, 0
        %v2381 = vsel %vm2253, 1, 0
        %v2382 = vsel %vm2254, 1, 0
        %v2383 = vsel %vm2255, 1, 0
        %v2384 = vsel %vm2256, 1, 0
        %v2385 = vsel %vm2257, 1, 0
        %v2386 = vsel %vm2258, 1, 0
        %v2387 = vsel %vm2259, 1, 0
        %v2388 = vsel %vm2260, 1, 0
        %v2389 = vsel %vm2261, 1, 0
        %v2390 = vsel %vm2262, 1, 0
        %v2391 = vsel %vm2263, 1, 0
        %v2392 = vsel %vm2264, 1, 0
        %v2393 = vsel %vm2265, 1, 0
        %v2394 = vsel %vm2266, 1, 0
        %v2395 = vsel %vm2267, 1, 0
        %v2396 = vsel %vm2268, 1, 0
        %v2397 = vsel %vm2269, 1, 0
        %v2398 = vsel %vm2270, 1, 0
        %v2399 = vsel %vm2271, 1, 0
        %v2400 = vsel %vm2272, 1, 0
        %v2401 = vsel %vm2273, 1, 0
        %v2402 = vcvt.s32.f32 %v2274
        %v2403 = vcvt.s32.f32 %v2275
        %v2404 = vcvt.s32.f32 %v2276
        %v2405 = vcvt.s32.f32 %v2277
        %v2406 = vcvt.s32.f32 %v2278
        %v2407 = vcvt.s32.f32 %v2279
        %v2408 = vcvt.s32.f32 %v2280
        %v2409 = vcvt.s32.f32 %v2281
        %v2410 = vcvt.s32.f32 %v2282
        %v2411 = vcvt.s32.f32 %v2283
        %v2412 = vcvt.s32.f32 %v2284
        %v2413 = vcvt.s32.f32 %v2285
        %v2414 = vcvt.s32.f32 %v2286
        %v2415 = vcvt.s32.f32 %v2287
        %v2416 = vcvt.s32.f32 %v2288
        %v2417 = vcvt.s32.f32 %v2289
        %v2418 = vcvt.s32.f32 %v2290
        %v2419 = vcvt.s32.f32 %v2291
        %v2420 = vcvt.s32.f32 %v2292
        %v2421 = vcvt.s32.f32 %v2293
        %v2422 = vcvt.s32.f32 %v2294
        %v2423 = vcvt.s32.f32 %v2295
        %v2424 = vcvt.s32.f32 %v2296
        %v2425 = vcvt.s32.f32 %v2297
        %v2426 = vcvt.s32.f32 %v2298
        %v2427 = vcvt.s32.f32 %v2299
        %v2428 = vcvt.s32.f32 %v2300
        %v2429 = vcvt.s32.f32 %v2301
        %v2430 = vcvt.s32.f32 %v2302
        %v2431 = vcvt.s32.f32 %v2303
        %v2432 = vcvt.s32.f32 %v2304
        %v2433 = vcvt.s32.f32 %v2305
        %v2434 = vcvt.s32.f32 %v2306
        %v2435 = vcvt.s32.f32 %v2307
        %v2436 = vcvt.s32.f32 %v2308
        %v2437 = vcvt.s32.f32 %v2309
        %v2438 = vcvt.s32.f32 %v2310
        %v2439 = vcvt.s32.f32 %v2311
        %v2440 = vcvt.s32.f32 %v2312
        %v2441 = vcvt.s32.f32 %v2313
        %v2442 = vcvt.s32.f32 %v2314
        %v2443 = vcvt.s32.f32 %v2315
        %v2444 = vcvt.s32.f32 %v2316
        %v2445 = vcvt.s32.f32 %v2317
        %v2446 = vcvt.s32.f32 %v2318
        %v2447 = vcvt.s32.f32 %v2319
        %v2448 = vcvt.s32.f32 %v2320
        %v2449 = vcvt.s32.f32 %v2321
        %v2450 = vcvt.s32.f32 %v2322
        %v2451 = vcvt.s32.f32 %v2323
        %v2452 = vcvt.s32.f32 %v2324
        %v2453 = vcvt.s32.f32 %v2325
        %v2454 = vcvt.s32.f32 %v2326
        %v2455 = vcvt.s32.f32 %v2327
        %v2456 = vcvt.s32.f32 %v2328
        %v2457 = vcvt.s32.f32 %v2329
        %v2458 = vcvt.s32.f32 %v2330
        %v2459 = vcvt.s32.f32 %v2331
        %v2460 = vcvt.s32.f32 %v2332
        %v2461 = vcvt.s32.f32 %v2333
        %v2462 = vcvt.s32.f32 %v2334
        %v2463 = vcvt.s32.f32 %v2335
        %v2464 = vcvt.s32.f32 %v2336
        %v2465 = vcvt.s32.f32 %v2337
        %v2466 = vcvt.s32.f32 %v2338
        %v2467 = vcvt.s32.f32 %v2339
        %v2468 = vcvt.s32.f32 %v2340
        %v2469 = vcvt.s32.f32 %v2341
        %v2470 = vcvt.s32.f32 %v2342
        %v2471 = vcvt.s32.f32 %v2343
        %v2472 = vcvt.s32.f32 %v2344
        %v2473 = vcvt.s32.f32 %v2345
        %v2474 = vcvt.s32.f32 %v2346
        %v2475 = vcvt.s32.f32 %v2347
        %v2476 = vcvt.s32.f32 %v2348
        %v2477 = vcvt.s32.f32 %v2349
        %v2478 = vcvt.s32.f32 %v2350
        %v2479 = vcvt.s32.f32 %v2351
        %v2480 = vcvt.s32.f32 %v2352
        %v2481 = vcvt.s32.f32 %v2353
        %v2482 = vcvt.s32.f32 %v2354
        %v2483 = vcvt.s32.f32 %v2355
        %v2484 = vcvt.s32.f32 %v2356
        %v2485 = vcvt.s32.f32 %v2357
        %v2486 = vcvt.s32.f32 %v2358
        %v2487 = vcvt.s32.f32 %v2359
        %v2488 = vcvt.s32.f32 %v2360
        %v2489 = vcvt.s32.f32 %v2361
        %v2490 = vcvt.s32.f32 %v2362
        %v2491 = vcvt.s32.f32 %v2363
        %v2492 = vcvt.s32.f32 %v2364
        %v2493 = vcvt.s32.f32 %v2365
        %v2494 = vcvt.s32.f32 %v2366
        %v2495 = vcvt.s32.f32 %v2367
        %v2496 = vcvt.s32.f32 %v2368
        %v2497 = vcvt.s32.f32 %v2369
        %v2498 = vcvt.s32.f32 %v2370
        %v2499 = vcvt.s32.f32 %v2371
        %v2500 = vcvt.s32.f32 %v2372
        %v2501 = vcvt.s32.f32 %v2373
        %v2502 = vcvt.s32.f32 %v2374
        %v2503 = vcvt.s32.f32 %v2375
        %v2504 = vcvt.s32.f32 %v2376
        %v2505 = vcvt.s32.f32 %v2377
        %v2506 = vcvt.s32.f32 %v2378
        %v2507 = vcvt.s32.f32 %v2379
        %v2508 = vcvt.s32.f32 %v2380
        %v2509 = vcvt.s32.f32 %v2381
        %v2510 = vcvt.s32.f32 %v2382
        %v2511 = vcvt.s32.f32 %v2383
        %v2512 = vcvt.s32.f32 %v2384
        %v2513 = vcvt.s32.f32 %v2385
        %v2514 = vcvt.s32.f32 %v2386
        %v2515 = vcvt.s32.f32 %v2387
        %v2516 = vcvt.s32.f32 %v2388
        %v2517 = vcvt.s32.f32 %v2389
        %v2518 = vcvt.s32.f32 %v2390
        %v2519 = vcvt.s32.f32 %v2391
        %v2520 = vcvt.s32.f32 %v2392
        %v2521 = vcvt.s32.f32 %v2393
        %v2522 = vcvt.s32.f32 %v2394
        %v2523 = vcvt.s32.f32 %v2395
        %v2524 = vcvt.s32.f32 %v2396
        %v2525 = vcvt.s32.f32 %v2397
        %v2526 = vcvt.s32.f32 %v2398
        %v2527 = vcvt.s32.f32 %v2399
        %v2528 = vcvt.s32.f32 %v2400
        %v2529 = vcvt.s32.f32 %v2401
        %v2530 = vpack.c.bf16 %v2406, %v2402
        %v2531 = vpack.c.bf16 %v2407, %v2403
        %v2532 = vpack.c.bf16 %v2408, %v2404
        %v2533 = vpack.c.bf16 %v2409, %v2405
        %v2534 = vpack.c.bf16 %v2414, %v2410
        %v2535 = vpack.c.bf16 %v2415, %v2411
        %v2536 = vpack.c.bf16 %v2416, %v2412
        %v2537 = vpack.c.bf16 %v2417, %v2413
        %v2538 = vpack.c.bf16 %v2422, %v2418
        %v2539 = vpack.c.bf16 %v2423, %v2419
        %v2540 = vpack.c.bf16 %v2424, %v2420
        %v2541 = vpack.c.bf16 %v2425, %v2421
        %v2542 = vpack.c.bf16 %v2430, %v2426
        %v2543 = vpack.c.bf16 %v2431, %v2427
        %v2544 = vpack.c.bf16 %v2432, %v2428
        %v2545 = vpack.c.bf16 %v2433, %v2429
        %v2546 = vpack.c.bf16 %v2438, %v2434
        %v2547 = vpack.c.bf16 %v2439, %v2435
        %v2548 = vpack.c.bf16 %v2440, %v2436
        %v2549 = vpack.c.bf16 %v2441, %v2437
        %v2550 = vpack.c.bf16 %v2446, %v2442
        %v2551 = vpack.c.bf16 %v2447, %v2443
        %v2552 = vpack.c.bf16 %v2448, %v2444
        %v2553 = vpack.c.bf16 %v2449, %v2445
        %v2554 = vpack.c.bf16 %v2454, %v2450
        %v2555 = vpack.c.bf16 %v2455, %v2451
        %v2556 = vpack.c.bf16 %v2456, %v2452
        %v2557 = vpack.c.bf16 %v2457, %v2453
        %v2558 = vpack.c.bf16 %v2462, %v2458
        %v2559 = vpack.c.bf16 %v2463, %v2459
        %v2560 = vpack.c.bf16 %v2464, %v2460
        %v2561 = vpack.c.bf16 %v2465, %v2461
        %v2562 = vpack.c.bf16 %v2470, %v2466
        %v2563 = vpack.c.bf16 %v2471, %v2467
        %v2564 = vpack.c.bf16 %v2472, %v2468
        %v2565 = vpack.c.bf16 %v2473, %v2469
        %v2566 = vpack.c.bf16 %v2478, %v2474
        %v2567 = vpack.c.bf16 %v2479, %v2475
        %v2568 = vpack.c.bf16 %v2480, %v2476
        %v2569 = vpack.c.bf16 %v2481, %v2477
        %v2570 = vpack.c.bf16 %v2486, %v2482
        %v2571 = vpack.c.bf16 %v2487, %v2483
        %v2572 = vpack.c.bf16 %v2488, %v2484
        %v2573 = vpack.c.bf16 %v2489, %v2485
        %v2574 = vpack.c.bf16 %v2494, %v2490
        %v2575 = vpack.c.bf16 %v2495, %v2491
        %v2576 = vpack.c.bf16 %v2496, %v2492
        %v2577 = vpack.c.bf16 %v2497, %v2493
        %v2578 = vpack.c.bf16 %v2502, %v2498
        %v2579 = vpack.c.bf16 %v2503, %v2499
        %v2580 = vpack.c.bf16 %v2504, %v2500
        %v2581 = vpack.c.bf16 %v2505, %v2501
        %v2582 = vpack.c.bf16 %v2510, %v2506
        %v2583 = vpack.c.bf16 %v2511, %v2507
        %v2584 = vpack.c.bf16 %v2512, %v2508
        %v2585 = vpack.c.bf16 %v2513, %v2509
        %v2586 = vpack.c.bf16 %v2518, %v2514
        %v2587 = vpack.c.bf16 %v2519, %v2515
        %v2588 = vpack.c.bf16 %v2520, %v2516
        %v2589 = vpack.c.bf16 %v2521, %v2517
        %v2590 = vpack.c.bf16 %v2526, %v2522
        %v2591 = vpack.c.bf16 %v2527, %v2523
        %v2592 = vpack.c.bf16 %v2528, %v2524
        %v2593 = vpack.c.bf16 %v2529, %v2525
        %2594 = vmatprep.subr.bf16.mxu0 0
        %2595 = vmatpush1.bf16.msra.mxu0 %v2105
        %2596 = vmatprep.subr.bf16.mxu0 0
        %2597 = vmatpush1.bf16.msra.mxu0 %v2104
        %2598 = vmatprep.subr.bf16.mxu0 0
        %2599 = vmatpush1.bf16.msra.mxu0 %v2103
        %2600 = vmatprep.subr.bf16.mxu0 0
        %2601 = vmatpush1.bf16.msra.mxu0 %v2102
        %2602 = vmatprep.subr.bf16.mxu0 0
        %2603 = vmatpush1.bf16.msra.mxu0 %v2101
        %2604 = vmatprep.subr.bf16.mxu0 0
        %2605 = vmatpush1.bf16.msra.mxu0 %v2100
        %2606 = vmatprep.subr.bf16.mxu0 0
        %2607 = vmatpush1.bf16.msra.mxu0 %v2099
        %2608 = vmatprep.subr.bf16.mxu0 0
        %2609 = vmatpush1.bf16.msra.mxu0 %v2098
        %2610 = vmatprep.subr.bf16.mxu0 0
        %2611 = vmatpush2.bf16.msra.mxu0 %v2113
        %2612 = vmatprep.subr.bf16.mxu0 0
        %2613 = vmatpush2.bf16.msra.mxu0 %v2112
        %2614 = vmatprep.subr.bf16.mxu0 0
        %2615 = vmatpush2.bf16.msra.mxu0 %v2111
        %2616 = vmatprep.subr.bf16.mxu0 0
        %2617 = vmatpush2.bf16.msra.mxu0 %v2110
        %2618 = vmatprep.subr.bf16.mxu0 0
        %2619 = vmatpush2.bf16.msra.mxu0 %v2109
        %2620 = vmatprep.subr.bf16.mxu0 0
        %2621 = vmatpush2.bf16.msra.mxu0 %v2108
        %2622 = vmatprep.subr.bf16.mxu0 0
        %2623 = vmatpush2.bf16.msra.mxu0 %v2107
        %2624 = vmatprep.subr.bf16.mxu0 0
        %2625 = vmatpush2.bf16.msra.mxu0 %v2106
        %2626 = vmatprep.mubr.bf16.mxu0 %v2531
        %2627 = vmatmul.mubr.bf16.gmra.mxu0 %v2530
        %v2628 = vpop.f32.mrf.mxu0
        %v2629 = vadd.f32 0.0, %v2628
        %v2630 = vpop.f32.mrf.mxu0
        %v2631 = vpop.f32.mrf.mxu0
        %v2632 = vadd.f32 0.0, %v2631
        %v2633 = vpop.f32.mrf.mxu0
        %2634 = vmatprep.mubr.bf16.mxu0 %v2535
        %2635 = vmatmul.mubr.bf16.gmra.mxu0 %v2534
        %v2636 = vpop.f32.mrf.mxu0
        %v2637 = vadd.f32 0.0, %v2636
        %v2638 = vpop.f32.mrf.mxu0
        %v2639 = vpop.f32.mrf.mxu0
        %v2640 = vadd.f32 0.0, %v2639
        %v2641 = vpop.f32.mrf.mxu0
        %2642 = vmatprep.mubr.bf16.mxu0 %v2539
        %2643 = vmatmul.mubr.bf16.gmra.mxu0 %v2538
        %v2644 = vpop.f32.mrf.mxu0
        %v2645 = vadd.f32 0.0, %v2644
        %v2646 = vpop.f32.mrf.mxu0
        %v2647 = vpop.f32.mrf.mxu0
        %v2648 = vadd.f32 0.0, %v2647
        %v2649 = vpop.f32.mrf.mxu0
        %2650 = vmatprep.mubr.bf16.mxu0 %v2543
        %2651 = vmatmul.mubr.bf16.gmra.mxu0 %v2542
        %v2652 = vpop.f32.mrf.mxu0
        %v2653 = vadd.f32 0.0, %v2652
        %v2654 = vpop.f32.mrf.mxu0
        %v2655 = vpop.f32.mrf.mxu0
        %v2656 = vadd.f32 0.0, %v2655
        %v2657 = vpop.f32.mrf.mxu0
        %2658 = vmatprep.mubr.bf16.mxu0 %v2547
        %2659 = vmatmul.mubr.bf16.gmra.mxu0 %v2546
        %v2660 = vpop.f32.mrf.mxu0
        %v2661 = vadd.f32 0.0, %v2660
        %v2662 = vpop.f32.mrf.mxu0
        %v2663 = vpop.f32.mrf.mxu0
        %v2664 = vadd.f32 0.0, %v2663
        %v2665 = vpop.f32.mrf.mxu0
        %2666 = vmatprep.mubr.bf16.mxu0 %v2551
        %2667 = vmatmul.mubr.bf16.gmra.mxu0 %v2550
        %v2668 = vpop.f32.mrf.mxu0
        %v2669 = vadd.f32 0.0, %v2668
        %v2670 = vpop.f32.mrf.mxu0
        %v2671 = vpop.f32.mrf.mxu0
        %v2672 = vadd.f32 0.0, %v2671
        %v2673 = vpop.f32.mrf.mxu0
        %2674 = vmatprep.mubr.bf16.mxu0 %v2555
        %2675 = vmatmul.mubr.bf16.gmra.mxu0 %v2554
        %v2676 = vpop.f32.mrf.mxu0
        %v2677 = vadd.f32 0.0, %v2676
        %v2678 = vpop.f32.mrf.mxu0
        %v2679 = vpop.f32.mrf.mxu0
        %v2680 = vadd.f32 0.0, %v2679
        %v2681 = vpop.f32.mrf.mxu0
        %2682 = vmatprep.mubr.bf16.mxu0 %v2559
        %2683 = vmatmul.mubr.bf16.gmra.mxu0 %v2558
        %v2684 = vpop.f32.mrf.mxu0
        %v2685 = vadd.f32 0.0, %v2684
        %v2686 = vpop.f32.mrf.mxu0
        %v2687 = vpop.f32.mrf.mxu0
        %v2688 = vadd.f32 0.0, %v2687
        %v2689 = vpop.f32.mrf.mxu0
        %2690 = vmatprep.mubr.bf16.mxu0 %v2563
        %2691 = vmatmul.mubr.bf16.gmra.mxu0 %v2562
        %v2692 = vpop.f32.mrf.mxu0
        %v2693 = vadd.f32 0.0, %v2692
        %v2694 = vpop.f32.mrf.mxu0
        %v2695 = vpop.f32.mrf.mxu0
        %v2696 = vadd.f32 0.0, %v2695
        %v2697 = vpop.f32.mrf.mxu0
        %2698 = vmatprep.mubr.bf16.mxu0 %v2567
        %2699 = vmatmul.mubr.bf16.gmra.mxu0 %v2566
        %v2700 = vpop.f32.mrf.mxu0
        %v2701 = vadd.f32 0.0, %v2700
        %v2702 = vpop.f32.mrf.mxu0
        %v2703 = vpop.f32.mrf.mxu0
        %v2704 = vadd.f32 0.0, %v2703
        %v2705 = vpop.f32.mrf.mxu0
        %2706 = vmatprep.mubr.bf16.mxu0 %v2571
        %2707 = vmatmul.mubr.bf16.gmra.mxu0 %v2570
        %v2708 = vpop.f32.mrf.mxu0
        %v2709 = vadd.f32 0.0, %v2708
        %v2710 = vpop.f32.mrf.mxu0
        %v2711 = vpop.f32.mrf.mxu0
        %v2712 = vadd.f32 0.0, %v2711
        %v2713 = vpop.f32.mrf.mxu0
        %2714 = vmatprep.mubr.bf16.mxu0 %v2575
        %2715 = vmatmul.mubr.bf16.gmra.mxu0 %v2574
        %v2716 = vpop.f32.mrf.mxu0
        %v2717 = vadd.f32 0.0, %v2716
        %v2718 = vpop.f32.mrf.mxu0
        %v2719 = vpop.f32.mrf.mxu0
        %v2720 = vadd.f32 0.0, %v2719
        %v2721 = vpop.f32.mrf.mxu0
        %2722 = vmatprep.mubr.bf16.mxu0 %v2579
        %2723 = vmatmul.mubr.bf16.gmra.mxu0 %v2578
        %v2724 = vpop.f32.mrf.mxu0
        %v2725 = vadd.f32 0.0, %v2724
        %v2726 = vpop.f32.mrf.mxu0
        %v2727 = vpop.f32.mrf.mxu0
        %v2728 = vadd.f32 0.0, %v2727
        %v2729 = vpop.f32.mrf.mxu0
        %2730 = vmatprep.mubr.bf16.mxu0 %v2583
        %2731 = vmatmul.mubr.bf16.gmra.mxu0 %v2582
        %v2732 = vpop.f32.mrf.mxu0
        %v2733 = vadd.f32 0.0, %v2732
        %v2734 = vpop.f32.mrf.mxu0
        %v2735 = vpop.f32.mrf.mxu0
        %v2736 = vadd.f32 0.0, %v2735
        %v2737 = vpop.f32.mrf.mxu0
        %2738 = vmatprep.mubr.bf16.mxu0 %v2587
        %2739 = vmatmul.mubr.bf16.gmra.mxu0 %v2586
        %v2740 = vpop.f32.mrf.mxu0
        %v2741 = vadd.f32 0.0, %v2740
        %v2742 = vpop.f32.mrf.mxu0
        %v2743 = vpop.f32.mrf.mxu0
        %v2744 = vadd.f32 0.0, %v2743
        %v2745 = vpop.f32.mrf.mxu0
        %2746 = vmatprep.mubr.bf16.mxu0 %v2591
        %2747 = vmatmul.mubr.bf16.gmra.mxu0 %v2590
        %v2748 = vpop.f32.mrf.mxu0
        %v2749 = vadd.f32 0.0, %v2748
        %v2750 = vpop.f32.mrf.mxu0
        %v2751 = vpop.f32.mrf.mxu0
        %v2752 = vadd.f32 0.0, %v2751
        %v2753 = vpop.f32.mrf.mxu0
        %2754 = vdwg.mxu0
        %2755 = vmatprep.subr.bf16.mxu0 0
        %2756 = vmatpush1.bf16.msra.mxu0 %v2121
        %2757 = vmatprep.subr.bf16.mxu0 0
        %2758 = vmatpush1.bf16.msra.mxu0 %v2120
        %2759 = vmatprep.subr.bf16.mxu0 0
        %2760 = vmatpush1.bf16.msra.mxu0 %v2119
        %2761 = vmatprep.subr.bf16.mxu0 0
        %2762 = vmatpush1.bf16.msra.mxu0 %v2118
        %2763 = vmatprep.subr.bf16.mxu0 0
        %2764 = vmatpush1.bf16.msra.mxu0 %v2117
        %2765 = vmatprep.subr.bf16.mxu0 0
        %2766 = vmatpush1.bf16.msra.mxu0 %v2116
        %2767 = vmatprep.subr.bf16.mxu0 0
        %2768 = vmatpush1.bf16.msra.mxu0 %v2115
        %2769 = vmatprep.subr.bf16.mxu0 0
        %2770 = vmatpush1.bf16.msra.mxu0 %v2114
        %2771 = vmatprep.subr.bf16.mxu0 0
        %2772 = vmatpush2.bf16.msra.mxu0 %v2129
        %2773 = vmatprep.subr.bf16.mxu0 0
        %2774 = vmatpush2.bf16.msra.mxu0 %v2128
        %2775 = vmatprep.subr.bf16.mxu0 0
        %2776 = vmatpush2.bf16.msra.mxu0 %v2127
        %2777 = vmatprep.subr.bf16.mxu0 0
        %2778 = vmatpush2.bf16.msra.mxu0 %v2126
        %2779 = vmatprep.subr.bf16.mxu0 0
        %2780 = vmatpush2.bf16.msra.mxu0 %v2125
        %2781 = vmatprep.subr.bf16.mxu0 0
        %2782 = vmatpush2.bf16.msra.mxu0 %v2124
        %2783 = vmatprep.subr.bf16.mxu0 0
        %2784 = vmatpush2.bf16.msra.mxu0 %v2123
        %2785 = vmatprep.subr.bf16.mxu0 0
        %2786 = vmatpush2.bf16.msra.mxu0 %v2122
        %2787 = vmatprep.mubr.bf16.mxu0 %v2533
        %2788 = vmatmul.mubr.bf16.gmra.mxu0 %v2532
        %v2789 = vpop.f32.mrf.mxu0
        %v2790 = vadd.f32 %v2629, %v2789
        %v2791 = vpop.f32.mrf.mxu0
        %v2792 = vpop.f32.mrf.mxu0
        %v2793 = vadd.f32 %v2632, %v2792
        %v2794 = vpop.f32.mrf.mxu0
        %2795 = vmatprep.mubr.bf16.mxu0 %v2537
        %2796 = vmatmul.mubr.bf16.gmra.mxu0 %v2536
        %v2797 = vpop.f32.mrf.mxu0
        %v2798 = vadd.f32 %v2637, %v2797
        %v2799 = vpop.f32.mrf.mxu0
        %v2800 = vpop.f32.mrf.mxu0
        %v2801 = vadd.f32 %v2640, %v2800
        %v2802 = vpop.f32.mrf.mxu0
        %2803 = vmatprep.mubr.bf16.mxu0 %v2541
        %2804 = vmatmul.mubr.bf16.gmra.mxu0 %v2540
        %v2805 = vpop.f32.mrf.mxu0
        %v2806 = vadd.f32 %v2645, %v2805
        %v2807 = vpop.f32.mrf.mxu0
        %v2808 = vpop.f32.mrf.mxu0
        %v2809 = vadd.f32 %v2648, %v2808
        %v2810 = vpop.f32.mrf.mxu0
        %2811 = vmatprep.mubr.bf16.mxu0 %v2545
        %2812 = vmatmul.mubr.bf16.gmra.mxu0 %v2544
        %v2813 = vpop.f32.mrf.mxu0
        %v2814 = vadd.f32 %v2653, %v2813
        %v2815 = vpop.f32.mrf.mxu0
        %v2816 = vpop.f32.mrf.mxu0
        %v2817 = vadd.f32 %v2656, %v2816
        %v2818 = vpop.f32.mrf.mxu0
        %2819 = vmatprep.mubr.bf16.mxu0 %v2549
        %2820 = vmatmul.mubr.bf16.gmra.mxu0 %v2548
        %v2821 = vpop.f32.mrf.mxu0
        %v2822 = vadd.f32 %v2661, %v2821
        %v2823 = vpop.f32.mrf.mxu0
        %v2824 = vpop.f32.mrf.mxu0
        %v2825 = vadd.f32 %v2664, %v2824
        %v2826 = vpop.f32.mrf.mxu0
        %2827 = vmatprep.mubr.bf16.mxu0 %v2553
        %2828 = vmatmul.mubr.bf16.gmra.mxu0 %v2552
        %v2829 = vpop.f32.mrf.mxu0
        %v2830 = vadd.f32 %v2669, %v2829
        %v2831 = vpop.f32.mrf.mxu0
        %v2832 = vpop.f32.mrf.mxu0
        %v2833 = vadd.f32 %v2672, %v2832
        %v2834 = vpop.f32.mrf.mxu0
        %2835 = vmatprep.mubr.bf16.mxu0 %v2557
        %2836 = vmatmul.mubr.bf16.gmra.mxu0 %v2556
        %v2837 = vpop.f32.mrf.mxu0
        %v2838 = vadd.f32 %v2677, %v2837
        %v2839 = vpop.f32.mrf.mxu0
        %v2840 = vpop.f32.mrf.mxu0
        %v2841 = vadd.f32 %v2680, %v2840
        %v2842 = vpop.f32.mrf.mxu0
        %2843 = vmatprep.mubr.bf16.mxu0 %v2561
        %2844 = vmatmul.mubr.bf16.gmra.mxu0 %v2560
        %v2845 = vpop.f32.mrf.mxu0
        %v2846 = vadd.f32 %v2685, %v2845
        %v2847 = vpop.f32.mrf.mxu0
        %v2848 = vpop.f32.mrf.mxu0
        %v2849 = vadd.f32 %v2688, %v2848
        %v2850 = vpop.f32.mrf.mxu0
        %2851 = vmatprep.mubr.bf16.mxu0 %v2565
        %2852 = vmatmul.mubr.bf16.gmra.mxu0 %v2564
        %v2853 = vpop.f32.mrf.mxu0
        %v2854 = vadd.f32 %v2693, %v2853
        %v2855 = vpop.f32.mrf.mxu0
        %v2856 = vpop.f32.mrf.mxu0
        %v2857 = vadd.f32 %v2696, %v2856
        %v2858 = vpop.f32.mrf.mxu0
        %2859 = vmatprep.mubr.bf16.mxu0 %v2569
        %2860 = vmatmul.mubr.bf16.gmra.mxu0 %v2568
        %v2861 = vpop.f32.mrf.mxu0
        %v2862 = vadd.f32 %v2701, %v2861
        %v2863 = vpop.f32.mrf.mxu0
        %v2864 = vpop.f32.mrf.mxu0
        %v2865 = vadd.f32 %v2704, %v2864
        %v2866 = vpop.f32.mrf.mxu0
        %2867 = vmatprep.mubr.bf16.mxu0 %v2573
        %2868 = vmatmul.mubr.bf16.gmra.mxu0 %v2572
        %v2869 = vpop.f32.mrf.mxu0
        %v2870 = vadd.f32 %v2709, %v2869
        %v2871 = vpop.f32.mrf.mxu0
        %v2872 = vpop.f32.mrf.mxu0
        %v2873 = vadd.f32 %v2712, %v2872
        %v2874 = vpop.f32.mrf.mxu0
        %2875 = vmatprep.mubr.bf16.mxu0 %v2577
        %2876 = vmatmul.mubr.bf16.gmra.mxu0 %v2576
        %v2877 = vpop.f32.mrf.mxu0
        %v2878 = vadd.f32 %v2717, %v2877
        %v2879 = vpop.f32.mrf.mxu0
        %v2880 = vpop.f32.mrf.mxu0
        %v2881 = vadd.f32 %v2720, %v2880
        %v2882 = vpop.f32.mrf.mxu0
        %2883 = vmatprep.mubr.bf16.mxu0 %v2581
        %2884 = vmatmul.mubr.bf16.gmra.mxu0 %v2580
        %v2885 = vpop.f32.mrf.mxu0
        %v2886 = vadd.f32 %v2725, %v2885
        %v2887 = vpop.f32.mrf.mxu0
        %v2888 = vpop.f32.mrf.mxu0
        %v2889 = vadd.f32 %v2728, %v2888
        %v2890 = vpop.f32.mrf.mxu0
        %2891 = vmatprep.mubr.bf16.mxu0 %v2585
        %2892 = vmatmul.mubr.bf16.gmra.mxu0 %v2584
        %v2893 = vpop.f32.mrf.mxu0
        %v2894 = vadd.f32 %v2733, %v2893
        %v2895 = vpop.f32.mrf.mxu0
        %v2896 = vpop.f32.mrf.mxu0
        %v2897 = vadd.f32 %v2736, %v2896
        %v2898 = vpop.f32.mrf.mxu0
        %2899 = vmatprep.mubr.bf16.mxu0 %v2589
        %2900 = vmatmul.mubr.bf16.gmra.mxu0 %v2588
        %v2901 = vpop.f32.mrf.mxu0
        %v2902 = vadd.f32 %v2741, %v2901
        %v2903 = vpop.f32.mrf.mxu0
        %v2904 = vpop.f32.mrf.mxu0
        %v2905 = vadd.f32 %v2744, %v2904
        %v2906 = vpop.f32.mrf.mxu0
        %2907 = vmatprep.mubr.bf16.mxu0 %v2593
        %2908 = vmatmul.mubr.bf16.gmra.mxu0 %v2592
        %v2909 = vpop.f32.mrf.mxu0
        %v2910 = vadd.f32 %v2749, %v2909
        %v2911 = vpop.f32.mrf.mxu0
        %v2912 = vpop.f32.mrf.mxu0
        %v2913 = vadd.f32 %v2752, %v2912
        %v2914 = vpop.f32.mrf.mxu0
        %2915 = vdwg.mxu0
        %p2916 = scmp.eq.s32.totalorder %s491, 1
        // Predicated region
        $region78: #{tpu_custom_call.1} parent=72 // pred_check
          %p2917 = pneg %p2916
        $region79: #{tpu_custom_call.1} parent=72 // pred_check_branch
          %2919 = sbr.rel (%p2917) target = $region81
        $region80: #{tpu_custom_call.1} parent=72 // pred_region
          %2920 = vst [vmem:[%s457] sm:$0xff] %v2790
          %2921 = vst [vmem:[%s457 + $0x8] sm:$0xff] %v2793
          %2922 = vst [vmem:[%s457 + $0x10] sm:$0xff] %v2798
          %2923 = vst [vmem:[%s457 + $0x18] sm:$0xff] %v2801
          %2924 = vst [vmem:[%s457 + $0x20] sm:$0xff] %v2806
          %2925 = vst [vmem:[%s457 + $0x28] sm:$0xff] %v2809
          %2926 = vst [vmem:[%s457 + $0x30] sm:$0xff] %v2814
          %2927 = vst [vmem:[%s457 + $0x38] sm:$0xff] %v2817
          %2928 = vst [vmem:[%s457 + $0x40] sm:$0xff] %v2822
          %2929 = vst [vmem:[%s457 + $0x48] sm:$0xff] %v2825
          %2930 = vst [vmem:[%s457 + $0x50] sm:$0xff] %v2830
          %2931 = vst [vmem:[%s457 + $0x58] sm:$0xff] %v2833
          %2932 = vst [vmem:[%s457 + $0x60] sm:$0xff] %v2838
          %2933 = vst [vmem:[%s457 + $0x68] sm:$0xff] %v2841
          %2934 = vst [vmem:[%s457 + $0x70] sm:$0xff] %v2846
          %2935 = vst [vmem:[%s457 + $0x78] sm:$0xff] %v2849
          %2936 = vst [vmem:[%s457 + $0x80] sm:$0xff] %v2854
          %2937 = vst [vmem:[%s457 + $0x88] sm:$0xff] %v2857
          %2938 = vst [vmem:[%s457 + $0x90] sm:$0xff] %v2862
          %2939 = vst [vmem:[%s457 + $0x98] sm:$0xff] %v2865
          %2940 = vst [vmem:[%s457 + $0xa0] sm:$0xff] %v2870
          %2941 = vst [vmem:[%s457 + $0xa8] sm:$0xff] %v2873
          %2942 = vst [vmem:[%s457 + $0xb0] sm:$0xff] %v2878
          %2943 = vst [vmem:[%s457 + $0xb8] sm:$0xff] %v2881
          %2944 = vst [vmem:[%s457 + $0xc0] sm:$0xff] %v2886
          %2945 = vst [vmem:[%s457 + $0xc8] sm:$0xff] %v2889
          %2946 = vst [vmem:[%s457 + $0xd0] sm:$0xff] %v2894
          %2947 = vst [vmem:[%s457 + $0xd8] sm:$0xff] %v2897
          %2948 = vst [vmem:[%s457 + $0xe0] sm:$0xff] %v2902
          %2949 = vst [vmem:[%s457 + $0xe8] sm:$0xff] %v2905
          %2950 = vst [vmem:[%s457 + $0xf0] sm:$0xff] %v2910
          %2951 = vst [vmem:[%s457 + $0xf8] sm:$0xff] %v2913
        $region81: #{tpu_custom_call.1} parent=72 // pred_fallthru
          _
        %p2952 = scmp.eq.s32.totalorder %s491, 0
        // Predicated region
        $region82: #{tpu_custom_call.1} parent=72 // pred_check
          %p2953 = pneg %p2952
        $region83: #{tpu_custom_call.1} parent=72 // pred_check_branch
          %2955 = sbr.rel (%p2953) target = $region85
        $region84: #{tpu_custom_call.1} parent=72 // pred_region
          %v2956 = vld [vmem:[%s457] sm:$0xff]
          %v2957 = vld [vmem:[%s457 + $0x8] sm:$0xff]
          %v2958 = vld [vmem:[%s457 + $0x10] sm:$0xff]
          %v2959 = vld [vmem:[%s457 + $0x18] sm:$0xff]
          %v2960 = vld [vmem:[%s457 + $0x20] sm:$0xff]
          %v2961 = vld [vmem:[%s457 + $0x28] sm:$0xff]
          %v2962 = vld [vmem:[%s457 + $0x30] sm:$0xff]
          %v2963 = vld [vmem:[%s457 + $0x38] sm:$0xff]
          %v2964 = vld [vmem:[%s457 + $0x40] sm:$0xff]
          %v2965 = vld [vmem:[%s457 + $0x48] sm:$0xff]
          %v2966 = vld [vmem:[%s457 + $0x50] sm:$0xff]
          %v2967 = vld [vmem:[%s457 + $0x58] sm:$0xff]
          %v2968 = vld [vmem:[%s457 + $0x60] sm:$0xff]
          %v2969 = vld [vmem:[%s457 + $0x68] sm:$0xff]
          %v2970 = vld [vmem:[%s457 + $0x70] sm:$0xff]
          %v2971 = vld [vmem:[%s457 + $0x78] sm:$0xff]
          %v2972 = vld [vmem:[%s457 + $0x80] sm:$0xff]
          %v2973 = vld [vmem:[%s457 + $0x88] sm:$0xff]
          %v2974 = vld [vmem:[%s457 + $0x90] sm:$0xff]
          %v2975 = vld [vmem:[%s457 + $0x98] sm:$0xff]
          %v2976 = vld [vmem:[%s457 + $0xa0] sm:$0xff]
          %v2977 = vld [vmem:[%s457 + $0xa8] sm:$0xff]
          %v2978 = vld [vmem:[%s457 + $0xb0] sm:$0xff]
          %v2979 = vld [vmem:[%s457 + $0xb8] sm:$0xff]
          %v2980 = vld [vmem:[%s457 + $0xc0] sm:$0xff]
          %v2981 = vld [vmem:[%s457 + $0xc8] sm:$0xff]
          %v2982 = vld [vmem:[%s457 + $0xd0] sm:$0xff]
          %v2983 = vld [vmem:[%s457 + $0xd8] sm:$0xff]
          %v2984 = vld [vmem:[%s457 + $0xe0] sm:$0xff]
          %v2985 = vld [vmem:[%s457 + $0xe8] sm:$0xff]
          %v2986 = vld [vmem:[%s457 + $0xf0] sm:$0xff]
          %v2987 = vld [vmem:[%s457 + $0xf8] sm:$0xff]
          %v2988 = vadd.f32 %v2956, %v2790
          %v2989 = vadd.f32 %v2957, %v2793
          %v2990 = vadd.f32 %v2958, %v2798
          %v2991 = vadd.f32 %v2959, %v2801
          %v2992 = vadd.f32 %v2960, %v2806
          %v2993 = vadd.f32 %v2961, %v2809
          %v2994 = vadd.f32 %v2962, %v2814
          %v2995 = vadd.f32 %v2963, %v2817
          %v2996 = vadd.f32 %v2964, %v2822
          %v2997 = vadd.f32 %v2965, %v2825
          %v2998 = vadd.f32 %v2966, %v2830
          %v2999 = vadd.f32 %v2967, %v2833
          %v3000 = vadd.f32 %v2968, %v2838
          %v3001 = vadd.f32 %v2969, %v2841
          %v3002 = vadd.f32 %v2970, %v2846
          %v3003 = vadd.f32 %v2971, %v2849
          %v3004 = vadd.f32 %v2972, %v2854
          %v3005 = vadd.f32 %v2973, %v2857
          %v3006 = vadd.f32 %v2974, %v2862
          %v3007 = vadd.f32 %v2975, %v2865
          %v3008 = vadd.f32 %v2976, %v2870
          %v3009 = vadd.f32 %v2977, %v2873
          %v3010 = vadd.f32 %v2978, %v2878
          %v3011 = vadd.f32 %v2979, %v2881
          %v3012 = vadd.f32 %v2980, %v2886
          %v3013 = vadd.f32 %v2981, %v2889
          %v3014 = vadd.f32 %v2982, %v2894
          %v3015 = vadd.f32 %v2983, %v2897
          %v3016 = vadd.f32 %v2984, %v2902
          %v3017 = vadd.f32 %v2985, %v2905
          %v3018 = vadd.f32 %v2986, %v2910
          %v3019 = vadd.f32 %v2987, %v2913
          %3020 = vst [vmem:[%s457] sm:$0xff] %v2988
          %3021 = vst [vmem:[%s457 + $0x8] sm:$0xff] %v2989
          %3022 = vst [vmem:[%s457 + $0x10] sm:$0xff] %v2990
          %3023 = vst [vmem:[%s457 + $0x18] sm:$0xff] %v2991
          %3024 = vst [vmem:[%s457 + $0x20] sm:$0xff] %v2992
          %3025 = vst [vmem:[%s457 + $0x28] sm:$0xff] %v2993
          %3026 = vst [vmem:[%s457 + $0x30] sm:$0xff] %v2994
          %3027 = vst [vmem:[%s457 + $0x38] sm:$0xff] %v2995
          %3028 = vst [vmem:[%s457 + $0x40] sm:$0xff] %v2996
          %3029 = vst [vmem:[%s457 + $0x48] sm:$0xff] %v2997
          %3030 = vst [vmem:[%s457 + $0x50] sm:$0xff] %v2998
          %3031 = vst [vmem:[%s457 + $0x58] sm:$0xff] %v2999
          %3032 = vst [vmem:[%s457 + $0x60] sm:$0xff] %v3000
          %3033 = vst [vmem:[%s457 + $0x68] sm:$0xff] %v3001
          %3034 = vst [vmem:[%s457 + $0x70] sm:$0xff] %v3002
          %3035 = vst [vmem:[%s457 + $0x78] sm:$0xff] %v3003
          %3036 = vst [vmem:[%s457 + $0x80] sm:$0xff] %v3004
          %3037 = vst [vmem:[%s457 + $0x88] sm:$0xff] %v3005
          %3038 = vst [vmem:[%s457 + $0x90] sm:$0xff] %v3006
          %3039 = vst [vmem:[%s457 + $0x98] sm:$0xff] %v3007
          %3040 = vst [vmem:[%s457 + $0xa0] sm:$0xff] %v3008
          %3041 = vst [vmem:[%s457 + $0xa8] sm:$0xff] %v3009
          %3042 = vst [vmem:[%s457 + $0xb0] sm:$0xff] %v3010
          %3043 = vst [vmem:[%s457 + $0xb8] sm:$0xff] %v3011
          %3044 = vst [vmem:[%s457 + $0xc0] sm:$0xff] %v3012
          %3045 = vst [vmem:[%s457 + $0xc8] sm:$0xff] %v3013
          %3046 = vst [vmem:[%s457 + $0xd0] sm:$0xff] %v3014
          %3047 = vst [vmem:[%s457 + $0xd8] sm:$0xff] %v3015
          %3048 = vst [vmem:[%s457 + $0xe0] sm:$0xff] %v3016
          %3049 = vst [vmem:[%s457 + $0xe8] sm:$0xff] %v3017
          %3050 = vst [vmem:[%s457 + $0xf0] sm:$0xff] %v3018
          %3051 = vst [vmem:[%s457 + $0xf8] sm:$0xff] %v3019
        $region85: #{tpu_custom_call.1} parent=72 // pred_fallthru
          _
        %s3052 = sand.u32 %s171, 1
        %s3053 = scalar_lea.sflag [#allocation6], %s3052
        %s3054 = sand.u32 %s171, 1
        %s3055 = smul.addr %s3054, 256
        %s3056 = scalar_lea.vmem [#allocation5], %s3055
        // Predicated region
        $region86: #{tpu_custom_call.1} parent=72 // pred_check
          %p3057 = pneg %p181
        $region87: #{tpu_custom_call.1} parent=72 // pred_check_branch
          %3059 = sbr.rel (%p3057) target = $region89
        $region88: #{tpu_custom_call.1} parent=72 // pred_region
          %s3060 = sld [smem:[#allocation3 + %s30]]
          %s3061 = smul.u32 32, %s3060
          %s3063 = ssub.s32 4096, 4096
          %3064 = vsyncadd %s3053, %s3063
          %s3065 = smul.addr %s3061, 2
          %s3066 = sadd.s32 %s29, %s3065
          %s3067 = smul.addr %s3066, 128
          %s3068 = scalar_lea.hbm %s5, %s3067
          %s3069 = sshll.u32 %s3056, 4
          %s3070 = int_to_ptr.vmem [resolvable:$true] %s3069
          %3075 = dma.vmem_to_hbm [thread:$0]  %s3070, 4096, %s3068, %s3053, 128, 256, 8
        $region89: #{tpu_custom_call.1} parent=72 // pred_fallthru
          _
      $region73: #{tpu_custom_call.1} parent=5 // pred_fallthru
        _
      %p3076 = scmp.le.s32.totalorder 2, %s20
      // Predicated region
      $region90: #{tpu_custom_call.1} parent=5 // pred_check
        %p3077 = pneg %p3076
      $region91: #{tpu_custom_call.1} parent=5 // pred_check_branch
        %3079 = sbr.rel (%p3077) target = $region93
      $region92: #{tpu_custom_call.1} parent=5 // pred_region
        %s3080 = ssub.s32 %s20, 2
        // Predicated region
        $region94: #{tpu_custom_call.1} parent=92 // pred_check
          %p3081 = pneg %p187
        $region95: #{tpu_custom_call.1} parent=92 // pred_check_branch
          %3083 = sbr.rel (%p3081) target = $region97
        $region96: #{tpu_custom_call.1} parent=92 // pred_region
          %s3084 = sand.u32 %s172, 1
          %s3085 = scalar_lea.sflag [#allocation6], %s3084
          %s3086 = sand.u32 %s172, 1
          %s3087 = smul.addr %s3086, 256
          %s3088 = scalar_lea.vmem [#allocation5], %s3087
          %3089 = dma.done %s3085, 4096
        $region97: #{tpu_custom_call.1} parent=92 // pred_fallthru
          _
      $region93: #{tpu_custom_call.1} parent=5 // pred_fallthru
        _
    $region6: #{tpu_custom_call.1} parent=1 // loop_footer
      %s24 = sadd.s32 1, %s20
    $region7: #{tpu_custom_call.1} parent=1 // loop_footer_branch
      %19 = sbr.rel target = $region3
    $region8: #{tpu_custom_call.1} parent=1 // loop_exit
      _
    %3090 = vsyncpa [#allocation6], 1
    %s3091 = scalar_lea.sflag [#allocation6], 1
    %3092 = vsyncpa %s3091, 1

</llo_original>
